<compile_context>
chip_gen: v6e
topology: v6e:2x2x1
jax: 0.10.0
libtpu: 0.0.40
codegen_flags: <defaults>
</compile_context>

<pallas_src>
import math

import jax
import jax.numpy as jnp
import numpy as np
from jax.experimental import pallas as pl
from jax.experimental.pallas import tpu as pltpu  # noqa: F401  (imported per template)

# ----------------------- small config (consistent with __init__) -------------
B = 2              # batch
T = 2              # num_frames
C = 3              # in_channels
IMG = 8            # img_size
PS = 4             # patch_size
D = 32             # embed_dims
HEADS = 4          # num_heads
HD = D // HEADS    # head dim
LAYERS = 2         # num_transformer_layers
HIDDEN = 4 * D     # ffn hidden_channels (embed_dims * 4)
HP = IMG // PS
P = HP * HP        # num_patches per frame
R_PT = B * P * T           # patch-token rows, (b, p, t) order
R_S = B * T + R_PT         # spatial-attn rows: one cls per (b, t) + all patches
LN_EPS_BLOCK = 1e-5
LN_EPS_FINAL = 1e-6
MXU_DTYPE = jnp.bfloat16   # MXU operand dtype (accumulation stays f32)
NEG_INF = -1e30


# ----------------------------- in-kernel helpers ------------------------------
def _ln(x, g, b, eps):
    # row-wise LayerNorm, f32 math (lane reductions)
    mu = jnp.mean(x, axis=-1, keepdims=True)
    xc = x - mu
    var = jnp.mean(xc * xc, axis=-1, keepdims=True)
    return xc * jax.lax.rsqrt(var + eps) * g + b


def _linear(x_f32, w_bf16, b_f32):
    # flat 2-D matmul: bf16 operands, f32 accumulation, f32 bias
    return jnp.dot(x_f32.astype(MXU_DTYPE), w_bf16,
                   preferred_element_type=jnp.float32) + b_f32


def _gelu_tanh(x):
    # tanh-form GELU (lowers to EUP tanh); small, documented deviation from the
    # exact erf GELU of nn.GELU() -- fine for fp32/bf16 inference tolerances.
    return 0.5 * x * (1.0 + jnp.tanh(0.7978845608028654 * (x + 0.044715 * x * x * x)))


def _mha(qkv_f32, mask, wo_bf16, bo_f32):
    # qkv_f32: (R, 3D) with 1/sqrt(head_dim) pre-folded into the Q columns.
    # mask:    (R, R) additive block-diagonal bias (0 inside a sequence,
    #          -1e30 outside) encoding the divided space/time grouping, so no
    #          per-sequence reshapes are needed -- everything stays 2-D.
    qkv = qkv_f32.astype(MXU_DTYPE)          # cast once, sliced per head below
    heads = []
    for h in range(HEADS):                   # static unroll (H = 4)
        lo = h * HD
        q = qkv[:, lo:lo + HD]
        k = qkv[:, D + lo:D + lo + HD]
        v = qkv[:, 2 * D + lo:2 * D + lo + HD]
        s = jax.lax.dot_general(q, k, (((1,), (1,)), ((), ())),
                                preferred_element_type=jnp.float32)   # (R, R)
        s = s + mask
        s = s - jnp.max(s, axis=-1, keepdims=True)
        e = jnp.exp(s)
        p = e * pl.reciprocal(jnp.sum(e, axis=-1, keepdims=True), approx=True)
        heads.append(jnp.dot(p.astype(MXU_DTYPE), v,
                             preferred_element_type=jnp.float32))     # (R, HD)
    concat = jnp.concatenate(heads, axis=-1)                          # (R, D)
    return _linear(concat, wo_bf16, bo_f32)                           # single out-proj


# ------------------------------ fused kernel ----------------------------------
def _timesformer_kernel(xpat_ref, embed_ref, cls0_ref, mask_t_ref, mask_s_ref,
                        pw_ref, pb_ref,
                        tlg_ref, tlb_ref, twqkv_ref, tbqkv_ref, twof_ref, tbof_ref,
                        slg_ref, slb_ref, swqkv_ref, sbqkv_ref, swo_ref, sbo_ref,
                        flg_ref, flb_ref, fw1_ref, fb1_ref, fw2_ref, fb2_ref,
                        ng_ref, nb_ref, o_ref):
    # ---- PatchEmbed matmul + (pos + time) embeddings; rows are (b, p, t) ----
    xp = _linear(xpat_ref[...], pw_ref[...], pb_ref[...]) + embed_ref[...]   # (R_PT, D)
    cls = jnp.broadcast_to(cls0_ref[...], (B, D))                            # (B, D)
    mask_t = mask_t_ref[...]
    mask_s = mask_s_ref[...]

    for l in range(LAYERS):                    # static unroll over layers
        last = l == LAYERS - 1

        # ---- divided temporal attention (out-proj fused with temporal_fc) ----
        xn = _ln(xp, tlg_ref[l], tlb_ref[l], LN_EPS_BLOCK)
        qkv = _linear(xn, twqkv_ref[l], tbqkv_ref[l])
        xp = xp + _mha(qkv, mask_t, twof_ref[l], tbof_ref[l])     # cls unchanged

        # ---- divided spatial attention (cls joins every (b, t) sequence) ----
        cls_rep = jnp.concatenate(
            [cls[b:b + 1, :] for b in range(B) for _ in range(T)], axis=0)   # (B*T, D)
        xs = jnp.concatenate([cls_rep, xp], axis=0)                          # (R_S, D)
        xn = _ln(xs, slg_ref[l], slb_ref[l], LN_EPS_BLOCK)
        qkv = _linear(xn, swqkv_ref[l], sbqkv_ref[l])
        res = _mha(qkv, mask_s, swo_ref[l], sbo_ref[l])                      # (R_S, D)
        # frame-mean of the spatial cls output per batch element
        parts = []
        for b in range(B):
            acc = res[b * T:b * T + 1, :]
            for t in range(1, T):
                acc = acc + res[b * T + t:b * T + t + 1, :]
            parts.append(acc * (1.0 / T))
        cls = cls + jnp.concatenate(parts, axis=0)                           # (B, D)
        xp = xp + res[B * T:, :]

        # ---- FFN with pre-norm (last layer: only cls rows feed the output) ----
        y = cls if last else jnp.concatenate([cls, xp], axis=0)
        yn = _ln(y, flg_ref[l], flb_ref[l], LN_EPS_BLOCK)
        h = _gelu_tanh(_linear(yn, fw1_ref[l], fb1_ref[l]))
        y = y + _linear(h, fw2_ref[l], fb2_ref[l])
        if last:
            cls = y
        else:
            cls, xp = y[:B, :], y[B:, :]

    # ---- final LayerNorm(eps=1e-6) + cls-token readout ----
    o_ref[...] = _ln(cls, ng_ref[...], nb_ref[...], LN_EPS_FINAL).astype(o_ref.dtype)


# ------------------------------ host-side glue --------------------------------
def _divided_masks():
    # Constant additive block-diagonal masks encoding the divided grouping.
    g_t = np.arange(R_PT) // T                                    # temporal: group = (b, p)
    mask_t = np.where(g_t[:, None] == g_t[None, :], 0.0, NEG_INF).astype(np.float32)
    g_s = np.empty((R_S,), np.int64)
    g_s[:B * T] = np.arange(B * T)                                # cls rows, (b, t) order
    j = np.arange(R_PT)
    g_s[B * T:] = (j // (P * T)) * T + (j % T)                    # patch rows, (b, p, t)
    mask_s = np.where(g_s[:, None] == g_s[None, :], 0.0, NEG_INF).astype(np.float32)
    return jnp.asarray(mask_t), jnp.asarray(mask_s)


def timesformer_forward(x, params):
    Bv, Tv, Cv, Hi, Wi = x.shape
    hp, wp = Hi // PS, Wi // PS
    assert (Bv, Tv, Cv, hp * wp) == (B, T, C, P)

    # im2col patch rearrange (pure data movement, ~3 KB) -> rows in (b, p, t)
    # order, features in (c, kh, kw) order matching Conv2d(kernel=stride=PS).
    xpat = x.reshape(B, T, C, hp, PS, wp, PS)
    xpat = xpat.transpose(0, 3, 5, 1, 2, 4, 6).reshape(R_PT, C * PS * PS)

    # pos+time embedding per (p, t) row, tiled over batch; cls gets pos_embed[0]
    pe = (params['pos_embed'][0, 1:, :][:, None, :]
          + params['time_embed'][0][None, :, :]).reshape(P * T, D)
    embed_pt = jnp.tile(pe, (B, 1))                               # (R_PT, D)
    cls0 = (params['cls_token'][0, 0] + params['pos_embed'][0, 0]).reshape(1, D)

    mask_t, mask_s = _divided_masks()

    # ---- parameter prep: exact f32 rewrites + bf16 casts + per-layer stacking ----
    scale = 1.0 / math.sqrt(HD)

    def prep_qkv_w(p):   # fold 1/sqrt(head_dim) into the Q columns
        return jnp.concatenate([p['wqkv'][:, :D] * scale, p['wqkv'][:, D:]],
                               axis=1).astype(MXU_DTYPE)

    def prep_qkv_b(p):
        return jnp.concatenate([p['bqkv'][:D] * scale, p['bqkv'][D:]]).reshape(1, 3 * D)

    def stack(fn):
        return jnp.stack([fn(lp) for lp in params['layers']])

    t_lng = stack(lambda lp: lp['time']['ln_g'].reshape(1, D))
    t_lnb = stack(lambda lp: lp['time']['ln_b'].reshape(1, D))
    t_wqkv = stack(lambda lp: prep_qkv_w(lp['time']))
    t_bqkv = stack(lambda lp: prep_qkv_b(lp['time']))
    # fuse MHA out-projection with temporal_fc:  W = Wo @ Wfc,  b = bo @ Wfc + bfc
    t_wof = stack(lambda lp: (lp['time']['wo'] @ lp['time']['fc_w']).astype(MXU_DTYPE))
    t_bof = stack(lambda lp: (lp['time']['bo'] @ lp['time']['fc_w']
                              + lp['time']['fc_b']).reshape(1, D))

    s_lng = stack(lambda lp: lp['space']['ln_g'].reshape(1, D))
    s_lnb = stack(lambda lp: lp['space']['ln_b'].reshape(1, D))
    s_wqkv = stack(lambda lp: prep_qkv_w(lp['space']))
    s_bqkv = stack(lambda lp: prep_qkv_b(lp['space']))
    s_wo = stack(lambda lp: lp['space']['wo'].astype(MXU_DTYPE))
    s_bo = stack(lambda lp: lp['space']['bo'].reshape(1, D))

    f_lng = stack(lambda lp: lp['ffn']['ln_g'].reshape(1, D))
    f_lnb = stack(lambda lp: lp['ffn']['ln_b'].reshape(1, D))
    f_w1 = stack(lambda lp: lp['ffn']['w1'].astype(MXU_DTYPE))
    f_b1 = stack(lambda lp: lp['ffn']['b1'].reshape(1, HIDDEN))
    f_w2 = stack(lambda lp: lp['ffn']['w2'].astype(MXU_DTYPE))
    f_b2 = stack(lambda lp: lp['ffn']['b2'].reshape(1, D))

    args = (xpat, embed_pt, cls0, mask_t, mask_s,
            params['patch_w'].astype(MXU_DTYPE), params['patch_b'].reshape(1, D),
            t_lng, t_lnb, t_wqkv, t_bqkv, t_wof, t_bof,
            s_lng, s_lnb, s_wqkv, s_bqkv, s_wo, s_bo,
            f_lng, f_lnb, f_w1, f_b1, f_w2, f_b2,
            params['norm_g'].reshape(1, D), params['norm_b'].reshape(1, D))

    # Advisory cost estimate (tiny custom call -> helps XLA scheduling around it).
    flops = 2 * R_PT * (C * PS * PS) * D
    trans = 0
    for l in range(LAYERS):
        for rows in (R_PT, R_S):
            flops += 2 * rows * D * 3 * D              # QKV matmul
            flops += 2 * HEADS * 2 * rows * rows * HD  # scores + AV
            flops += 2 * rows * D * D                  # out-projection
            trans += HEADS * rows * rows               # exp
        frows = B if l == LAYERS - 1 else B + R_PT
        flops += 2 * 2 * frows * D * HIDDEN            # FFN matmuls
        trans += frows * HIDDEN                        # tanh
    bytes_accessed = int(sum(int(np.prod(a.shape)) * a.dtype.itemsize for a in args)
                         + B * D * 4)

    return pl.pallas_call(
        _timesformer_kernel,
        out_shape=jax.ShapeDtypeStruct((B, D), jnp.float32),
        cost_estimate=pl.CostEstimate(flops=int(flops), transcendentals=int(trans),
                                      bytes_accessed=bytes_accessed),
    )(*args)


# --------------------------- deterministic params ------------------------------
def init_params(key):
    keys = iter(jax.random.split(key, 512))

    def nrm(shape, std=0.02):
        return std * jax.random.normal(next(keys), shape, jnp.float32)

    def attn_params(extra_fc):
        p = {
            'ln_g': jnp.ones((D,), jnp.float32),
            'ln_b': jnp.zeros((D,), jnp.float32),
            'wqkv': nrm((D, 3 * D)), 'bqkv': nrm((3 * D,)),   # fused q/k/v projection
            'wo': nrm((D, D)), 'bo': nrm((D,)),
        }
        if extra_fc:
            # reference zero-inits temporal_fc; small random so the path is exercised
            p['fc_w'] = nrm((D, D))
            p['fc_b'] = nrm((D,))
        return p

    params = {
        'patch_w': nrm((C * PS * PS, D)),
        'patch_b': nrm((D,)),
        'cls_token': nrm((1, 1, D)),
        'pos_embed': nrm((1, P + 1, D)),
        'time_embed': nrm((1, T, D)),
        'norm_g': jnp.ones((D,), jnp.float32),
        'norm_b': jnp.zeros((D,), jnp.float32),
        'layers': [],
    }
    for _ in range(LAYERS):
        params['layers'].append({
            'time': attn_params(True),
            'space': attn_params(False),
            'ffn': {
                'ln_g': jnp.ones((D,), jnp.float32),
                'ln_b': jnp.zeros((D,), jnp.float32),
                'w1': nrm((D, HIDDEN)), 'b1': nrm((HIDDEN,)),
                'w2': nrm((HIDDEN, D)), 'b2': nrm((D,)),
            },
        })
    return params


if __name__ == "__main__":
    key = jax.random.PRNGKey(0)
    pkey, xkey = jax.random.split(key)
    params = init_params(pkey)
    x = jax.random.normal(xkey, (B, T, C, IMG, IMG), jnp.float32)
    out = jax.jit(timesformer_forward)(x, params)
    out = jax.block_until_ready(out)
    assert out.shape == (B, D), out.shape
    assert bool(jnp.all(jnp.isfinite(out)))
    print("KERNEL_OK")
</pallas_src>

<mosaic_0001>
module attributes {stable_mosaic.version = 11 : i64} {
  func.func @_timesformer_kernel(%arg0: memref<16x48xf32, #tpu.memory_space<vmem>>, %arg1: memref<16x32xf32, #tpu.memory_space<vmem>>, %arg2: memref<1x32xf32, #tpu.memory_space<vmem>>, %arg3: memref<16x16xf32, #tpu.memory_space<vmem>>, %arg4: memref<20x20xf32, #tpu.memory_space<vmem>>, %arg5: memref<48x32xbf16, #tpu.memory_space<vmem>>, %arg6: memref<1x32xf32, #tpu.memory_space<vmem>>, %arg7: memref<2x1x32xf32, #tpu.memory_space<vmem>>, %arg8: memref<2x1x32xf32, #tpu.memory_space<vmem>>, %arg9: memref<2x32x96xbf16, #tpu.memory_space<vmem>>, %arg10: memref<2x1x96xf32, #tpu.memory_space<vmem>>, %arg11: memref<2x32x32xbf16, #tpu.memory_space<vmem>>, %arg12: memref<2x1x32xf32, #tpu.memory_space<vmem>>, %arg13: memref<2x1x32xf32, #tpu.memory_space<vmem>>, %arg14: memref<2x1x32xf32, #tpu.memory_space<vmem>>, %arg15: memref<2x32x96xbf16, #tpu.memory_space<vmem>>, %arg16: memref<2x1x96xf32, #tpu.memory_space<vmem>>, %arg17: memref<2x32x32xbf16, #tpu.memory_space<vmem>>, %arg18: memref<2x1x32xf32, #tpu.memory_space<vmem>>, %arg19: memref<2x1x32xf32, #tpu.memory_space<vmem>>, %arg20: memref<2x1x32xf32, #tpu.memory_space<vmem>>, %arg21: memref<2x32x128xbf16, #tpu.memory_space<vmem>>, %arg22: memref<2x1x128xf32, #tpu.memory_space<vmem>>, %arg23: memref<2x128x32xbf16, #tpu.memory_space<vmem>>, %arg24: memref<2x1x32xf32, #tpu.memory_space<vmem>>, %arg25: memref<1x32xf32, #tpu.memory_space<vmem>>, %arg26: memref<1x32xf32, #tpu.memory_space<vmem>>, %arg27: memref<2x32xf32, #tpu.memory_space<vmem>>) attributes {dimension_semantics = [], scalar_prefetch = 0 : i64, scratch_operands = 0 : i64, tpu.core_type = #tpu.core_type<tc>} {
    %c0 = arith.constant 0 : index
    %c0_0 = arith.constant 0 : index
    %0 = vector.load %arg0[%c0, %c0_0] : memref<16x48xf32, #tpu.memory_space<vmem>>, vector<16x48xf32>
    %c0_1 = arith.constant 0 : index
    %c0_2 = arith.constant 0 : index
    %1 = vector.load %arg5[%c0_1, %c0_2] : memref<48x32xbf16, #tpu.memory_space<vmem>>, vector<48x32xbf16>
    %c0_3 = arith.constant 0 : index
    %c0_4 = arith.constant 0 : index
    %2 = vector.load %arg6[%c0_3, %c0_4] : memref<1x32xf32, #tpu.memory_space<vmem>>, vector<1x32xf32>
    %3 = arith.truncf %0 : vector<16x48xf32> to vector<16x48xbf16>
    %cst = arith.constant dense<0.000000e+00> : vector<16x32xf32>
    %4 = tpu.matmul %3, %1, %cst {dimension_numbers = #tpu.dot_dimension_numbers<[1], [0], [0], [1], [0, 0, 1, 1], [], []>} : vector<16x48xbf16>, vector<48x32xbf16>, vector<16x32xf32> -> vector<16x32xf32>
    %5 = vector.broadcast %2 : vector<1x32xf32> to vector<16x32xf32>
    %6 = arith.addf %4, %5 : vector<16x32xf32>
    %c0_5 = arith.constant 0 : index
    %c0_6 = arith.constant 0 : index
    %7 = vector.load %arg1[%c0_5, %c0_6] : memref<16x32xf32, #tpu.memory_space<vmem>>, vector<16x32xf32>
    %8 = arith.addf %6, %7 : vector<16x32xf32>
    %c0_7 = arith.constant 0 : index
    %c0_8 = arith.constant 0 : index
    %9 = vector.load %arg2[%c0_7, %c0_8] : memref<1x32xf32, #tpu.memory_space<vmem>>, vector<1x32xf32>
    %10 = vector.shape_cast %9 : vector<1x32xf32> to vector<1x32xf32>
    %11 = vector.broadcast %10 : vector<1x32xf32> to vector<2x32xf32>
    %c0_9 = arith.constant 0 : index
    %c0_10 = arith.constant 0 : index
    %12 = vector.load %arg3[%c0_9, %c0_10] : memref<16x16xf32, #tpu.memory_space<vmem>>, vector<16x16xf32>
    %c0_11 = arith.constant 0 : index
    %c0_12 = arith.constant 0 : index
    %13 = vector.load %arg4[%c0_11, %c0_12] : memref<20x20xf32, #tpu.memory_space<vmem>>, vector<20x20xf32>
    %c0_13 = arith.constant 0 : index
    %c0_14 = arith.constant 0 : index
    %c0_15 = arith.constant 0 : index
    %14 = vector.load %arg7[%c0_13, %c0_14, %c0_15] : memref<2x1x32xf32, #tpu.memory_space<vmem>>, vector<1x1x32xf32>
    %15 = vector.shape_cast %14 : vector<1x1x32xf32> to vector<1x32xf32>
    %c0_16 = arith.constant 0 : index
    %c0_17 = arith.constant 0 : index
    %c0_18 = arith.constant 0 : index
    %16 = vector.load %arg8[%c0_16, %c0_17, %c0_18] : memref<2x1x32xf32, #tpu.memory_space<vmem>>, vector<1x1x32xf32>
    %17 = vector.shape_cast %16 : vector<1x1x32xf32> to vector<1x32xf32>
    %cst_19 = arith.constant dense<0.000000e+00> : vector<16xf32>
    %18 = vector.multi_reduction <add>, %8, %cst_19 [1] : vector<16x32xf32> to vector<16xf32>
    %19 = vector.shape_cast %18 : vector<16xf32> to vector<16x1xf32>
    %cst_20 = arith.constant 3.200000e+01 : f32
    %20 = vector.broadcast %cst_20 : f32 to vector<16x1xf32>
    %21 = arith.divf %19, %20 : vector<16x1xf32>
    %22 = vector.broadcast %21 : vector<16x1xf32> to vector<16x32xf32>
    %23 = arith.subf %8, %22 : vector<16x32xf32>
    %24 = arith.mulf %23, %23 : vector<16x32xf32>
    %cst_21 = arith.constant dense<0.000000e+00> : vector<16xf32>
    %25 = vector.multi_reduction <add>, %24, %cst_21 [1] : vector<16x32xf32> to vector<16xf32>
    %26 = vector.shape_cast %25 : vector<16xf32> to vector<16x1xf32>
    %cst_22 = arith.constant 3.200000e+01 : f32
    %27 = vector.broadcast %cst_22 : f32 to vector<16x1xf32>
    %28 = arith.divf %26, %27 : vector<16x1xf32>
    %cst_23 = arith.constant 9.99999974E-6 : f32
    %29 = vector.broadcast %cst_23 : f32 to vector<16x1xf32>
    %30 = arith.addf %28, %29 : vector<16x1xf32>
    %31 = math.rsqrt %30 : vector<16x1xf32>
    %32 = vector.broadcast %31 : vector<16x1xf32> to vector<16x32xf32>
    %33 = arith.mulf %23, %32 : vector<16x32xf32>
    %34 = vector.broadcast %15 : vector<1x32xf32> to vector<16x32xf32>
    %35 = arith.mulf %33, %34 : vector<16x32xf32>
    %36 = vector.broadcast %17 : vector<1x32xf32> to vector<16x32xf32>
    %37 = arith.addf %35, %36 : vector<16x32xf32>
    %c0_24 = arith.constant 0 : index
    %c0_25 = arith.constant 0 : index
    %c0_26 = arith.constant 0 : index
    %38 = vector.load %arg9[%c0_24, %c0_25, %c0_26] : memref<2x32x96xbf16, #tpu.memory_space<vmem>>, vector<1x32x96xbf16>
    %39 = vector.shape_cast %38 : vector<1x32x96xbf16> to vector<32x96xbf16>
    %c0_27 = arith.constant 0 : index
    %c0_28 = arith.constant 0 : index
    %c0_29 = arith.constant 0 : index
    %40 = vector.load %arg10[%c0_27, %c0_28, %c0_29] : memref<2x1x96xf32, #tpu.memory_space<vmem>>, vector<1x1x96xf32>
    %41 = vector.shape_cast %40 : vector<1x1x96xf32> to vector<1x96xf32>
    %42 = arith.truncf %37 : vector<16x32xf32> to vector<16x32xbf16>
    %cst_30 = arith.constant dense<0.000000e+00> : vector<16x96xf32>
    %43 = tpu.matmul %42, %39, %cst_30 {dimension_numbers = #tpu.dot_dimension_numbers<[1], [0], [0], [1], [0, 0, 1, 1], [], []>} : vector<16x32xbf16>, vector<32x96xbf16>, vector<16x96xf32> -> vector<16x96xf32>
    %44 = vector.broadcast %41 : vector<1x96xf32> to vector<16x96xf32>
    %45 = arith.addf %43, %44 : vector<16x96xf32>
    %c0_31 = arith.constant 0 : index
    %c0_32 = arith.constant 0 : index
    %c0_33 = arith.constant 0 : index
    %46 = vector.load %arg11[%c0_31, %c0_32, %c0_33] : memref<2x32x32xbf16, #tpu.memory_space<vmem>>, vector<1x32x32xbf16>
    %47 = vector.shape_cast %46 : vector<1x32x32xbf16> to vector<32x32xbf16>
    %c0_34 = arith.constant 0 : index
    %c0_35 = arith.constant 0 : index
    %c0_36 = arith.constant 0 : index
    %48 = vector.load %arg12[%c0_34, %c0_35, %c0_36] : memref<2x1x32xf32, #tpu.memory_space<vmem>>, vector<1x1x32xf32>
    %49 = vector.shape_cast %48 : vector<1x1x32xf32> to vector<1x32xf32>
    %50 = arith.truncf %45 : vector<16x96xf32> to vector<16x96xbf16>
    %51 = vector.extract_strided_slice %50 {offsets = [0, 0], sizes = [16, 8], strides = [1, 1]} : vector<16x96xbf16> to vector<16x8xbf16>
    %52 = vector.extract_strided_slice %50 {offsets = [0, 32], sizes = [16, 8], strides = [1, 1]} : vector<16x96xbf16> to vector<16x8xbf16>
    %53 = vector.extract_strided_slice %50 {offsets = [0, 64], sizes = [16, 8], strides = [1, 1]} : vector<16x96xbf16> to vector<16x8xbf16>
    %cst_37 = arith.constant dense<0.000000e+00> : vector<16x16xf32>
    %54 = tpu.matmul %51, %52, %cst_37 {dimension_numbers = #tpu.dot_dimension_numbers<[1], [1], [0], [0], [0, 0, 1, 0], [], []>} : vector<16x8xbf16>, vector<16x8xbf16>, vector<16x16xf32> -> vector<16x16xf32>
    %55 = arith.addf %54, %12 : vector<16x16xf32>
    %cst_38 = arith.constant dense<0xFF800000> : vector<16xf32>
    %56 = vector.multi_reduction <maximumf>, %55, %cst_38 [1] : vector<16x16xf32> to vector<16xf32>
    %57 = vector.shape_cast %56 : vector<16xf32> to vector<16x1xf32>
    %58 = vector.broadcast %57 : vector<16x1xf32> to vector<16x16xf32>
    %59 = arith.subf %55, %58 : vector<16x16xf32>
    %60 = math.exp %59 : vector<16x16xf32>
    %cst_39 = arith.constant dense<0.000000e+00> : vector<16xf32>
    %61 = vector.multi_reduction <add>, %60, %cst_39 [1] : vector<16x16xf32> to vector<16xf32>
    %62 = vector.shape_cast %61 : vector<16xf32> to vector<16x1xf32>
    %63 = tpu.reciprocal %62 {approx = true} : vector<16x1xf32> -> vector<16x1xf32>
    %64 = vector.broadcast %63 : vector<16x1xf32> to vector<16x16xf32>
    %65 = arith.mulf %60, %64 : vector<16x16xf32>
    %66 = arith.truncf %65 : vector<16x16xf32> to vector<16x16xbf16>
    %cst_40 = arith.constant dense<0.000000e+00> : vector<16x8xf32>
    %67 = tpu.matmul %66, %53, %cst_40 {dimension_numbers = #tpu.dot_dimension_numbers<[1], [0], [0], [1], [0, 0, 1, 1], [], []>} : vector<16x16xbf16>, vector<16x8xbf16>, vector<16x8xf32> -> vector<16x8xf32>
    %68 = vector.extract_strided_slice %50 {offsets = [0, 8], sizes = [16, 8], strides = [1, 1]} : vector<16x96xbf16> to vector<16x8xbf16>
    %69 = vector.extract_strided_slice %50 {offsets = [0, 40], sizes = [16, 8], strides = [1, 1]} : vector<16x96xbf16> to vector<16x8xbf16>
    %70 = vector.extract_strided_slice %50 {offsets = [0, 72], sizes = [16, 8], strides = [1, 1]} : vector<16x96xbf16> to vector<16x8xbf16>
    %cst_41 = arith.constant dense<0.000000e+00> : vector<16x16xf32>
    %71 = tpu.matmul %68, %69, %cst_41 {dimension_numbers = #tpu.dot_dimension_numbers<[1], [1], [0], [0], [0, 0, 1, 0], [], []>} : vector<16x8xbf16>, vector<16x8xbf16>, vector<16x16xf32> -> vector<16x16xf32>
    %72 = arith.addf %71, %12 : vector<16x16xf32>
    %cst_42 = arith.constant dense<0xFF800000> : vector<16xf32>
    %73 = vector.multi_reduction <maximumf>, %72, %cst_42 [1] : vector<16x16xf32> to vector<16xf32>
    %74 = vector.shape_cast %73 : vector<16xf32> to vector<16x1xf32>
    %75 = vector.broadcast %74 : vector<16x1xf32> to vector<16x16xf32>
    %76 = arith.subf %72, %75 : vector<16x16xf32>
    %77 = math.exp %76 : vector<16x16xf32>
    %cst_43 = arith.constant dense<0.000000e+00> : vector<16xf32>
    %78 = vector.multi_reduction <add>, %77, %cst_43 [1] : vector<16x16xf32> to vector<16xf32>
    %79 = vector.shape_cast %78 : vector<16xf32> to vector<16x1xf32>
    %80 = tpu.reciprocal %79 {approx = true} : vector<16x1xf32> -> vector<16x1xf32>
    %81 = vector.broadcast %80 : vector<16x1xf32> to vector<16x16xf32>
    %82 = arith.mulf %77, %81 : vector<16x16xf32>
    %83 = arith.truncf %82 : vector<16x16xf32> to vector<16x16xbf16>
    %cst_44 = arith.constant dense<0.000000e+00> : vector<16x8xf32>
    %84 = tpu.matmul %83, %70, %cst_44 {dimension_numbers = #tpu.dot_dimension_numbers<[1], [0], [0], [1], [0, 0, 1, 1], [], []>} : vector<16x16xbf16>, vector<16x8xbf16>, vector<16x8xf32> -> vector<16x8xf32>
    %85 = vector.extract_strided_slice %50 {offsets = [0, 16], sizes = [16, 8], strides = [1, 1]} : vector<16x96xbf16> to vector<16x8xbf16>
    %86 = vector.extract_strided_slice %50 {offsets = [0, 48], sizes = [16, 8], strides = [1, 1]} : vector<16x96xbf16> to vector<16x8xbf16>
    %87 = vector.extract_strided_slice %50 {offsets = [0, 80], sizes = [16, 8], strides = [1, 1]} : vector<16x96xbf16> to vector<16x8xbf16>
    %cst_45 = arith.constant dense<0.000000e+00> : vector<16x16xf32>
    %88 = tpu.matmul %85, %86, %cst_45 {dimension_numbers = #tpu.dot_dimension_numbers<[1], [1], [0], [0], [0, 0, 1, 0], [], []>} : vector<16x8xbf16>, vector<16x8xbf16>, vector<16x16xf32> -> vector<16x16xf32>
    %89 = arith.addf %88, %12 : vector<16x16xf32>
    %cst_46 = arith.constant dense<0xFF800000> : vector<16xf32>
    %90 = vector.multi_reduction <maximumf>, %89, %cst_46 [1] : vector<16x16xf32> to vector<16xf32>
    %91 = vector.shape_cast %90 : vector<16xf32> to vector<16x1xf32>
    %92 = vector.broadcast %91 : vector<16x1xf32> to vector<16x16xf32>
    %93 = arith.subf %89, %92 : vector<16x16xf32>
    %94 = math.exp %93 : vector<16x16xf32>
    %cst_47 = arith.constant dense<0.000000e+00> : vector<16xf32>
    %95 = vector.multi_reduction <add>, %94, %cst_47 [1] : vector<16x16xf32> to vector<16xf32>
    %96 = vector.shape_cast %95 : vector<16xf32> to vector<16x1xf32>
    %97 = tpu.reciprocal %96 {approx = true} : vector<16x1xf32> -> vector<16x1xf32>
    %98 = vector.broadcast %97 : vector<16x1xf32> to vector<16x16xf32>
    %99 = arith.mulf %94, %98 : vector<16x16xf32>
    %100 = arith.truncf %99 : vector<16x16xf32> to vector<16x16xbf16>
    %cst_48 = arith.constant dense<0.000000e+00> : vector<16x8xf32>
    %101 = tpu.matmul %100, %87, %cst_48 {dimension_numbers = #tpu.dot_dimension_numbers<[1], [0], [0], [1], [0, 0, 1, 1], [], []>} : vector<16x16xbf16>, vector<16x8xbf16>, vector<16x8xf32> -> vector<16x8xf32>
    %102 = vector.extract_strided_slice %50 {offsets = [0, 24], sizes = [16, 8], strides = [1, 1]} : vector<16x96xbf16> to vector<16x8xbf16>
    %103 = vector.extract_strided_slice %50 {offsets = [0, 56], sizes = [16, 8], strides = [1, 1]} : vector<16x96xbf16> to vector<16x8xbf16>
    %104 = vector.extract_strided_slice %50 {offsets = [0, 88], sizes = [16, 8], strides = [1, 1]} : vector<16x96xbf16> to vector<16x8xbf16>
    %cst_49 = arith.constant dense<0.000000e+00> : vector<16x16xf32>
    %105 = tpu.matmul %102, %103, %cst_49 {dimension_numbers = #tpu.dot_dimension_numbers<[1], [1], [0], [0], [0, 0, 1, 0], [], []>} : vector<16x8xbf16>, vector<16x8xbf16>, vector<16x16xf32> -> vector<16x16xf32>
    %106 = arith.addf %105, %12 : vector<16x16xf32>
    %cst_50 = arith.constant dense<0xFF800000> : vector<16xf32>
    %107 = vector.multi_reduction <maximumf>, %106, %cst_50 [1] : vector<16x16xf32> to vector<16xf32>
    %108 = vector.shape_cast %107 : vector<16xf32> to vector<16x1xf32>
    %109 = vector.broadcast %108 : vector<16x1xf32> to vector<16x16xf32>
    %110 = arith.subf %106, %109 : vector<16x16xf32>
    %111 = math.exp %110 : vector<16x16xf32>
    %cst_51 = arith.constant dense<0.000000e+00> : vector<16xf32>
    %112 = vector.multi_reduction <add>, %111, %cst_51 [1] : vector<16x16xf32> to vector<16xf32>
    %113 = vector.shape_cast %112 : vector<16xf32> to vector<16x1xf32>
    %114 = tpu.reciprocal %113 {approx = true} : vector<16x1xf32> -> vector<16x1xf32>
    %115 = vector.broadcast %114 : vector<16x1xf32> to vector<16x16xf32>
    %116 = arith.mulf %111, %115 : vector<16x16xf32>
    %117 = arith.truncf %116 : vector<16x16xf32> to vector<16x16xbf16>
    %cst_52 = arith.constant dense<0.000000e+00> : vector<16x8xf32>
    %118 = tpu.matmul %117, %104, %cst_52 {dimension_numbers = #tpu.dot_dimension_numbers<[1], [0], [0], [1], [0, 0, 1, 1], [], []>} : vector<16x16xbf16>, vector<16x8xbf16>, vector<16x8xf32> -> vector<16x8xf32>
    %119 = tpu.concatenate %67, %84, %101, %118 in 1 : vector<16x8xf32>, vector<16x8xf32>, vector<16x8xf32>, vector<16x8xf32> -> vector<16x32xf32>
    %120 = arith.truncf %119 : vector<16x32xf32> to vector<16x32xbf16>
    %cst_53 = arith.constant dense<0.000000e+00> : vector<16x32xf32>
    %121 = tpu.matmul %120, %47, %cst_53 {dimension_numbers = #tpu.dot_dimension_numbers<[1], [0], [0], [1], [0, 0, 1, 1], [], []>} : vector<16x32xbf16>, vector<32x32xbf16>, vector<16x32xf32> -> vector<16x32xf32>
    %122 = vector.broadcast %49 : vector<1x32xf32> to vector<16x32xf32>
    %123 = arith.addf %121, %122 : vector<16x32xf32>
    %124 = arith.addf %8, %123 : vector<16x32xf32>
    %125 = vector.extract_strided_slice %11 {offsets = [0, 0], sizes = [1, 32], strides = [1, 1]} : vector<2x32xf32> to vector<1x32xf32>
    %126 = vector.extract_strided_slice %11 {offsets = [0, 0], sizes = [1, 32], strides = [1, 1]} : vector<2x32xf32> to vector<1x32xf32>
    %127 = vector.extract_strided_slice %11 {offsets = [1, 0], sizes = [1, 32], strides = [1, 1]} : vector<2x32xf32> to vector<1x32xf32>
    %128 = vector.extract_strided_slice %11 {offsets = [1, 0], sizes = [1, 32], strides = [1, 1]} : vector<2x32xf32> to vector<1x32xf32>
    %129 = tpu.concatenate %125, %126, %127, %128 in 0 : vector<1x32xf32>, vector<1x32xf32>, vector<1x32xf32>, vector<1x32xf32> -> vector<4x32xf32>
    %130 = tpu.concatenate %129, %124 in 0 : vector<4x32xf32>, vector<16x32xf32> -> vector<20x32xf32>
    %c0_54 = arith.constant 0 : index
    %c0_55 = arith.constant 0 : index
    %c0_56 = arith.constant 0 : index
    %131 = vector.load %arg13[%c0_54, %c0_55, %c0_56] : memref<2x1x32xf32, #tpu.memory_space<vmem>>, vector<1x1x32xf32>
    %132 = vector.shape_cast %131 : vector<1x1x32xf32> to vector<1x32xf32>
    %c0_57 = arith.constant 0 : index
    %c0_58 = arith.constant 0 : index
    %c0_59 = arith.constant 0 : index
    %133 = vector.load %arg14[%c0_57, %c0_58, %c0_59] : memref<2x1x32xf32, #tpu.memory_space<vmem>>, vector<1x1x32xf32>
    %134 = vector.shape_cast %133 : vector<1x1x32xf32> to vector<1x32xf32>
    %cst_60 = arith.constant dense<0.000000e+00> : vector<20xf32>
    %135 = vector.multi_reduction <add>, %130, %cst_60 [1] : vector<20x32xf32> to vector<20xf32>
    %136 = vector.shape_cast %135 : vector<20xf32> to vector<20x1xf32>
    %cst_61 = arith.constant 3.200000e+01 : f32
    %137 = vector.broadcast %cst_61 : f32 to vector<20x1xf32>
    %138 = arith.divf %136, %137 : vector<20x1xf32>
    %139 = vector.broadcast %138 : vector<20x1xf32> to vector<20x32xf32>
    %140 = arith.subf %130, %139 : vector<20x32xf32>
    %141 = arith.mulf %140, %140 : vector<20x32xf32>
    %cst_62 = arith.constant dense<0.000000e+00> : vector<20xf32>
    %142 = vector.multi_reduction <add>, %141, %cst_62 [1] : vector<20x32xf32> to vector<20xf32>
    %143 = vector.shape_cast %142 : vector<20xf32> to vector<20x1xf32>
    %cst_63 = arith.constant 3.200000e+01 : f32
    %144 = vector.broadcast %cst_63 : f32 to vector<20x1xf32>
    %145 = arith.divf %143, %144 : vector<20x1xf32>
    %cst_64 = arith.constant 9.99999974E-6 : f32
    %146 = vector.broadcast %cst_64 : f32 to vector<20x1xf32>
    %147 = arith.addf %145, %146 : vector<20x1xf32>
    %148 = math.rsqrt %147 : vector<20x1xf32>
    %149 = vector.broadcast %148 : vector<20x1xf32> to vector<20x32xf32>
    %150 = arith.mulf %140, %149 : vector<20x32xf32>
    %151 = vector.broadcast %132 : vector<1x32xf32> to vector<20x32xf32>
    %152 = arith.mulf %150, %151 : vector<20x32xf32>
    %153 = vector.broadcast %134 : vector<1x32xf32> to vector<20x32xf32>
    %154 = arith.addf %152, %153 : vector<20x32xf32>
    %c0_65 = arith.constant 0 : index
    %c0_66 = arith.constant 0 : index
    %c0_67 = arith.constant 0 : index
    %155 = vector.load %arg15[%c0_65, %c0_66, %c0_67] : memref<2x32x96xbf16, #tpu.memory_space<vmem>>, vector<1x32x96xbf16>
    %156 = vector.shape_cast %155 : vector<1x32x96xbf16> to vector<32x96xbf16>
    %c0_68 = arith.constant 0 : index
    %c0_69 = arith.constant 0 : index
    %c0_70 = arith.constant 0 : index
    %157 = vector.load %arg16[%c0_68, %c0_69, %c0_70] : memref<2x1x96xf32, #tpu.memory_space<vmem>>, vector<1x1x96xf32>
    %158 = vector.shape_cast %157 : vector<1x1x96xf32> to vector<1x96xf32>
    %159 = arith.truncf %154 : vector<20x32xf32> to vector<20x32xbf16>
    %cst_71 = arith.constant dense<0.000000e+00> : vector<20x96xf32>
    %160 = tpu.matmul %159, %156, %cst_71 {dimension_numbers = #tpu.dot_dimension_numbers<[1], [0], [0], [1], [0, 0, 1, 1], [], []>} : vector<20x32xbf16>, vector<32x96xbf16>, vector<20x96xf32> -> vector<20x96xf32>
    %161 = vector.broadcast %158 : vector<1x96xf32> to vector<20x96xf32>
    %162 = arith.addf %160, %161 : vector<20x96xf32>
    %c0_72 = arith.constant 0 : index
    %c0_73 = arith.constant 0 : index
    %c0_74 = arith.constant 0 : index
    %163 = vector.load %arg17[%c0_72, %c0_73, %c0_74] : memref<2x32x32xbf16, #tpu.memory_space<vmem>>, vector<1x32x32xbf16>
    %164 = vector.shape_cast %163 : vector<1x32x32xbf16> to vector<32x32xbf16>
    %c0_75 = arith.constant 0 : index
    %c0_76 = arith.constant 0 : index
    %c0_77 = arith.constant 0 : index
    %165 = vector.load %arg18[%c0_75, %c0_76, %c0_77] : memref<2x1x32xf32, #tpu.memory_space<vmem>>, vector<1x1x32xf32>
    %166 = vector.shape_cast %165 : vector<1x1x32xf32> to vector<1x32xf32>
    %167 = arith.truncf %162 : vector<20x96xf32> to vector<20x96xbf16>
    %168 = vector.extract_strided_slice %167 {offsets = [0, 0], sizes = [20, 8], strides = [1, 1]} : vector<20x96xbf16> to vector<20x8xbf16>
    %169 = vector.extract_strided_slice %167 {offsets = [0, 32], sizes = [20, 8], strides = [1, 1]} : vector<20x96xbf16> to vector<20x8xbf16>
    %170 = vector.extract_strided_slice %167 {offsets = [0, 64], sizes = [20, 8], strides = [1, 1]} : vector<20x96xbf16> to vector<20x8xbf16>
    %cst_78 = arith.constant dense<0.000000e+00> : vector<20x20xf32>
    %171 = tpu.matmul %168, %169, %cst_78 {dimension_numbers = #tpu.dot_dimension_numbers<[1], [1], [0], [0], [0, 0, 1, 0], [], []>} : vector<20x8xbf16>, vector<20x8xbf16>, vector<20x20xf32> -> vector<20x20xf32>
    %172 = arith.addf %171, %13 : vector<20x20xf32>
    %cst_79 = arith.constant dense<0xFF800000> : vector<20xf32>
    %173 = vector.multi_reduction <maximumf>, %172, %cst_79 [1] : vector<20x20xf32> to vector<20xf32>
    %174 = vector.shape_cast %173 : vector<20xf32> to vector<20x1xf32>
    %175 = vector.broadcast %174 : vector<20x1xf32> to vector<20x20xf32>
    %176 = arith.subf %172, %175 : vector<20x20xf32>
    %177 = math.exp %176 : vector<20x20xf32>
    %cst_80 = arith.constant dense<0.000000e+00> : vector<20xf32>
    %178 = vector.multi_reduction <add>, %177, %cst_80 [1] : vector<20x20xf32> to vector<20xf32>
    %179 = vector.shape_cast %178 : vector<20xf32> to vector<20x1xf32>
    %180 = tpu.reciprocal %179 {approx = true} : vector<20x1xf32> -> vector<20x1xf32>
    %181 = vector.broadcast %180 : vector<20x1xf32> to vector<20x20xf32>
    %182 = arith.mulf %177, %181 : vector<20x20xf32>
    %183 = arith.truncf %182 : vector<20x20xf32> to vector<20x20xbf16>
    %cst_81 = arith.constant dense<0.000000e+00> : vector<20x8xf32>
    %184 = tpu.matmul %183, %170, %cst_81 {dimension_numbers = #tpu.dot_dimension_numbers<[1], [0], [0], [1], [0, 0, 1, 1], [], []>} : vector<20x20xbf16>, vector<20x8xbf16>, vector<20x8xf32> -> vector<20x8xf32>
    %185 = vector.extract_strided_slice %167 {offsets = [0, 8], sizes = [20, 8], strides = [1, 1]} : vector<20x96xbf16> to vector<20x8xbf16>
    %186 = vector.extract_strided_slice %167 {offsets = [0, 40], sizes = [20, 8], strides = [1, 1]} : vector<20x96xbf16> to vector<20x8xbf16>
    %187 = vector.extract_strided_slice %167 {offsets = [0, 72], sizes = [20, 8], strides = [1, 1]} : vector<20x96xbf16> to vector<20x8xbf16>
    %cst_82 = arith.constant dense<0.000000e+00> : vector<20x20xf32>
    %188 = tpu.matmul %185, %186, %cst_82 {dimension_numbers = #tpu.dot_dimension_numbers<[1], [1], [0], [0], [0, 0, 1, 0], [], []>} : vector<20x8xbf16>, vector<20x8xbf16>, vector<20x20xf32> -> vector<20x20xf32>
    %189 = arith.addf %188, %13 : vector<20x20xf32>
    %cst_83 = arith.constant dense<0xFF800000> : vector<20xf32>
    %190 = vector.multi_reduction <maximumf>, %189, %cst_83 [1] : vector<20x20xf32> to vector<20xf32>
    %191 = vector.shape_cast %190 : vector<20xf32> to vector<20x1xf32>
    %192 = vector.broadcast %191 : vector<20x1xf32> to vector<20x20xf32>
    %193 = arith.subf %189, %192 : vector<20x20xf32>
    %194 = math.exp %193 : vector<20x20xf32>
    %cst_84 = arith.constant dense<0.000000e+00> : vector<20xf32>
    %195 = vector.multi_reduction <add>, %194, %cst_84 [1] : vector<20x20xf32> to vector<20xf32>
    %196 = vector.shape_cast %195 : vector<20xf32> to vector<20x1xf32>
    %197 = tpu.reciprocal %196 {approx = true} : vector<20x1xf32> -> vector<20x1xf32>
    %198 = vector.broadcast %197 : vector<20x1xf32> to vector<20x20xf32>
    %199 = arith.mulf %194, %198 : vector<20x20xf32>
    %200 = arith.truncf %199 : vector<20x20xf32> to vector<20x20xbf16>
    %cst_85 = arith.constant dense<0.000000e+00> : vector<20x8xf32>
    %201 = tpu.matmul %200, %187, %cst_85 {dimension_numbers = #tpu.dot_dimension_numbers<[1], [0], [0], [1], [0, 0, 1, 1], [], []>} : vector<20x20xbf16>, vector<20x8xbf16>, vector<20x8xf32> -> vector<20x8xf32>
    %202 = vector.extract_strided_slice %167 {offsets = [0, 16], sizes = [20, 8], strides = [1, 1]} : vector<20x96xbf16> to vector<20x8xbf16>
    %203 = vector.extract_strided_slice %167 {offsets = [0, 48], sizes = [20, 8], strides = [1, 1]} : vector<20x96xbf16> to vector<20x8xbf16>
    %204 = vector.extract_strided_slice %167 {offsets = [0, 80], sizes = [20, 8], strides = [1, 1]} : vector<20x96xbf16> to vector<20x8xbf16>
    %cst_86 = arith.constant dense<0.000000e+00> : vector<20x20xf32>
    %205 = tpu.matmul %202, %203, %cst_86 {dimension_numbers = #tpu.dot_dimension_numbers<[1], [1], [0], [0], [0, 0, 1, 0], [], []>} : vector<20x8xbf16>, vector<20x8xbf16>, vector<20x20xf32> -> vector<20x20xf32>
    %206 = arith.addf %205, %13 : vector<20x20xf32>
    %cst_87 = arith.constant dense<0xFF800000> : vector<20xf32>
    %207 = vector.multi_reduction <maximumf>, %206, %cst_87 [1] : vector<20x20xf32> to vector<20xf32>
    %208 = vector.shape_cast %207 : vector<20xf32> to vector<20x1xf32>
    %209 = vector.broadcast %208 : vector<20x1xf32> to vector<20x20xf32>
    %210 = arith.subf %206, %209 : vector<20x20xf32>
    %211 = math.exp %210 : vector<20x20xf32>
    %cst_88 = arith.constant dense<0.000000e+00> : vector<20xf32>
    %212 = vector.multi_reduction <add>, %211, %cst_88 [1] : vector<20x20xf32> to vector<20xf32>
    %213 = vector.shape_cast %212 : vector<20xf32> to vector<20x1xf32>
    %214 = tpu.reciprocal %213 {approx = true} : vector<20x1xf32> -> vector<20x1xf32>
    %215 = vector.broadcast %214 : vector<20x1xf32> to vector<20x20xf32>
    %216 = arith.mulf %211, %215 : vector<20x20xf32>
    %217 = arith.truncf %216 : vector<20x20xf32> to vector<20x20xbf16>
    %cst_89 = arith.constant dense<0.000000e+00> : vector<20x8xf32>
    %218 = tpu.matmul %217, %204, %cst_89 {dimension_numbers = #tpu.dot_dimension_numbers<[1], [0], [0], [1], [0, 0, 1, 1], [], []>} : vector<20x20xbf16>, vector<20x8xbf16>, vector<20x8xf32> -> vector<20x8xf32>
    %219 = vector.extract_strided_slice %167 {offsets = [0, 24], sizes = [20, 8], strides = [1, 1]} : vector<20x96xbf16> to vector<20x8xbf16>
    %220 = vector.extract_strided_slice %167 {offsets = [0, 56], sizes = [20, 8], strides = [1, 1]} : vector<20x96xbf16> to vector<20x8xbf16>
    %221 = vector.extract_strided_slice %167 {offsets = [0, 88], sizes = [20, 8], strides = [1, 1]} : vector<20x96xbf16> to vector<20x8xbf16>
    %cst_90 = arith.constant dense<0.000000e+00> : vector<20x20xf32>
    %222 = tpu.matmul %219, %220, %cst_90 {dimension_numbers = #tpu.dot_dimension_numbers<[1], [1], [0], [0], [0, 0, 1, 0], [], []>} : vector<20x8xbf16>, vector<20x8xbf16>, vector<20x20xf32> -> vector<20x20xf32>
    %223 = arith.addf %222, %13 : vector<20x20xf32>
    %cst_91 = arith.constant dense<0xFF800000> : vector<20xf32>
    %224 = vector.multi_reduction <maximumf>, %223, %cst_91 [1] : vector<20x20xf32> to vector<20xf32>
    %225 = vector.shape_cast %224 : vector<20xf32> to vector<20x1xf32>
    %226 = vector.broadcast %225 : vector<20x1xf32> to vector<20x20xf32>
    %227 = arith.subf %223, %226 : vector<20x20xf32>
    %228 = math.exp %227 : vector<20x20xf32>
    %cst_92 = arith.constant dense<0.000000e+00> : vector<20xf32>
    %229 = vector.multi_reduction <add>, %228, %cst_92 [1] : vector<20x20xf32> to vector<20xf32>
    %230 = vector.shape_cast %229 : vector<20xf32> to vector<20x1xf32>
    %231 = tpu.reciprocal %230 {approx = true} : vector<20x1xf32> -> vector<20x1xf32>
    %232 = vector.broadcast %231 : vector<20x1xf32> to vector<20x20xf32>
    %233 = arith.mulf %228, %232 : vector<20x20xf32>
    %234 = arith.truncf %233 : vector<20x20xf32> to vector<20x20xbf16>
    %cst_93 = arith.constant dense<0.000000e+00> : vector<20x8xf32>
    %235 = tpu.matmul %234, %221, %cst_93 {dimension_numbers = #tpu.dot_dimension_numbers<[1], [0], [0], [1], [0, 0, 1, 1], [], []>} : vector<20x20xbf16>, vector<20x8xbf16>, vector<20x8xf32> -> vector<20x8xf32>
    %236 = tpu.concatenate %184, %201, %218, %235 in 1 : vector<20x8xf32>, vector<20x8xf32>, vector<20x8xf32>, vector<20x8xf32> -> vector<20x32xf32>
    %237 = arith.truncf %236 : vector<20x32xf32> to vector<20x32xbf16>
    %cst_94 = arith.constant dense<0.000000e+00> : vector<20x32xf32>
    %238 = tpu.matmul %237, %164, %cst_94 {dimension_numbers = #tpu.dot_dimension_numbers<[1], [0], [0], [1], [0, 0, 1, 1], [], []>} : vector<20x32xbf16>, vector<32x32xbf16>, vector<20x32xf32> -> vector<20x32xf32>
    %239 = vector.broadcast %166 : vector<1x32xf32> to vector<20x32xf32>
    %240 = arith.addf %238, %239 : vector<20x32xf32>
    %241 = vector.extract_strided_slice %240 {offsets = [0, 0], sizes = [1, 32], strides = [1, 1]} : vector<20x32xf32> to vector<1x32xf32>
    %242 = vector.extract_strided_slice %240 {offsets = [1, 0], sizes = [1, 32], strides = [1, 1]} : vector<20x32xf32> to vector<1x32xf32>
    %243 = arith.addf %241, %242 : vector<1x32xf32>
    %cst_95 = arith.constant 5.000000e-01 : f32
    %244 = vector.broadcast %cst_95 : f32 to vector<1x32xf32>
    %245 = arith.mulf %243, %244 : vector<1x32xf32>
    %246 = vector.extract_strided_slice %240 {offsets = [2, 0], sizes = [1, 32], strides = [1, 1]} : vector<20x32xf32> to vector<1x32xf32>
    %247 = vector.extract_strided_slice %240 {offsets = [3, 0], sizes = [1, 32], strides = [1, 1]} : vector<20x32xf32> to vector<1x32xf32>
    %248 = arith.addf %246, %247 : vector<1x32xf32>
    %cst_96 = arith.constant 5.000000e-01 : f32
    %249 = vector.broadcast %cst_96 : f32 to vector<1x32xf32>
    %250 = arith.mulf %248, %249 : vector<1x32xf32>
    %251 = tpu.concatenate %245, %250 in 0 : vector<1x32xf32>, vector<1x32xf32> -> vector<2x32xf32>
    %252 = arith.addf %11, %251 : vector<2x32xf32>
    %253 = vector.extract_strided_slice %240 {offsets = [4, 0], sizes = [16, 32], strides = [1, 1]} : vector<20x32xf32> to vector<16x32xf32>
    %254 = arith.addf %124, %253 : vector<16x32xf32>
    %255 = tpu.concatenate %252, %254 in 0 : vector<2x32xf32>, vector<16x32xf32> -> vector<18x32xf32>
    %c0_97 = arith.constant 0 : index
    %c0_98 = arith.constant 0 : index
    %c0_99 = arith.constant 0 : index
    %256 = vector.load %arg19[%c0_97, %c0_98, %c0_99] : memref<2x1x32xf32, #tpu.memory_space<vmem>>, vector<1x1x32xf32>
    %257 = vector.shape_cast %256 : vector<1x1x32xf32> to vector<1x32xf32>
    %c0_100 = arith.constant 0 : index
    %c0_101 = arith.constant 0 : index
    %c0_102 = arith.constant 0 : index
    %258 = vector.load %arg20[%c0_100, %c0_101, %c0_102] : memref<2x1x32xf32, #tpu.memory_space<vmem>>, vector<1x1x32xf32>
    %259 = vector.shape_cast %258 : vector<1x1x32xf32> to vector<1x32xf32>
    %cst_103 = arith.constant dense<0.000000e+00> : vector<18xf32>
    %260 = vector.multi_reduction <add>, %255, %cst_103 [1] : vector<18x32xf32> to vector<18xf32>
    %261 = vector.shape_cast %260 : vector<18xf32> to vector<18x1xf32>
    %cst_104 = arith.constant 3.200000e+01 : f32
    %262 = vector.broadcast %cst_104 : f32 to vector<18x1xf32>
    %263 = arith.divf %261, %262 : vector<18x1xf32>
    %264 = vector.broadcast %263 : vector<18x1xf32> to vector<18x32xf32>
    %265 = arith.subf %255, %264 : vector<18x32xf32>
    %266 = arith.mulf %265, %265 : vector<18x32xf32>
    %cst_105 = arith.constant dense<0.000000e+00> : vector<18xf32>
    %267 = vector.multi_reduction <add>, %266, %cst_105 [1] : vector<18x32xf32> to vector<18xf32>
    %268 = vector.shape_cast %267 : vector<18xf32> to vector<18x1xf32>
    %cst_106 = arith.constant 3.200000e+01 : f32
    %269 = vector.broadcast %cst_106 : f32 to vector<18x1xf32>
    %270 = arith.divf %268, %269 : vector<18x1xf32>
    %cst_107 = arith.constant 9.99999974E-6 : f32
    %271 = vector.broadcast %cst_107 : f32 to vector<18x1xf32>
    %272 = arith.addf %270, %271 : vector<18x1xf32>
    %273 = math.rsqrt %272 : vector<18x1xf32>
    %274 = vector.broadcast %273 : vector<18x1xf32> to vector<18x32xf32>
    %275 = arith.mulf %265, %274 : vector<18x32xf32>
    %276 = vector.broadcast %257 : vector<1x32xf32> to vector<18x32xf32>
    %277 = arith.mulf %275, %276 : vector<18x32xf32>
    %278 = vector.broadcast %259 : vector<1x32xf32> to vector<18x32xf32>
    %279 = arith.addf %277, %278 : vector<18x32xf32>
    %c0_108 = arith.constant 0 : index
    %c0_109 = arith.constant 0 : index
    %c0_110 = arith.constant 0 : index
    %280 = vector.load %arg21[%c0_108, %c0_109, %c0_110] : memref<2x32x128xbf16, #tpu.memory_space<vmem>>, vector<1x32x128xbf16>
    %281 = vector.shape_cast %280 : vector<1x32x128xbf16> to vector<32x128xbf16>
    %c0_111 = arith.constant 0 : index
    %c0_112 = arith.constant 0 : index
    %c0_113 = arith.constant 0 : index
    %282 = vector.load %arg22[%c0_111, %c0_112, %c0_113] : memref<2x1x128xf32, #tpu.memory_space<vmem>>, vector<1x1x128xf32>
    %283 = vector.shape_cast %282 : vector<1x1x128xf32> to vector<1x128xf32>
    %284 = arith.truncf %279 : vector<18x32xf32> to vector<18x32xbf16>
    %cst_114 = arith.constant dense<0.000000e+00> : vector<18x128xf32>
    %285 = tpu.matmul %284, %281, %cst_114 {dimension_numbers = #tpu.dot_dimension_numbers<[1], [0], [0], [1], [0, 0, 1, 1], [], []>} : vector<18x32xbf16>, vector<32x128xbf16>, vector<18x128xf32> -> vector<18x128xf32>
    %286 = vector.broadcast %283 : vector<1x128xf32> to vector<18x128xf32>
    %287 = arith.addf %285, %286 : vector<18x128xf32>
    %cst_115 = arith.constant 5.000000e-01 : f32
    %288 = vector.broadcast %cst_115 : f32 to vector<18x128xf32>
    %289 = arith.mulf %288, %287 : vector<18x128xf32>
    %cst_116 = arith.constant 4.471500e-02 : f32
    %290 = vector.broadcast %cst_116 : f32 to vector<18x128xf32>
    %291 = arith.mulf %290, %287 : vector<18x128xf32>
    %292 = arith.mulf %291, %287 : vector<18x128xf32>
    %293 = arith.mulf %292, %287 : vector<18x128xf32>
    %294 = arith.addf %287, %293 : vector<18x128xf32>
    %cst_117 = arith.constant 0.797884583 : f32
    %295 = vector.broadcast %cst_117 : f32 to vector<18x128xf32>
    %296 = arith.mulf %295, %294 : vector<18x128xf32>
    %297 = math.tanh %296 : vector<18x128xf32>
    %cst_118 = arith.constant 1.000000e+00 : f32
    %298 = vector.broadcast %cst_118 : f32 to vector<18x128xf32>
    %299 = arith.addf %298, %297 : vector<18x128xf32>
    %300 = arith.mulf %289, %299 : vector<18x128xf32>
    %c0_119 = arith.constant 0 : index
    %c0_120 = arith.constant 0 : index
    %c0_121 = arith.constant 0 : index
    %301 = vector.load %arg23[%c0_119, %c0_120, %c0_121] : memref<2x128x32xbf16, #tpu.memory_space<vmem>>, vector<1x128x32xbf16>
    %302 = vector.shape_cast %301 : vector<1x128x32xbf16> to vector<128x32xbf16>
    %c0_122 = arith.constant 0 : index
    %c0_123 = arith.constant 0 : index
    %c0_124 = arith.constant 0 : index
    %303 = vector.load %arg24[%c0_122, %c0_123, %c0_124] : memref<2x1x32xf32, #tpu.memory_space<vmem>>, vector<1x1x32xf32>
    %304 = vector.shape_cast %303 : vector<1x1x32xf32> to vector<1x32xf32>
    %305 = arith.truncf %300 : vector<18x128xf32> to vector<18x128xbf16>
    %cst_125 = arith.constant dense<0.000000e+00> : vector<18x32xf32>
    %306 = tpu.matmul %305, %302, %cst_125 {dimension_numbers = #tpu.dot_dimension_numbers<[1], [0], [0], [1], [0, 0, 1, 1], [], []>} : vector<18x128xbf16>, vector<128x32xbf16>, vector<18x32xf32> -> vector<18x32xf32>
    %307 = vector.broadcast %304 : vector<1x32xf32> to vector<18x32xf32>
    %308 = arith.addf %306, %307 : vector<18x32xf32>
    %309 = arith.addf %255, %308 : vector<18x32xf32>
    %310 = vector.extract_strided_slice %309 {offsets = [0, 0], sizes = [2, 32], strides = [1, 1]} : vector<18x32xf32> to vector<2x32xf32>
    %311 = vector.extract_strided_slice %309 {offsets = [2, 0], sizes = [16, 32], strides = [1, 1]} : vector<18x32xf32> to vector<16x32xf32>
    %c1 = arith.constant 1 : index
    %c0_126 = arith.constant 0 : index
    %c0_127 = arith.constant 0 : index
    %312 = vector.load %arg7[%c1, %c0_126, %c0_127] : memref<2x1x32xf32, #tpu.memory_space<vmem>>, vector<1x1x32xf32>
    %313 = vector.shape_cast %312 : vector<1x1x32xf32> to vector<1x32xf32>
    %c1_128 = arith.constant 1 : index
    %c0_129 = arith.constant 0 : index
    %c0_130 = arith.constant 0 : index
    %314 = vector.load %arg8[%c1_128, %c0_129, %c0_130] : memref<2x1x32xf32, #tpu.memory_space<vmem>>, vector<1x1x32xf32>
    %315 = vector.shape_cast %314 : vector<1x1x32xf32> to vector<1x32xf32>
    %cst_131 = arith.constant dense<0.000000e+00> : vector<16xf32>
    %316 = vector.multi_reduction <add>, %311, %cst_131 [1] : vector<16x32xf32> to vector<16xf32>
    %317 = vector.shape_cast %316 : vector<16xf32> to vector<16x1xf32>
    %cst_132 = arith.constant 3.200000e+01 : f32
    %318 = vector.broadcast %cst_132 : f32 to vector<16x1xf32>
    %319 = arith.divf %317, %318 : vector<16x1xf32>
    %320 = vector.broadcast %319 : vector<16x1xf32> to vector<16x32xf32>
    %321 = arith.subf %311, %320 : vector<16x32xf32>
    %322 = arith.mulf %321, %321 : vector<16x32xf32>
    %cst_133 = arith.constant dense<0.000000e+00> : vector<16xf32>
    %323 = vector.multi_reduction <add>, %322, %cst_133 [1] : vector<16x32xf32> to vector<16xf32>
    %324 = vector.shape_cast %323 : vector<16xf32> to vector<16x1xf32>
    %cst_134 = arith.constant 3.200000e+01 : f32
    %325 = vector.broadcast %cst_134 : f32 to vector<16x1xf32>
    %326 = arith.divf %324, %325 : vector<16x1xf32>
    %cst_135 = arith.constant 9.99999974E-6 : f32
    %327 = vector.broadcast %cst_135 : f32 to vector<16x1xf32>
    %328 = arith.addf %326, %327 : vector<16x1xf32>
    %329 = math.rsqrt %328 : vector<16x1xf32>
    %330 = vector.broadcast %329 : vector<16x1xf32> to vector<16x32xf32>
    %331 = arith.mulf %321, %330 : vector<16x32xf32>
    %332 = vector.broadcast %313 : vector<1x32xf32> to vector<16x32xf32>
    %333 = arith.mulf %331, %332 : vector<16x32xf32>
    %334 = vector.broadcast %315 : vector<1x32xf32> to vector<16x32xf32>
    %335 = arith.addf %333, %334 : vector<16x32xf32>
    %c1_136 = arith.constant 1 : index
    %c0_137 = arith.constant 0 : index
    %c0_138 = arith.constant 0 : index
    %336 = vector.load %arg9[%c1_136, %c0_137, %c0_138] : memref<2x32x96xbf16, #tpu.memory_space<vmem>>, vector<1x32x96xbf16>
    %337 = vector.shape_cast %336 : vector<1x32x96xbf16> to vector<32x96xbf16>
    %c1_139 = arith.constant 1 : index
    %c0_140 = arith.constant 0 : index
    %c0_141 = arith.constant 0 : index
    %338 = vector.load %arg10[%c1_139, %c0_140, %c0_141] : memref<2x1x96xf32, #tpu.memory_space<vmem>>, vector<1x1x96xf32>
    %339 = vector.shape_cast %338 : vector<1x1x96xf32> to vector<1x96xf32>
    %340 = arith.truncf %335 : vector<16x32xf32> to vector<16x32xbf16>
    %cst_142 = arith.constant dense<0.000000e+00> : vector<16x96xf32>
    %341 = tpu.matmul %340, %337, %cst_142 {dimension_numbers = #tpu.dot_dimension_numbers<[1], [0], [0], [1], [0, 0, 1, 1], [], []>} : vector<16x32xbf16>, vector<32x96xbf16>, vector<16x96xf32> -> vector<16x96xf32>
    %342 = vector.broadcast %339 : vector<1x96xf32> to vector<16x96xf32>
    %343 = arith.addf %341, %342 : vector<16x96xf32>
    %c1_143 = arith.constant 1 : index
    %c0_144 = arith.constant 0 : index
    %c0_145 = arith.constant 0 : index
    %344 = vector.load %arg11[%c1_143, %c0_144, %c0_145] : memref<2x32x32xbf16, #tpu.memory_space<vmem>>, vector<1x32x32xbf16>
    %345 = vector.shape_cast %344 : vector<1x32x32xbf16> to vector<32x32xbf16>
    %c1_146 = arith.constant 1 : index
    %c0_147 = arith.constant 0 : index
    %c0_148 = arith.constant 0 : index
    %346 = vector.load %arg12[%c1_146, %c0_147, %c0_148] : memref<2x1x32xf32, #tpu.memory_space<vmem>>, vector<1x1x32xf32>
    %347 = vector.shape_cast %346 : vector<1x1x32xf32> to vector<1x32xf32>
    %348 = arith.truncf %343 : vector<16x96xf32> to vector<16x96xbf16>
    %349 = vector.extract_strided_slice %348 {offsets = [0, 0], sizes = [16, 8], strides = [1, 1]} : vector<16x96xbf16> to vector<16x8xbf16>
    %350 = vector.extract_strided_slice %348 {offsets = [0, 32], sizes = [16, 8], strides = [1, 1]} : vector<16x96xbf16> to vector<16x8xbf16>
    %351 = vector.extract_strided_slice %348 {offsets = [0, 64], sizes = [16, 8], strides = [1, 1]} : vector<16x96xbf16> to vector<16x8xbf16>
    %cst_149 = arith.constant dense<0.000000e+00> : vector<16x16xf32>
    %352 = tpu.matmul %349, %350, %cst_149 {dimension_numbers = #tpu.dot_dimension_numbers<[1], [1], [0], [0], [0, 0, 1, 0], [], []>} : vector<16x8xbf16>, vector<16x8xbf16>, vector<16x16xf32> -> vector<16x16xf32>
    %353 = arith.addf %352, %12 : vector<16x16xf32>
    %cst_150 = arith.constant dense<0xFF800000> : vector<16xf32>
    %354 = vector.multi_reduction <maximumf>, %353, %cst_150 [1] : vector<16x16xf32> to vector<16xf32>
    %355 = vector.shape_cast %354 : vector<16xf32> to vector<16x1xf32>
    %356 = vector.broadcast %355 : vector<16x1xf32> to vector<16x16xf32>
    %357 = arith.subf %353, %356 : vector<16x16xf32>
    %358 = math.exp %357 : vector<16x16xf32>
    %cst_151 = arith.constant dense<0.000000e+00> : vector<16xf32>
    %359 = vector.multi_reduction <add>, %358, %cst_151 [1] : vector<16x16xf32> to vector<16xf32>
    %360 = vector.shape_cast %359 : vector<16xf32> to vector<16x1xf32>
    %361 = tpu.reciprocal %360 {approx = true} : vector<16x1xf32> -> vector<16x1xf32>
    %362 = vector.broadcast %361 : vector<16x1xf32> to vector<16x16xf32>
    %363 = arith.mulf %358, %362 : vector<16x16xf32>
    %364 = arith.truncf %363 : vector<16x16xf32> to vector<16x16xbf16>
    %cst_152 = arith.constant dense<0.000000e+00> : vector<16x8xf32>
    %365 = tpu.matmul %364, %351, %cst_152 {dimension_numbers = #tpu.dot_dimension_numbers<[1], [0], [0], [1], [0, 0, 1, 1], [], []>} : vector<16x16xbf16>, vector<16x8xbf16>, vector<16x8xf32> -> vector<16x8xf32>
    %366 = vector.extract_strided_slice %348 {offsets = [0, 8], sizes = [16, 8], strides = [1, 1]} : vector<16x96xbf16> to vector<16x8xbf16>
    %367 = vector.extract_strided_slice %348 {offsets = [0, 40], sizes = [16, 8], strides = [1, 1]} : vector<16x96xbf16> to vector<16x8xbf16>
    %368 = vector.extract_strided_slice %348 {offsets = [0, 72], sizes = [16, 8], strides = [1, 1]} : vector<16x96xbf16> to vector<16x8xbf16>
    %cst_153 = arith.constant dense<0.000000e+00> : vector<16x16xf32>
    %369 = tpu.matmul %366, %367, %cst_153 {dimension_numbers = #tpu.dot_dimension_numbers<[1], [1], [0], [0], [0, 0, 1, 0], [], []>} : vector<16x8xbf16>, vector<16x8xbf16>, vector<16x16xf32> -> vector<16x16xf32>
    %370 = arith.addf %369, %12 : vector<16x16xf32>
    %cst_154 = arith.constant dense<0xFF800000> : vector<16xf32>
    %371 = vector.multi_reduction <maximumf>, %370, %cst_154 [1] : vector<16x16xf32> to vector<16xf32>
    %372 = vector.shape_cast %371 : vector<16xf32> to vector<16x1xf32>
    %373 = vector.broadcast %372 : vector<16x1xf32> to vector<16x16xf32>
    %374 = arith.subf %370, %373 : vector<16x16xf32>
    %375 = math.exp %374 : vector<16x16xf32>
    %cst_155 = arith.constant dense<0.000000e+00> : vector<16xf32>
    %376 = vector.multi_reduction <add>, %375, %cst_155 [1] : vector<16x16xf32> to vector<16xf32>
    %377 = vector.shape_cast %376 : vector<16xf32> to vector<16x1xf32>
    %378 = tpu.reciprocal %377 {approx = true} : vector<16x1xf32> -> vector<16x1xf32>
    %379 = vector.broadcast %378 : vector<16x1xf32> to vector<16x16xf32>
    %380 = arith.mulf %375, %379 : vector<16x16xf32>
    %381 = arith.truncf %380 : vector<16x16xf32> to vector<16x16xbf16>
    %cst_156 = arith.constant dense<0.000000e+00> : vector<16x8xf32>
    %382 = tpu.matmul %381, %368, %cst_156 {dimension_numbers = #tpu.dot_dimension_numbers<[1], [0], [0], [1], [0, 0, 1, 1], [], []>} : vector<16x16xbf16>, vector<16x8xbf16>, vector<16x8xf32> -> vector<16x8xf32>
    %383 = vector.extract_strided_slice %348 {offsets = [0, 16], sizes = [16, 8], strides = [1, 1]} : vector<16x96xbf16> to vector<16x8xbf16>
    %384 = vector.extract_strided_slice %348 {offsets = [0, 48], sizes = [16, 8], strides = [1, 1]} : vector<16x96xbf16> to vector<16x8xbf16>
    %385 = vector.extract_strided_slice %348 {offsets = [0, 80], sizes = [16, 8], strides = [1, 1]} : vector<16x96xbf16> to vector<16x8xbf16>
    %cst_157 = arith.constant dense<0.000000e+00> : vector<16x16xf32>
    %386 = tpu.matmul %383, %384, %cst_157 {dimension_numbers = #tpu.dot_dimension_numbers<[1], [1], [0], [0], [0, 0, 1, 0], [], []>} : vector<16x8xbf16>, vector<16x8xbf16>, vector<16x16xf32> -> vector<16x16xf32>
    %387 = arith.addf %386, %12 : vector<16x16xf32>
    %cst_158 = arith.constant dense<0xFF800000> : vector<16xf32>
    %388 = vector.multi_reduction <maximumf>, %387, %cst_158 [1] : vector<16x16xf32> to vector<16xf32>
    %389 = vector.shape_cast %388 : vector<16xf32> to vector<16x1xf32>
    %390 = vector.broadcast %389 : vector<16x1xf32> to vector<16x16xf32>
    %391 = arith.subf %387, %390 : vector<16x16xf32>
    %392 = math.exp %391 : vector<16x16xf32>
    %cst_159 = arith.constant dense<0.000000e+00> : vector<16xf32>
    %393 = vector.multi_reduction <add>, %392, %cst_159 [1] : vector<16x16xf32> to vector<16xf32>
    %394 = vector.shape_cast %393 : vector<16xf32> to vector<16x1xf32>
    %395 = tpu.reciprocal %394 {approx = true} : vector<16x1xf32> -> vector<16x1xf32>
    %396 = vector.broadcast %395 : vector<16x1xf32> to vector<16x16xf32>
    %397 = arith.mulf %392, %396 : vector<16x16xf32>
    %398 = arith.truncf %397 : vector<16x16xf32> to vector<16x16xbf16>
    %cst_160 = arith.constant dense<0.000000e+00> : vector<16x8xf32>
    %399 = tpu.matmul %398, %385, %cst_160 {dimension_numbers = #tpu.dot_dimension_numbers<[1], [0], [0], [1], [0, 0, 1, 1], [], []>} : vector<16x16xbf16>, vector<16x8xbf16>, vector<16x8xf32> -> vector<16x8xf32>
    %400 = vector.extract_strided_slice %348 {offsets = [0, 24], sizes = [16, 8], strides = [1, 1]} : vector<16x96xbf16> to vector<16x8xbf16>
    %401 = vector.extract_strided_slice %348 {offsets = [0, 56], sizes = [16, 8], strides = [1, 1]} : vector<16x96xbf16> to vector<16x8xbf16>
    %402 = vector.extract_strided_slice %348 {offsets = [0, 88], sizes = [16, 8], strides = [1, 1]} : vector<16x96xbf16> to vector<16x8xbf16>
    %cst_161 = arith.constant dense<0.000000e+00> : vector<16x16xf32>
    %403 = tpu.matmul %400, %401, %cst_161 {dimension_numbers = #tpu.dot_dimension_numbers<[1], [1], [0], [0], [0, 0, 1, 0], [], []>} : vector<16x8xbf16>, vector<16x8xbf16>, vector<16x16xf32> -> vector<16x16xf32>
    %404 = arith.addf %403, %12 : vector<16x16xf32>
    %cst_162 = arith.constant dense<0xFF800000> : vector<16xf32>
    %405 = vector.multi_reduction <maximumf>, %404, %cst_162 [1] : vector<16x16xf32> to vector<16xf32>
    %406 = vector.shape_cast %405 : vector<16xf32> to vector<16x1xf32>
    %407 = vector.broadcast %406 : vector<16x1xf32> to vector<16x16xf32>
    %408 = arith.subf %404, %407 : vector<16x16xf32>
    %409 = math.exp %408 : vector<16x16xf32>
    %cst_163 = arith.constant dense<0.000000e+00> : vector<16xf32>
    %410 = vector.multi_reduction <add>, %409, %cst_163 [1] : vector<16x16xf32> to vector<16xf32>
    %411 = vector.shape_cast %410 : vector<16xf32> to vector<16x1xf32>
    %412 = tpu.reciprocal %411 {approx = true} : vector<16x1xf32> -> vector<16x1xf32>
    %413 = vector.broadcast %412 : vector<16x1xf32> to vector<16x16xf32>
    %414 = arith.mulf %409, %413 : vector<16x16xf32>
    %415 = arith.truncf %414 : vector<16x16xf32> to vector<16x16xbf16>
    %cst_164 = arith.constant dense<0.000000e+00> : vector<16x8xf32>
    %416 = tpu.matmul %415, %402, %cst_164 {dimension_numbers = #tpu.dot_dimension_numbers<[1], [0], [0], [1], [0, 0, 1, 1], [], []>} : vector<16x16xbf16>, vector<16x8xbf16>, vector<16x8xf32> -> vector<16x8xf32>
    %417 = tpu.concatenate %365, %382, %399, %416 in 1 : vector<16x8xf32>, vector<16x8xf32>, vector<16x8xf32>, vector<16x8xf32> -> vector<16x32xf32>
    %418 = arith.truncf %417 : vector<16x32xf32> to vector<16x32xbf16>
    %cst_165 = arith.constant dense<0.000000e+00> : vector<16x32xf32>
    %419 = tpu.matmul %418, %345, %cst_165 {dimension_numbers = #tpu.dot_dimension_numbers<[1], [0], [0], [1], [0, 0, 1, 1], [], []>} : vector<16x32xbf16>, vector<32x32xbf16>, vector<16x32xf32> -> vector<16x32xf32>
    %420 = vector.broadcast %347 : vector<1x32xf32> to vector<16x32xf32>
    %421 = arith.addf %419, %420 : vector<16x32xf32>
    %422 = arith.addf %311, %421 : vector<16x32xf32>
    %423 = vector.extract_strided_slice %310 {offsets = [0, 0], sizes = [1, 32], strides = [1, 1]} : vector<2x32xf32> to vector<1x32xf32>
    %424 = vector.extract_strided_slice %310 {offsets = [0, 0], sizes = [1, 32], strides = [1, 1]} : vector<2x32xf32> to vector<1x32xf32>
    %425 = vector.extract_strided_slice %310 {offsets = [1, 0], sizes = [1, 32], strides = [1, 1]} : vector<2x32xf32> to vector<1x32xf32>
    %426 = vector.extract_strided_slice %310 {offsets = [1, 0], sizes = [1, 32], strides = [1, 1]} : vector<2x32xf32> to vector<1x32xf32>
    %427 = tpu.concatenate %423, %424, %425, %426 in 0 : vector<1x32xf32>, vector<1x32xf32>, vector<1x32xf32>, vector<1x32xf32> -> vector<4x32xf32>
    %428 = tpu.concatenate %427, %422 in 0 : vector<4x32xf32>, vector<16x32xf32> -> vector<20x32xf32>
    %c1_166 = arith.constant 1 : index
    %c0_167 = arith.constant 0 : index
    %c0_168 = arith.constant 0 : index
    %429 = vector.load %arg13[%c1_166, %c0_167, %c0_168] : memref<2x1x32xf32, #tpu.memory_space<vmem>>, vector<1x1x32xf32>
    %430 = vector.shape_cast %429 : vector<1x1x32xf32> to vector<1x32xf32>
    %c1_169 = arith.constant 1 : index
    %c0_170 = arith.constant 0 : index
    %c0_171 = arith.constant 0 : index
    %431 = vector.load %arg14[%c1_169, %c0_170, %c0_171] : memref<2x1x32xf32, #tpu.memory_space<vmem>>, vector<1x1x32xf32>
    %432 = vector.shape_cast %431 : vector<1x1x32xf32> to vector<1x32xf32>
    %cst_172 = arith.constant dense<0.000000e+00> : vector<20xf32>
    %433 = vector.multi_reduction <add>, %428, %cst_172 [1] : vector<20x32xf32> to vector<20xf32>
    %434 = vector.shape_cast %433 : vector<20xf32> to vector<20x1xf32>
    %cst_173 = arith.constant 3.200000e+01 : f32
    %435 = vector.broadcast %cst_173 : f32 to vector<20x1xf32>
    %436 = arith.divf %434, %435 : vector<20x1xf32>
    %437 = vector.broadcast %436 : vector<20x1xf32> to vector<20x32xf32>
    %438 = arith.subf %428, %437 : vector<20x32xf32>
    %439 = arith.mulf %438, %438 : vector<20x32xf32>
    %cst_174 = arith.constant dense<0.000000e+00> : vector<20xf32>
    %440 = vector.multi_reduction <add>, %439, %cst_174 [1] : vector<20x32xf32> to vector<20xf32>
    %441 = vector.shape_cast %440 : vector<20xf32> to vector<20x1xf32>
    %cst_175 = arith.constant 3.200000e+01 : f32
    %442 = vector.broadcast %cst_175 : f32 to vector<20x1xf32>
    %443 = arith.divf %441, %442 : vector<20x1xf32>
    %cst_176 = arith.constant 9.99999974E-6 : f32
    %444 = vector.broadcast %cst_176 : f32 to vector<20x1xf32>
    %445 = arith.addf %443, %444 : vector<20x1xf32>
    %446 = math.rsqrt %445 : vector<20x1xf32>
    %447 = vector.broadcast %446 : vector<20x1xf32> to vector<20x32xf32>
    %448 = arith.mulf %438, %447 : vector<20x32xf32>
    %449 = vector.broadcast %430 : vector<1x32xf32> to vector<20x32xf32>
    %450 = arith.mulf %448, %449 : vector<20x32xf32>
    %451 = vector.broadcast %432 : vector<1x32xf32> to vector<20x32xf32>
    %452 = arith.addf %450, %451 : vector<20x32xf32>
    %c1_177 = arith.constant 1 : index
    %c0_178 = arith.constant 0 : index
    %c0_179 = arith.constant 0 : index
    %453 = vector.load %arg15[%c1_177, %c0_178, %c0_179] : memref<2x32x96xbf16, #tpu.memory_space<vmem>>, vector<1x32x96xbf16>
    %454 = vector.shape_cast %453 : vector<1x32x96xbf16> to vector<32x96xbf16>
    %c1_180 = arith.constant 1 : index
    %c0_181 = arith.constant 0 : index
    %c0_182 = arith.constant 0 : index
    %455 = vector.load %arg16[%c1_180, %c0_181, %c0_182] : memref<2x1x96xf32, #tpu.memory_space<vmem>>, vector<1x1x96xf32>
    %456 = vector.shape_cast %455 : vector<1x1x96xf32> to vector<1x96xf32>
    %457 = arith.truncf %452 : vector<20x32xf32> to vector<20x32xbf16>
    %cst_183 = arith.constant dense<0.000000e+00> : vector<20x96xf32>
    %458 = tpu.matmul %457, %454, %cst_183 {dimension_numbers = #tpu.dot_dimension_numbers<[1], [0], [0], [1], [0, 0, 1, 1], [], []>} : vector<20x32xbf16>, vector<32x96xbf16>, vector<20x96xf32> -> vector<20x96xf32>
    %459 = vector.broadcast %456 : vector<1x96xf32> to vector<20x96xf32>
    %460 = arith.addf %458, %459 : vector<20x96xf32>
    %c1_184 = arith.constant 1 : index
    %c0_185 = arith.constant 0 : index
    %c0_186 = arith.constant 0 : index
    %461 = vector.load %arg17[%c1_184, %c0_185, %c0_186] : memref<2x32x32xbf16, #tpu.memory_space<vmem>>, vector<1x32x32xbf16>
    %462 = vector.shape_cast %461 : vector<1x32x32xbf16> to vector<32x32xbf16>
    %c1_187 = arith.constant 1 : index
    %c0_188 = arith.constant 0 : index
    %c0_189 = arith.constant 0 : index
    %463 = vector.load %arg18[%c1_187, %c0_188, %c0_189] : memref<2x1x32xf32, #tpu.memory_space<vmem>>, vector<1x1x32xf32>
    %464 = vector.shape_cast %463 : vector<1x1x32xf32> to vector<1x32xf32>
    %465 = arith.truncf %460 : vector<20x96xf32> to vector<20x96xbf16>
    %466 = vector.extract_strided_slice %465 {offsets = [0, 0], sizes = [20, 8], strides = [1, 1]} : vector<20x96xbf16> to vector<20x8xbf16>
    %467 = vector.extract_strided_slice %465 {offsets = [0, 32], sizes = [20, 8], strides = [1, 1]} : vector<20x96xbf16> to vector<20x8xbf16>
    %468 = vector.extract_strided_slice %465 {offsets = [0, 64], sizes = [20, 8], strides = [1, 1]} : vector<20x96xbf16> to vector<20x8xbf16>
    %cst_190 = arith.constant dense<0.000000e+00> : vector<20x20xf32>
    %469 = tpu.matmul %466, %467, %cst_190 {dimension_numbers = #tpu.dot_dimension_numbers<[1], [1], [0], [0], [0, 0, 1, 0], [], []>} : vector<20x8xbf16>, vector<20x8xbf16>, vector<20x20xf32> -> vector<20x20xf32>
    %470 = arith.addf %469, %13 : vector<20x20xf32>
    %cst_191 = arith.constant dense<0xFF800000> : vector<20xf32>
    %471 = vector.multi_reduction <maximumf>, %470, %cst_191 [1] : vector<20x20xf32> to vector<20xf32>
    %472 = vector.shape_cast %471 : vector<20xf32> to vector<20x1xf32>
    %473 = vector.broadcast %472 : vector<20x1xf32> to vector<20x20xf32>
    %474 = arith.subf %470, %473 : vector<20x20xf32>
    %475 = math.exp %474 : vector<20x20xf32>
    %cst_192 = arith.constant dense<0.000000e+00> : vector<20xf32>
    %476 = vector.multi_reduction <add>, %475, %cst_192 [1] : vector<20x20xf32> to vector<20xf32>
    %477 = vector.shape_cast %476 : vector<20xf32> to vector<20x1xf32>
    %478 = tpu.reciprocal %477 {approx = true} : vector<20x1xf32> -> vector<20x1xf32>
    %479 = vector.broadcast %478 : vector<20x1xf32> to vector<20x20xf32>
    %480 = arith.mulf %475, %479 : vector<20x20xf32>
    %481 = arith.truncf %480 : vector<20x20xf32> to vector<20x20xbf16>
    %cst_193 = arith.constant dense<0.000000e+00> : vector<20x8xf32>
    %482 = tpu.matmul %481, %468, %cst_193 {dimension_numbers = #tpu.dot_dimension_numbers<[1], [0], [0], [1], [0, 0, 1, 1], [], []>} : vector<20x20xbf16>, vector<20x8xbf16>, vector<20x8xf32> -> vector<20x8xf32>
    %483 = vector.extract_strided_slice %465 {offsets = [0, 8], sizes = [20, 8], strides = [1, 1]} : vector<20x96xbf16> to vector<20x8xbf16>
    %484 = vector.extract_strided_slice %465 {offsets = [0, 40], sizes = [20, 8], strides = [1, 1]} : vector<20x96xbf16> to vector<20x8xbf16>
    %485 = vector.extract_strided_slice %465 {offsets = [0, 72], sizes = [20, 8], strides = [1, 1]} : vector<20x96xbf16> to vector<20x8xbf16>
    %cst_194 = arith.constant dense<0.000000e+00> : vector<20x20xf32>
    %486 = tpu.matmul %483, %484, %cst_194 {dimension_numbers = #tpu.dot_dimension_numbers<[1], [1], [0], [0], [0, 0, 1, 0], [], []>} : vector<20x8xbf16>, vector<20x8xbf16>, vector<20x20xf32> -> vector<20x20xf32>
    %487 = arith.addf %486, %13 : vector<20x20xf32>
    %cst_195 = arith.constant dense<0xFF800000> : vector<20xf32>
    %488 = vector.multi_reduction <maximumf>, %487, %cst_195 [1] : vector<20x20xf32> to vector<20xf32>
    %489 = vector.shape_cast %488 : vector<20xf32> to vector<20x1xf32>
    %490 = vector.broadcast %489 : vector<20x1xf32> to vector<20x20xf32>
    %491 = arith.subf %487, %490 : vector<20x20xf32>
    %492 = math.exp %491 : vector<20x20xf32>
    %cst_196 = arith.constant dense<0.000000e+00> : vector<20xf32>
    %493 = vector.multi_reduction <add>, %492, %cst_196 [1] : vector<20x20xf32> to vector<20xf32>
    %494 = vector.shape_cast %493 : vector<20xf32> to vector<20x1xf32>
    %495 = tpu.reciprocal %494 {approx = true} : vector<20x1xf32> -> vector<20x1xf32>
    %496 = vector.broadcast %495 : vector<20x1xf32> to vector<20x20xf32>
    %497 = arith.mulf %492, %496 : vector<20x20xf32>
    %498 = arith.truncf %497 : vector<20x20xf32> to vector<20x20xbf16>
    %cst_197 = arith.constant dense<0.000000e+00> : vector<20x8xf32>
    %499 = tpu.matmul %498, %485, %cst_197 {dimension_numbers = #tpu.dot_dimension_numbers<[1], [0], [0], [1], [0, 0, 1, 1], [], []>} : vector<20x20xbf16>, vector<20x8xbf16>, vector<20x8xf32> -> vector<20x8xf32>
    %500 = vector.extract_strided_slice %465 {offsets = [0, 16], sizes = [20, 8], strides = [1, 1]} : vector<20x96xbf16> to vector<20x8xbf16>
    %501 = vector.extract_strided_slice %465 {offsets = [0, 48], sizes = [20, 8], strides = [1, 1]} : vector<20x96xbf16> to vector<20x8xbf16>
    %502 = vector.extract_strided_slice %465 {offsets = [0, 80], sizes = [20, 8], strides = [1, 1]} : vector<20x96xbf16> to vector<20x8xbf16>
    %cst_198 = arith.constant dense<0.000000e+00> : vector<20x20xf32>
    %503 = tpu.matmul %500, %501, %cst_198 {dimension_numbers = #tpu.dot_dimension_numbers<[1], [1], [0], [0], [0, 0, 1, 0], [], []>} : vector<20x8xbf16>, vector<20x8xbf16>, vector<20x20xf32> -> vector<20x20xf32>
    %504 = arith.addf %503, %13 : vector<20x20xf32>
    %cst_199 = arith.constant dense<0xFF800000> : vector<20xf32>
    %505 = vector.multi_reduction <maximumf>, %504, %cst_199 [1] : vector<20x20xf32> to vector<20xf32>
    %506 = vector.shape_cast %505 : vector<20xf32> to vector<20x1xf32>
    %507 = vector.broadcast %506 : vector<20x1xf32> to vector<20x20xf32>
    %508 = arith.subf %504, %507 : vector<20x20xf32>
    %509 = math.exp %508 : vector<20x20xf32>
    %cst_200 = arith.constant dense<0.000000e+00> : vector<20xf32>
    %510 = vector.multi_reduction <add>, %509, %cst_200 [1] : vector<20x20xf32> to vector<20xf32>
    %511 = vector.shape_cast %510 : vector<20xf32> to vector<20x1xf32>
    %512 = tpu.reciprocal %511 {approx = true} : vector<20x1xf32> -> vector<20x1xf32>
    %513 = vector.broadcast %512 : vector<20x1xf32> to vector<20x20xf32>
    %514 = arith.mulf %509, %513 : vector<20x20xf32>
    %515 = arith.truncf %514 : vector<20x20xf32> to vector<20x20xbf16>
    %cst_201 = arith.constant dense<0.000000e+00> : vector<20x8xf32>
    %516 = tpu.matmul %515, %502, %cst_201 {dimension_numbers = #tpu.dot_dimension_numbers<[1], [0], [0], [1], [0, 0, 1, 1], [], []>} : vector<20x20xbf16>, vector<20x8xbf16>, vector<20x8xf32> -> vector<20x8xf32>
    %517 = vector.extract_strided_slice %465 {offsets = [0, 24], sizes = [20, 8], strides = [1, 1]} : vector<20x96xbf16> to vector<20x8xbf16>
    %518 = vector.extract_strided_slice %465 {offsets = [0, 56], sizes = [20, 8], strides = [1, 1]} : vector<20x96xbf16> to vector<20x8xbf16>
    %519 = vector.extract_strided_slice %465 {offsets = [0, 88], sizes = [20, 8], strides = [1, 1]} : vector<20x96xbf16> to vector<20x8xbf16>
    %cst_202 = arith.constant dense<0.000000e+00> : vector<20x20xf32>
    %520 = tpu.matmul %517, %518, %cst_202 {dimension_numbers = #tpu.dot_dimension_numbers<[1], [1], [0], [0], [0, 0, 1, 0], [], []>} : vector<20x8xbf16>, vector<20x8xbf16>, vector<20x20xf32> -> vector<20x20xf32>
    %521 = arith.addf %520, %13 : vector<20x20xf32>
    %cst_203 = arith.constant dense<0xFF800000> : vector<20xf32>
    %522 = vector.multi_reduction <maximumf>, %521, %cst_203 [1] : vector<20x20xf32> to vector<20xf32>
    %523 = vector.shape_cast %522 : vector<20xf32> to vector<20x1xf32>
    %524 = vector.broadcast %523 : vector<20x1xf32> to vector<20x20xf32>
    %525 = arith.subf %521, %524 : vector<20x20xf32>
    %526 = math.exp %525 : vector<20x20xf32>
    %cst_204 = arith.constant dense<0.000000e+00> : vector<20xf32>
    %527 = vector.multi_reduction <add>, %526, %cst_204 [1] : vector<20x20xf32> to vector<20xf32>
    %528 = vector.shape_cast %527 : vector<20xf32> to vector<20x1xf32>
    %529 = tpu.reciprocal %528 {approx = true} : vector<20x1xf32> -> vector<20x1xf32>
    %530 = vector.broadcast %529 : vector<20x1xf32> to vector<20x20xf32>
    %531 = arith.mulf %526, %530 : vector<20x20xf32>
    %532 = arith.truncf %531 : vector<20x20xf32> to vector<20x20xbf16>
    %cst_205 = arith.constant dense<0.000000e+00> : vector<20x8xf32>
    %533 = tpu.matmul %532, %519, %cst_205 {dimension_numbers = #tpu.dot_dimension_numbers<[1], [0], [0], [1], [0, 0, 1, 1], [], []>} : vector<20x20xbf16>, vector<20x8xbf16>, vector<20x8xf32> -> vector<20x8xf32>
    %534 = tpu.concatenate %482, %499, %516, %533 in 1 : vector<20x8xf32>, vector<20x8xf32>, vector<20x8xf32>, vector<20x8xf32> -> vector<20x32xf32>
    %535 = arith.truncf %534 : vector<20x32xf32> to vector<20x32xbf16>
    %cst_206 = arith.constant dense<0.000000e+00> : vector<20x32xf32>
    %536 = tpu.matmul %535, %462, %cst_206 {dimension_numbers = #tpu.dot_dimension_numbers<[1], [0], [0], [1], [0, 0, 1, 1], [], []>} : vector<20x32xbf16>, vector<32x32xbf16>, vector<20x32xf32> -> vector<20x32xf32>
    %537 = vector.broadcast %464 : vector<1x32xf32> to vector<20x32xf32>
    %538 = arith.addf %536, %537 : vector<20x32xf32>
    %539 = vector.extract_strided_slice %538 {offsets = [0, 0], sizes = [1, 32], strides = [1, 1]} : vector<20x32xf32> to vector<1x32xf32>
    %540 = vector.extract_strided_slice %538 {offsets = [1, 0], sizes = [1, 32], strides = [1, 1]} : vector<20x32xf32> to vector<1x32xf32>
    %541 = arith.addf %539, %540 : vector<1x32xf32>
    %cst_207 = arith.constant 5.000000e-01 : f32
    %542 = vector.broadcast %cst_207 : f32 to vector<1x32xf32>
    %543 = arith.mulf %541, %542 : vector<1x32xf32>
    %544 = vector.extract_strided_slice %538 {offsets = [2, 0], sizes = [1, 32], strides = [1, 1]} : vector<20x32xf32> to vector<1x32xf32>
    %545 = vector.extract_strided_slice %538 {offsets = [3, 0], sizes = [1, 32], strides = [1, 1]} : vector<20x32xf32> to vector<1x32xf32>
    %546 = arith.addf %544, %545 : vector<1x32xf32>
    %cst_208 = arith.constant 5.000000e-01 : f32
    %547 = vector.broadcast %cst_208 : f32 to vector<1x32xf32>
    %548 = arith.mulf %546, %547 : vector<1x32xf32>
    %549 = tpu.concatenate %543, %548 in 0 : vector<1x32xf32>, vector<1x32xf32> -> vector<2x32xf32>
    %550 = arith.addf %310, %549 : vector<2x32xf32>
    %c1_209 = arith.constant 1 : index
    %c0_210 = arith.constant 0 : index
    %c0_211 = arith.constant 0 : index
    %551 = vector.load %arg19[%c1_209, %c0_210, %c0_211] : memref<2x1x32xf32, #tpu.memory_space<vmem>>, vector<1x1x32xf32>
    %552 = vector.shape_cast %551 : vector<1x1x32xf32> to vector<1x32xf32>
    %c1_212 = arith.constant 1 : index
    %c0_213 = arith.constant 0 : index
    %c0_214 = arith.constant 0 : index
    %553 = vector.load %arg20[%c1_212, %c0_213, %c0_214] : memref<2x1x32xf32, #tpu.memory_space<vmem>>, vector<1x1x32xf32>
    %554 = vector.shape_cast %553 : vector<1x1x32xf32> to vector<1x32xf32>
    %cst_215 = arith.constant dense<0.000000e+00> : vector<2xf32>
    %555 = vector.multi_reduction <add>, %550, %cst_215 [1] : vector<2x32xf32> to vector<2xf32>
    %556 = vector.shape_cast %555 : vector<2xf32> to vector<2x1xf32>
    %cst_216 = arith.constant 3.200000e+01 : f32
    %557 = vector.broadcast %cst_216 : f32 to vector<2x1xf32>
    %558 = arith.divf %556, %557 : vector<2x1xf32>
    %559 = vector.broadcast %558 : vector<2x1xf32> to vector<2x32xf32>
    %560 = arith.subf %550, %559 : vector<2x32xf32>
    %561 = arith.mulf %560, %560 : vector<2x32xf32>
    %cst_217 = arith.constant dense<0.000000e+00> : vector<2xf32>
    %562 = vector.multi_reduction <add>, %561, %cst_217 [1] : vector<2x32xf32> to vector<2xf32>
    %563 = vector.shape_cast %562 : vector<2xf32> to vector<2x1xf32>
    %cst_218 = arith.constant 3.200000e+01 : f32
    %564 = vector.broadcast %cst_218 : f32 to vector<2x1xf32>
    %565 = arith.divf %563, %564 : vector<2x1xf32>
    %cst_219 = arith.constant 9.99999974E-6 : f32
    %566 = vector.broadcast %cst_219 : f32 to vector<2x1xf32>
    %567 = arith.addf %565, %566 : vector<2x1xf32>
    %568 = math.rsqrt %567 : vector<2x1xf32>
    %569 = vector.broadcast %568 : vector<2x1xf32> to vector<2x32xf32>
    %570 = arith.mulf %560, %569 : vector<2x32xf32>
    %571 = vector.broadcast %552 : vector<1x32xf32> to vector<2x32xf32>
    %572 = arith.mulf %570, %571 : vector<2x32xf32>
    %573 = vector.broadcast %554 : vector<1x32xf32> to vector<2x32xf32>
    %574 = arith.addf %572, %573 : vector<2x32xf32>
    %c1_220 = arith.constant 1 : index
    %c0_221 = arith.constant 0 : index
    %c0_222 = arith.constant 0 : index
    %575 = vector.load %arg21[%c1_220, %c0_221, %c0_222] : memref<2x32x128xbf16, #tpu.memory_space<vmem>>, vector<1x32x128xbf16>
    %576 = vector.shape_cast %575 : vector<1x32x128xbf16> to vector<32x128xbf16>
    %c1_223 = arith.constant 1 : index
    %c0_224 = arith.constant 0 : index
    %c0_225 = arith.constant 0 : index
    %577 = vector.load %arg22[%c1_223, %c0_224, %c0_225] : memref<2x1x128xf32, #tpu.memory_space<vmem>>, vector<1x1x128xf32>
    %578 = vector.shape_cast %577 : vector<1x1x128xf32> to vector<1x128xf32>
    %579 = arith.truncf %574 : vector<2x32xf32> to vector<2x32xbf16>
    %cst_226 = arith.constant dense<0.000000e+00> : vector<2x128xf32>
    %580 = tpu.matmul %579, %576, %cst_226 {dimension_numbers = #tpu.dot_dimension_numbers<[1], [0], [0], [1], [0, 0, 1, 1], [], []>} : vector<2x32xbf16>, vector<32x128xbf16>, vector<2x128xf32> -> vector<2x128xf32>
    %581 = vector.broadcast %578 : vector<1x128xf32> to vector<2x128xf32>
    %582 = arith.addf %580, %581 : vector<2x128xf32>
    %cst_227 = arith.constant 5.000000e-01 : f32
    %583 = vector.broadcast %cst_227 : f32 to vector<2x128xf32>
    %584 = arith.mulf %583, %582 : vector<2x128xf32>
    %cst_228 = arith.constant 4.471500e-02 : f32
    %585 = vector.broadcast %cst_228 : f32 to vector<2x128xf32>
    %586 = arith.mulf %585, %582 : vector<2x128xf32>
    %587 = arith.mulf %586, %582 : vector<2x128xf32>
    %588 = arith.mulf %587, %582 : vector<2x128xf32>
    %589 = arith.addf %582, %588 : vector<2x128xf32>
    %cst_229 = arith.constant 0.797884583 : f32
    %590 = vector.broadcast %cst_229 : f32 to vector<2x128xf32>
    %591 = arith.mulf %590, %589 : vector<2x128xf32>
    %592 = math.tanh %591 : vector<2x128xf32>
    %cst_230 = arith.constant 1.000000e+00 : f32
    %593 = vector.broadcast %cst_230 : f32 to vector<2x128xf32>
    %594 = arith.addf %593, %592 : vector<2x128xf32>
    %595 = arith.mulf %584, %594 : vector<2x128xf32>
    %c1_231 = arith.constant 1 : index
    %c0_232 = arith.constant 0 : index
    %c0_233 = arith.constant 0 : index
    %596 = vector.load %arg23[%c1_231, %c0_232, %c0_233] : memref<2x128x32xbf16, #tpu.memory_space<vmem>>, vector<1x128x32xbf16>
    %597 = vector.shape_cast %596 : vector<1x128x32xbf16> to vector<128x32xbf16>
    %c1_234 = arith.constant 1 : index
    %c0_235 = arith.constant 0 : index
    %c0_236 = arith.constant 0 : index
    %598 = vector.load %arg24[%c1_234, %c0_235, %c0_236] : memref<2x1x32xf32, #tpu.memory_space<vmem>>, vector<1x1x32xf32>
    %599 = vector.shape_cast %598 : vector<1x1x32xf32> to vector<1x32xf32>
    %600 = arith.truncf %595 : vector<2x128xf32> to vector<2x128xbf16>
    %cst_237 = arith.constant dense<0.000000e+00> : vector<2x32xf32>
    %601 = tpu.matmul %600, %597, %cst_237 {dimension_numbers = #tpu.dot_dimension_numbers<[1], [0], [0], [1], [0, 0, 1, 1], [], []>} : vector<2x128xbf16>, vector<128x32xbf16>, vector<2x32xf32> -> vector<2x32xf32>
    %602 = vector.broadcast %599 : vector<1x32xf32> to vector<2x32xf32>
    %603 = arith.addf %601, %602 : vector<2x32xf32>
    %604 = arith.addf %550, %603 : vector<2x32xf32>
    %c0_238 = arith.constant 0 : index
    %c0_239 = arith.constant 0 : index
    %605 = vector.load %arg25[%c0_238, %c0_239] : memref<1x32xf32, #tpu.memory_space<vmem>>, vector<1x32xf32>
    %c0_240 = arith.constant 0 : index
    %c0_241 = arith.constant 0 : index
    %606 = vector.load %arg26[%c0_240, %c0_241] : memref<1x32xf32, #tpu.memory_space<vmem>>, vector<1x32xf32>
    %cst_242 = arith.constant dense<0.000000e+00> : vector<2xf32>
    %607 = vector.multi_reduction <add>, %604, %cst_242 [1] : vector<2x32xf32> to vector<2xf32>
    %608 = vector.shape_cast %607 : vector<2xf32> to vector<2x1xf32>
    %cst_243 = arith.constant 3.200000e+01 : f32
    %609 = vector.broadcast %cst_243 : f32 to vector<2x1xf32>
    %610 = arith.divf %608, %609 : vector<2x1xf32>
    %611 = vector.broadcast %610 : vector<2x1xf32> to vector<2x32xf32>
    %612 = arith.subf %604, %611 : vector<2x32xf32>
    %613 = arith.mulf %612, %612 : vector<2x32xf32>
    %cst_244 = arith.constant dense<0.000000e+00> : vector<2xf32>
    %614 = vector.multi_reduction <add>, %613, %cst_244 [1] : vector<2x32xf32> to vector<2xf32>
    %615 = vector.shape_cast %614 : vector<2xf32> to vector<2x1xf32>
    %cst_245 = arith.constant 3.200000e+01 : f32
    %616 = vector.broadcast %cst_245 : f32 to vector<2x1xf32>
    %617 = arith.divf %615, %616 : vector<2x1xf32>
    %cst_246 = arith.constant 9.99999997E-7 : f32
    %618 = vector.broadcast %cst_246 : f32 to vector<2x1xf32>
    %619 = arith.addf %617, %618 : vector<2x1xf32>
    %620 = math.rsqrt %619 : vector<2x1xf32>
    %621 = vector.broadcast %620 : vector<2x1xf32> to vector<2x32xf32>
    %622 = arith.mulf %612, %621 : vector<2x32xf32>
    %623 = vector.broadcast %605 : vector<1x32xf32> to vector<2x32xf32>
    %624 = arith.mulf %622, %623 : vector<2x32xf32>
    %625 = vector.broadcast %606 : vector<1x32xf32> to vector<2x32xf32>
    %626 = arith.addf %624, %625 : vector<2x32xf32>
    %c0_247 = arith.constant 0 : index
    %c0_248 = arith.constant 0 : index
    %627 = vector.load %arg27[%c0_247, %c0_248] : memref<2x32xf32, #tpu.memory_space<vmem>>, vector<2x32xf32>
    tpu.vector_store %arg27[%c0_247, %c0_248], %626 {strides = array<i32>} : memref<2x32xf32, #tpu.memory_space<vmem>>, vector<2x32xf32>,
    return
  }
}

</mosaic_0001>

<llo_original>
// kernel: timesformer_forward.1
$region0: #{timesformer_forward.1}
  #allocation0 [shape = 'u32[]', space=smem, size = 0x4, offset = 0x4, fixed_abs, tag = 'smem constant byte address 0x4 - core index']
  #allocation1 [shape = 'u32[144,128]{1,0:T(1,128)}', space=vmem, size = 0x12000, scoped, tag = 'internal scratch']
  %s0 = inlined_call_operand.vmem [shape: f32[16,48], index: 0, kind: input, shape index: {}]
  %s1 = inlined_call_operand.vmem [shape: f32[16,32], index: 1, kind: input, shape index: {}]
  %s2 = inlined_call_operand.vmem [shape: f32[1,32], index: 2, kind: input, shape index: {}]
  %s3 = inlined_call_operand.vmem [shape: f32[16,16], index: 3, kind: input, shape index: {}]
  %s4 = inlined_call_operand.vmem [shape: f32[20,20], index: 4, kind: input, shape index: {}]
  %s5 = inlined_call_operand.vmem [shape: bf16[48,32], index: 5, kind: input, shape index: {}]
  %s6 = inlined_call_operand.vmem [shape: f32[1,32], index: 6, kind: input, shape index: {}]
  %s7 = inlined_call_operand.vmem [shape: f32[2,1,32], index: 7, kind: input, shape index: {}]
  %s8 = inlined_call_operand.vmem [shape: f32[2,1,32], index: 8, kind: input, shape index: {}]
  %s9 = inlined_call_operand.vmem [shape: bf16[2,32,96], index: 9, kind: input, shape index: {}]
  %s10 = inlined_call_operand.vmem [shape: f32[2,1,96], index: 10, kind: input, shape index: {}]
  %s11 = inlined_call_operand.vmem [shape: bf16[2,32,32], index: 11, kind: input, shape index: {}]
  %s12 = inlined_call_operand.vmem [shape: f32[2,1,32], index: 12, kind: input, shape index: {}]
  %s13 = inlined_call_operand.vmem [shape: f32[2,1,32], index: 13, kind: input, shape index: {}]
  %s14 = inlined_call_operand.vmem [shape: f32[2,1,32], index: 14, kind: input, shape index: {}]
  %s15 = inlined_call_operand.vmem [shape: bf16[2,32,96], index: 15, kind: input, shape index: {}]
  %s16 = inlined_call_operand.vmem [shape: f32[2,1,96], index: 16, kind: input, shape index: {}]
  %s17 = inlined_call_operand.vmem [shape: bf16[2,32,32], index: 17, kind: input, shape index: {}]
  %s18 = inlined_call_operand.vmem [shape: f32[2,1,32], index: 18, kind: input, shape index: {}]
  %s19 = inlined_call_operand.vmem [shape: f32[2,1,32], index: 19, kind: input, shape index: {}]
  %s20 = inlined_call_operand.vmem [shape: f32[2,1,32], index: 20, kind: input, shape index: {}]
  %s21 = inlined_call_operand.vmem [shape: bf16[2,32,128], index: 21, kind: input, shape index: {}]
  %s22 = inlined_call_operand.vmem [shape: f32[2,1,128], index: 22, kind: input, shape index: {}]
  %s23 = inlined_call_operand.vmem [shape: bf16[2,128,32], index: 23, kind: input, shape index: {}]
  %s24 = inlined_call_operand.vmem [shape: f32[2,1,32], index: 24, kind: input, shape index: {}]
  %s25 = inlined_call_operand.vmem [shape: f32[1,32], index: 25, kind: input, shape index: {}]
  %s26 = inlined_call_operand.vmem [shape: f32[1,32], index: 26, kind: input, shape index: {}]
  %s27 = inlined_call_operand.hbm [shape: f32[2,32], index: 27, kind: output, shape index: {}]
  %s28 = sld [smem:[#allocation0]]
  $region118: #{timesformer_forward.1} parent=0
    _
  %s30 = ssub.s32 1, %s28
  %s31 = scalar_select 0, %s30, %s28
  $region1: #{timesformer_forward.1} parent=0
    #allocation2 [shape = 'u8[1024]{0}', space=vmem, size = 0x400, scoped, tag = 'output window, operand 0, single buffered']
    #allocation3 [shape = 's32[1]{0}', space=sflag, size = 0x4, scoped, tag = 'scoped memory for timesformer_forward.1']
    %32 = vsyncpa [#allocation3], 0
    // Predicated region
    $region2: #{timesformer_forward.1} parent=1 // pred_check
      _
    $region3: #{timesformer_forward.1} parent=1 // pred_check_branch
      %34 = sbr.rel (0) target = $region5
    $region4: #{timesformer_forward.1} parent=1 // pred_region
      _
    $region5: #{timesformer_forward.1} parent=1 // pred_fallthru
      _
    // Predicated region
    $region6: #{timesformer_forward.1} parent=1 // pred_check
      _
    $region7: #{timesformer_forward.1} parent=1 // pred_check_branch
      %36 = sbr.rel (0) target = $region9
    $region8: #{timesformer_forward.1} parent=1 // pred_region
      _
    $region9: #{timesformer_forward.1} parent=1 // pred_fallthru
      _
    // Predicated region
    $region10: #{timesformer_forward.1} parent=1 // pred_check
      _
    $region11: #{timesformer_forward.1} parent=1 // pred_check_branch
      %38 = sbr.rel (0) target = $region13
    $region12: #{timesformer_forward.1} parent=1 // pred_region
      _
    $region13: #{timesformer_forward.1} parent=1 // pred_fallthru
      _
    // Predicated region
    $region14: #{timesformer_forward.1} parent=1 // pred_check
      _
    $region15: #{timesformer_forward.1} parent=1 // pred_check_branch
      %40 = sbr.rel (0) target = $region17
    $region16: #{timesformer_forward.1} parent=1 // pred_region
      _
    $region17: #{timesformer_forward.1} parent=1 // pred_fallthru
      _
    // Predicated region
    $region18: #{timesformer_forward.1} parent=1 // pred_check
      _
    $region19: #{timesformer_forward.1} parent=1 // pred_check_branch
      %42 = sbr.rel (0) target = $region21
    $region20: #{timesformer_forward.1} parent=1 // pred_region
      _
    $region21: #{timesformer_forward.1} parent=1 // pred_fallthru
      _
    // Predicated region
    $region22: #{timesformer_forward.1} parent=1 // pred_check
      _
    $region23: #{timesformer_forward.1} parent=1 // pred_check_branch
      %44 = sbr.rel (0) target = $region25
    $region24: #{timesformer_forward.1} parent=1 // pred_region
      _
    $region25: #{timesformer_forward.1} parent=1 // pred_fallthru
      _
    // Predicated region
    $region26: #{timesformer_forward.1} parent=1 // pred_check
      _
    $region27: #{timesformer_forward.1} parent=1 // pred_check_branch
      %46 = sbr.rel (0) target = $region29
    $region28: #{timesformer_forward.1} parent=1 // pred_region
      _
    $region29: #{timesformer_forward.1} parent=1 // pred_fallthru
      _
    // Predicated region
    $region30: #{timesformer_forward.1} parent=1 // pred_check
      _
    $region31: #{timesformer_forward.1} parent=1 // pred_check_branch
      %48 = sbr.rel (0) target = $region33
    $region32: #{timesformer_forward.1} parent=1 // pred_region
      _
    $region33: #{timesformer_forward.1} parent=1 // pred_fallthru
      _
    // Predicated region
    $region34: #{timesformer_forward.1} parent=1 // pred_check
      _
    $region35: #{timesformer_forward.1} parent=1 // pred_check_branch
      %50 = sbr.rel (0) target = $region37
    $region36: #{timesformer_forward.1} parent=1 // pred_region
      _
    $region37: #{timesformer_forward.1} parent=1 // pred_fallthru
      _
    // Predicated region
    $region38: #{timesformer_forward.1} parent=1 // pred_check
      _
    $region39: #{timesformer_forward.1} parent=1 // pred_check_branch
      %52 = sbr.rel (0) target = $region41
    $region40: #{timesformer_forward.1} parent=1 // pred_region
      _
    $region41: #{timesformer_forward.1} parent=1 // pred_fallthru
      _
    // Predicated region
    $region42: #{timesformer_forward.1} parent=1 // pred_check
      _
    $region43: #{timesformer_forward.1} parent=1 // pred_check_branch
      %54 = sbr.rel (0) target = $region45
    $region44: #{timesformer_forward.1} parent=1 // pred_region
      _
    $region45: #{timesformer_forward.1} parent=1 // pred_fallthru
      _
    // Predicated region
    $region46: #{timesformer_forward.1} parent=1 // pred_check
      _
    $region47: #{timesformer_forward.1} parent=1 // pred_check_branch
      %56 = sbr.rel (0) target = $region49
    $region48: #{timesformer_forward.1} parent=1 // pred_region
      _
    $region49: #{timesformer_forward.1} parent=1 // pred_fallthru
      _
    // Predicated region
    $region50: #{timesformer_forward.1} parent=1 // pred_check
      _
    $region51: #{timesformer_forward.1} parent=1 // pred_check_branch
      %58 = sbr.rel (0) target = $region53
    $region52: #{timesformer_forward.1} parent=1 // pred_region
      _
    $region53: #{timesformer_forward.1} parent=1 // pred_fallthru
      _
    // Predicated region
    $region54: #{timesformer_forward.1} parent=1 // pred_check
      _
    $region55: #{timesformer_forward.1} parent=1 // pred_check_branch
      %60 = sbr.rel (0) target = $region57
    $region56: #{timesformer_forward.1} parent=1 // pred_region
      _
    $region57: #{timesformer_forward.1} parent=1 // pred_fallthru
      _
    // Predicated region
    $region58: #{timesformer_forward.1} parent=1 // pred_check
      _
    $region59: #{timesformer_forward.1} parent=1 // pred_check_branch
      %62 = sbr.rel (0) target = $region61
    $region60: #{timesformer_forward.1} parent=1 // pred_region
      _
    $region61: #{timesformer_forward.1} parent=1 // pred_fallthru
      _
    // Predicated region
    $region62: #{timesformer_forward.1} parent=1 // pred_check
      _
    $region63: #{timesformer_forward.1} parent=1 // pred_check_branch
      %64 = sbr.rel (0) target = $region65
    $region64: #{timesformer_forward.1} parent=1 // pred_region
      _
    $region65: #{timesformer_forward.1} parent=1 // pred_fallthru
      _
    // Predicated region
    $region66: #{timesformer_forward.1} parent=1 // pred_check
      _
    $region67: #{timesformer_forward.1} parent=1 // pred_check_branch
      %66 = sbr.rel (0) target = $region69
    $region68: #{timesformer_forward.1} parent=1 // pred_region
      _
    $region69: #{timesformer_forward.1} parent=1 // pred_fallthru
      _
    // Predicated region
    $region70: #{timesformer_forward.1} parent=1 // pred_check
      _
    $region71: #{timesformer_forward.1} parent=1 // pred_check_branch
      %68 = sbr.rel (0) target = $region73
    $region72: #{timesformer_forward.1} parent=1 // pred_region
      _
    $region73: #{timesformer_forward.1} parent=1 // pred_fallthru
      _
    // Predicated region
    $region74: #{timesformer_forward.1} parent=1 // pred_check
      _
    $region75: #{timesformer_forward.1} parent=1 // pred_check_branch
      %70 = sbr.rel (0) target = $region77
    $region76: #{timesformer_forward.1} parent=1 // pred_region
      _
    $region77: #{timesformer_forward.1} parent=1 // pred_fallthru
      _
    // Predicated region
    $region78: #{timesformer_forward.1} parent=1 // pred_check
      _
    $region79: #{timesformer_forward.1} parent=1 // pred_check_branch
      %72 = sbr.rel (0) target = $region81
    $region80: #{timesformer_forward.1} parent=1 // pred_region
      _
    $region81: #{timesformer_forward.1} parent=1 // pred_fallthru
      _
    // Predicated region
    $region82: #{timesformer_forward.1} parent=1 // pred_check
      _
    $region83: #{timesformer_forward.1} parent=1 // pred_check_branch
      %74 = sbr.rel (0) target = $region85
    $region84: #{timesformer_forward.1} parent=1 // pred_region
      _
    $region85: #{timesformer_forward.1} parent=1 // pred_fallthru
      _
    // Predicated region
    $region86: #{timesformer_forward.1} parent=1 // pred_check
      _
    $region87: #{timesformer_forward.1} parent=1 // pred_check_branch
      %76 = sbr.rel (0) target = $region89
    $region88: #{timesformer_forward.1} parent=1 // pred_region
      _
    $region89: #{timesformer_forward.1} parent=1 // pred_fallthru
      _
    // Predicated region
    $region90: #{timesformer_forward.1} parent=1 // pred_check
      _
    $region91: #{timesformer_forward.1} parent=1 // pred_check_branch
      %78 = sbr.rel (0) target = $region93
    $region92: #{timesformer_forward.1} parent=1 // pred_region
      _
    $region93: #{timesformer_forward.1} parent=1 // pred_fallthru
      _
    // Predicated region
    $region94: #{timesformer_forward.1} parent=1 // pred_check
      _
    $region95: #{timesformer_forward.1} parent=1 // pred_check_branch
      %80 = sbr.rel (0) target = $region97
    $region96: #{timesformer_forward.1} parent=1 // pred_region
      _
    $region97: #{timesformer_forward.1} parent=1 // pred_fallthru
      _
    // Predicated region
    $region98: #{timesformer_forward.1} parent=1 // pred_check
      _
    $region99: #{timesformer_forward.1} parent=1 // pred_check_branch
      %82 = sbr.rel (0) target = $region101
    $region100: #{timesformer_forward.1} parent=1 // pred_region
      _
    $region101: #{timesformer_forward.1} parent=1 // pred_fallthru
      _
    // Predicated region
    $region102: #{timesformer_forward.1} parent=1 // pred_check
      _
    $region103: #{timesformer_forward.1} parent=1 // pred_check_branch
      %84 = sbr.rel (0) target = $region105
    $region104: #{timesformer_forward.1} parent=1 // pred_region
      _
    $region105: #{timesformer_forward.1} parent=1 // pred_fallthru
      _
    // Predicated region
    $region106: #{timesformer_forward.1} parent=1 // pred_check
      _
    $region107: #{timesformer_forward.1} parent=1 // pred_check_branch
      %86 = sbr.rel (0) target = $region109
    $region108: #{timesformer_forward.1} parent=1 // pred_region
      _
    $region109: #{timesformer_forward.1} parent=1 // pred_fallthru
      _
    %v88 = vld [vmem:[%s0] sm:$0xff]
    %v89 = vld [vmem:[%s0 + $0x8] sm:$0xff]
    %v90 = vld [vmem:[%s5] sm:$0xf]
    %v91 = vld [vmem:[%s5 + $0x4] sm:$0xf]
    %v92 = vld [vmem:[%s5 + $0x8] sm:$0xf]
    %v93 = vld [vmem:[%s5 + $0xc] sm:$0xf]
    %v94 = vld [vmem:[%s5 + $0x10] sm:$0xf]
    %v95 = vld [vmem:[%s5 + $0x14] sm:$0xf]
    %v96 = vld [vmem:[%s6] sm:$0x1]
    %v97 = vpack.c.bf16 %v89, %v88
    %v99 = vlaneseq
    %v100 = vshrl.u32 %v99, 7
    %v101 = vsub.s32 0, %v100
    %v102 = vrot.slane %v96, %v101
    %v110 = vunpack.c.l.b16 %v90
    %v111 = vunpack.c.l.b16 %v91
    %v112 = vunpack.c.l.b16 %v92
    %v113 = vunpack.c.l.b16 %v93
    %v114 = vunpack.c.l.b16 %v94
    %v115 = vunpack.c.l.b16 %v95
    %v116 = vpack.c.b16 %v111, %v110
    %v117 = vpack.c.b16 %v113, %v112
    %v118 = vpack.c.b16 %v115, %v114
    %vm122 = vcmask 392192
    %v124 = vsel %vm122, %v97, 0
    %126 = vmatprep.subr.bf16.mxu0 0
    %127 = vmatpush1.bf16.msra.mxu0 0
    %128 = vmatprep.subr.bf16.mxu0 0
    %129 = vmatpush1.bf16.msra.mxu0 0
    %130 = vmatprep.subr.bf16.mxu0 0
    %131 = vmatpush1.bf16.msra.mxu0 0
    %132 = vmatprep.subr.bf16.mxu0 0
    %133 = vmatpush1.bf16.msra.mxu0 0
    %134 = vmatprep.subr.bf16.mxu0 0
    %135 = vmatpush1.bf16.msra.mxu0 0
    %136 = vmatprep.subr.bf16.mxu0 0
    %137 = vmatpush1.bf16.msra.mxu0 %v118
    %138 = vmatprep.subr.bf16.mxu0 0
    %139 = vmatpush1.bf16.msra.mxu0 %v117
    %140 = vmatprep.subr.bf16.mxu0 0
    %141 = vmatpush1.bf16.msra.mxu0 %v116
    %142 = vmatprep.subr.bf16.mxu0 0
    %143 = vmatpush2.bf16.msra.mxu0 0
    %144 = vmatprep.subr.bf16.mxu0 0
    %145 = vmatpush2.bf16.msra.mxu0 0
    %146 = vmatprep.subr.bf16.mxu0 0
    %147 = vmatpush2.bf16.msra.mxu0 0
    %148 = vmatprep.subr.bf16.mxu0 0
    %149 = vmatpush2.bf16.msra.mxu0 0
    %150 = vmatprep.subr.bf16.mxu0 0
    %151 = vmatpush2.bf16.msra.mxu0 0
    %152 = vmatprep.subr.bf16.mxu0 0
    %153 = vmatpush2.bf16.msra.mxu0 0
    %154 = vmatprep.subr.bf16.mxu0 0
    %155 = vmatpush2.bf16.msra.mxu0 0
    %156 = vmatprep.subr.bf16.mxu0 0
    %157 = vmatpush2.bf16.msra.mxu0 0
    %158 = vmatprep.mubr.bf16.mxu0 0
    %159 = vmatmul.mubr.bf16.gmra.mxu0 %v124
    %v160 = vpop.f32.mrf.mxu0
    %v161 = vadd.f32 %v102, %v160
    %v162 = vpop.f32.mrf.mxu0
    %v163 = vpop.f32.mrf.mxu0
    %v164 = vadd.f32 %v102, %v163
    %v165 = vpop.f32.mrf.mxu0
    %166 = vdwg.mxu0
    %v167 = vld [vmem:[%s1] sm:$0xff]
    %v168 = vld [vmem:[%s1 + $0x8] sm:$0xff]
    %v169 = vadd.f32 %v161, %v167
    %v170 = vadd.f32 %v164, %v168
    %v171 = vld [vmem:[%s2] sm:$0x1]
    %v173 = vlaneseq
    %v174 = vshrl.u32 %v173, 7
    %v175 = vsub.s32 0, %v174
    %v176 = vrot.slane %v171, %v175
    %v178 = vld [vmem:[%s3] sm:$0xff]
    %v179 = vld [vmem:[%s3 + $0x8] sm:$0xff]
    %v180 = vld [vmem:[%s4] sm:$0xff]
    %v181 = vld [vmem:[%s4 + $0x8] sm:$0xff]
    %v182 = vld [vmem:[%s4 + $0x10] sm:$0xf]
    %v183 = vld [vmem:[%s7] sm:$0x1]
    %v184 = vld [vmem:[%s8] sm:$0x1]
    %vm185 = vcmask 261120
    %v186 = vsel %vm185, %v169, 0.0
    %187 = vadd.xlane.f32.xlu0 %v186
    %v188 = vpop.xlane.xlu0 %187
    %v189 = vsel %vm185, %v170, 0.0
    %190 = vadd.xlane.f32.xlu0 %v189
    %v191 = vpop.xlane.xlu0 %190
    %v192 = vrcp.pop 32.0
    %v193 = vmul.f32 %v188, %v192
    %v194 = vmul.f32 %v191, %v192
    %v195 = vsub.f32 %v169, %v193
    %v196 = vsub.f32 %v170, %v194
    %v197 = vmul.f32 %v195, %v195
    %v198 = vmul.f32 %v196, %v196
    %v199 = vsel %vm185, %v197, 0.0
    %200 = vadd.xlane.f32.xlu0 %v199
    %v201 = vpop.xlane.xlu0 %200
    %v202 = vsel %vm185, %v198, 0.0
    %203 = vadd.xlane.f32.xlu0 %v202
    %v204 = vpop.xlane.xlu0 %203
    %v205 = vmul.f32 %v201, %v192
    %v206 = vmul.f32 %v204, %v192
    %v207 = vadd.f32 %v205, 1e-05
    %v208 = vadd.f32 %v206, 1e-05
    %v209 = vrsqrt.pop %v207
    %v210 = vrsqrt.pop %v208
    %v211 = vmul.f32 %v195, %v209
    %v212 = vmul.f32 %v196, %v210
    %v214 = vlaneseq
    %v215 = vshrl.u32 %v214, 7
    %v216 = vsub.s32 0, %v215
    %v217 = vrot.slane %v183, %v216
    %v219 = vmul.f32 %v211, %v217
    %v220 = vmul.f32 %v212, %v217
    %v222 = vlaneseq
    %v223 = vshrl.u32 %v222, 7
    %v224 = vsub.s32 0, %v223
    %v225 = vrot.slane %v184, %v224
    %v227 = vadd.f32 %v219, %v225
    %v228 = vadd.f32 %v220, %v225
    %v229 = vld [vmem:[%s9] sm:$0xf]
    %v230 = vld [vmem:[%s9 + $0x4] sm:$0xf]
    %v231 = vld [vmem:[%s9 + $0x8] sm:$0xf]
    %v232 = vld [vmem:[%s9 + $0xc] sm:$0xf]
    %v233 = vld [vmem:[%s10] sm:$0x1]
    %v234 = vpack.c.bf16 %v228, %v227
    %v236 = vlaneseq
    %v237 = vshrl.u32 %v236, 7
    %v238 = vsub.s32 0, %v237
    %v239 = vrot.slane %v233, %v238
    %v245 = vunpack.c.l.b16 %v229
    %v246 = vunpack.c.l.b16 %v230
    %v247 = vunpack.c.l.b16 %v231
    %v248 = vunpack.c.l.b16 %v232
    %v249 = vpack.c.b16 %v246, %v245
    %v250 = vpack.c.b16 %v248, %v247
    %v254 = vsel %vm185, %v234, 0
    %256 = vmatprep.subr.bf16.mxu0 0
    %257 = vmatpush1.bf16.msra.mxu0 0
    %258 = vmatprep.subr.bf16.mxu0 0
    %259 = vmatpush1.bf16.msra.mxu0 0
    %260 = vmatprep.subr.bf16.mxu0 0
    %261 = vmatpush1.bf16.msra.mxu0 0
    %262 = vmatprep.subr.bf16.mxu0 0
    %263 = vmatpush1.bf16.msra.mxu0 0
    %264 = vmatprep.subr.bf16.mxu0 0
    %265 = vmatpush1.bf16.msra.mxu0 0
    %266 = vmatprep.subr.bf16.mxu0 0
    %267 = vmatpush1.bf16.msra.mxu0 0
    %268 = vmatprep.subr.bf16.mxu0 0
    %269 = vmatpush1.bf16.msra.mxu0 %v250
    %270 = vmatprep.subr.bf16.mxu0 0
    %271 = vmatpush1.bf16.msra.mxu0 %v249
    %272 = vmatprep.subr.bf16.mxu0 0
    %273 = vmatpush2.bf16.msra.mxu0 0
    %274 = vmatprep.subr.bf16.mxu0 0
    %275 = vmatpush2.bf16.msra.mxu0 0
    %276 = vmatprep.subr.bf16.mxu0 0
    %277 = vmatpush2.bf16.msra.mxu0 0
    %278 = vmatprep.subr.bf16.mxu0 0
    %279 = vmatpush2.bf16.msra.mxu0 0
    %280 = vmatprep.subr.bf16.mxu0 0
    %281 = vmatpush2.bf16.msra.mxu0 0
    %282 = vmatprep.subr.bf16.mxu0 0
    %283 = vmatpush2.bf16.msra.mxu0 0
    %284 = vmatprep.subr.bf16.mxu0 0
    %285 = vmatpush2.bf16.msra.mxu0 0
    %286 = vmatprep.subr.bf16.mxu0 0
    %287 = vmatpush2.bf16.msra.mxu0 0
    %288 = vmatprep.mubr.bf16.mxu0 0
    %289 = vmatmul.mubr.bf16.gmra.mxu0 %v254
    %v290 = vpop.f32.mrf.mxu0
    %v291 = vadd.f32 %v239, %v290
    %v292 = vpop.f32.mrf.mxu0
    %v293 = vpop.f32.mrf.mxu0
    %v294 = vadd.f32 %v239, %v293
    %v295 = vpop.f32.mrf.mxu0
    %296 = vdwg.mxu0
    %v297 = vld [vmem:[%s11] sm:$0xf]
    %v298 = vld [vmem:[%s11 + $0x4] sm:$0xf]
    %v299 = vld [vmem:[%s11 + $0x8] sm:$0xf]
    %v300 = vld [vmem:[%s11 + $0xc] sm:$0xf]
    %v301 = vld [vmem:[%s12] sm:$0x1]
    %v302 = vpack.c.bf16 %v294, %v291
    %304 = vrot.lane.b32.xlu0 %v302, 96
    %v305 = vpop.permute.xlu0 %304
    %vm306 = vcmask 64512
    %v308 = vsel %vm306, %v302, 0
    %v311 = vsel %vm306, %v305, 0
    %313 = vmatprep.subr.bf16.mxu0 0
    %314 = vmatpush1.bf16.xpose.msra.mxu0 0
    %315 = vmatprep.subr.bf16.mxu0 0
    %316 = vmatpush1.bf16.xpose.msra.mxu0 0
    %317 = vmatprep.subr.bf16.mxu0 0
    %318 = vmatpush1.bf16.xpose.msra.mxu0 0
    %319 = vmatprep.subr.bf16.mxu0 0
    %320 = vmatpush1.bf16.xpose.msra.mxu0 0
    %321 = vmatprep.subr.bf16.mxu0 0
    %322 = vmatpush1.bf16.xpose.msra.mxu0 0
    %323 = vmatprep.subr.bf16.mxu0 0
    %324 = vmatpush1.bf16.xpose.msra.mxu0 0
    %325 = vmatprep.subr.bf16.mxu0 0
    %326 = vmatpush1.bf16.xpose.msra.mxu0 0
    %327 = vmatprep.subr.bf16.mxu0 0
    %328 = vmatpush1.bf16.xpose.msra.mxu0 %v311
    %329 = vmatprep.subr.bf16.mxu0 0
    %330 = vmatpush2.bf16.xpose.msra.mxu0 0
    %331 = vmatprep.subr.bf16.mxu0 0
    %332 = vmatpush2.bf16.xpose.msra.mxu0 0
    %333 = vmatprep.subr.bf16.mxu0 0
    %334 = vmatpush2.bf16.xpose.msra.mxu0 0
    %335 = vmatprep.subr.bf16.mxu0 0
    %336 = vmatpush2.bf16.xpose.msra.mxu0 0
    %337 = vmatprep.subr.bf16.mxu0 0
    %338 = vmatpush2.bf16.xpose.msra.mxu0 0
    %339 = vmatprep.subr.bf16.mxu0 0
    %340 = vmatpush2.bf16.xpose.msra.mxu0 0
    %341 = vmatprep.subr.bf16.mxu0 0
    %342 = vmatpush2.bf16.xpose.msra.mxu0 0
    %343 = vmatprep.subr.bf16.mxu0 0
    %344 = vmatpush2.bf16.xpose.msra.mxu0 0
    %345 = vmatprep.mubr.bf16.mxu0 0
    %346 = vmatmul.mubr.bf16.gmra.mxu0 %v308
    %v347 = vpop.f32.mrf.mxu0
    %v348 = vadd.f32 %v178, %v347
    %v349 = vpop.f32.mrf.mxu0
    %v350 = vpop.f32.mrf.mxu0
    %v351 = vadd.f32 %v179, %v350
    %v352 = vpop.f32.mrf.mxu0
    %353 = vdwg.mxu0
    %vm354 = vcmask 130048
    %v355 = vsel %vm354, %v348, -inf
    %356 = vmax.xlane.f32.xlu0 %v355
    %v357 = vpop.xlane.xlu0 %356
    %v358 = vsel %vm354, %v351, -inf
    %359 = vmax.xlane.f32.xlu0 %v358
    %v360 = vpop.xlane.xlu0 %359
    %v361 = vsub.f32 %v348, %v357
    %v362 = vsub.f32 %v351, %v360
    %v363 = vmul.f32 %v361, 1.442695
    %v364 = vpow.pop %v363
    %v365 = vmul.f32 %v362, 1.442695
    %v366 = vpow.pop %v365
    %v367 = vsel %vm354, %v364, 0.0
    %368 = vadd.xlane.f32.xlu0 %v367
    %v369 = vpop.xlane.xlu0 %368
    %v370 = vsel %vm354, %v366, 0.0
    %371 = vadd.xlane.f32.xlu0 %v370
    %v372 = vpop.xlane.xlu0 %371
    %v373 = vrcp.pop %v369
    %v374 = vrcp.pop %v372
    %v375 = vmul.f32 %v364, %v373
    %v376 = vmul.f32 %v366, %v374
    %v377 = vpack.c.bf16 %v376, %v375
    %378 = vrot.lane.b32.xlu0 %v302, 64
    %v379 = vpop.permute.xlu0 %378
    %v382 = vsel %vm354, %v377, 0
    %384 = vmatprep.subr.bf16.mxu0 0
    %385 = vmatpush1.bf16.msra.mxu0 0
    %386 = vmatprep.subr.bf16.mxu0 0
    %387 = vmatpush1.bf16.msra.mxu0 0
    %388 = vmatprep.subr.bf16.mxu0 0
    %389 = vmatpush1.bf16.msra.mxu0 0
    %390 = vmatprep.subr.bf16.mxu0 0
    %391 = vmatpush1.bf16.msra.mxu0 0
    %392 = vmatprep.subr.bf16.mxu0 0
    %393 = vmatpush1.bf16.msra.mxu0 0
    %394 = vmatprep.subr.bf16.mxu0 0
    %395 = vmatpush1.bf16.msra.mxu0 0
    %396 = vmatprep.subr.bf16.mxu0 0
    %397 = vmatpush1.bf16.msra.mxu0 0
    %398 = vmatprep.subr.bf16.mxu0 0
    %399 = vmatpush1.bf16.msra.mxu0 %v379
    %400 = vmatprep.subr.bf16.mxu0 0
    %401 = vmatpush2.bf16.msra.mxu0 0
    %402 = vmatprep.subr.bf16.mxu0 0
    %403 = vmatpush2.bf16.msra.mxu0 0
    %404 = vmatprep.subr.bf16.mxu0 0
    %405 = vmatpush2.bf16.msra.mxu0 0
    %406 = vmatprep.subr.bf16.mxu0 0
    %407 = vmatpush2.bf16.msra.mxu0 0
    %408 = vmatprep.subr.bf16.mxu0 0
    %409 = vmatpush2.bf16.msra.mxu0 0
    %410 = vmatprep.subr.bf16.mxu0 0
    %411 = vmatpush2.bf16.msra.mxu0 0
    %412 = vmatprep.subr.bf16.mxu0 0
    %413 = vmatpush2.bf16.msra.mxu0 0
    %414 = vmatprep.subr.bf16.mxu0 0
    %415 = vmatpush2.bf16.msra.mxu0 0
    %416 = vmatprep.mubr.bf16.mxu0 0
    %417 = vmatmul.mubr.bf16.gmra.mxu0 %v382
    %v418 = vpop.f32.mrf.mxu0
    %v419 = vadd.f32 0.0, %v418
    %v420 = vpop.f32.mrf.mxu0
    %v421 = vpop.f32.mrf.mxu0
    %v422 = vadd.f32 0.0, %v421
    %v423 = vpop.f32.mrf.mxu0
    %424 = vdwg.mxu0
    %425 = vrot.lane.b32.xlu0 %v302, 120
    %v426 = vpop.permute.xlu0 %425
    %427 = vrot.lane.b32.xlu0 %v302, 88
    %v428 = vpop.permute.xlu0 %427
    %v430 = vsel %vm306, %v426, 0
    %v433 = vsel %vm306, %v428, 0
    %435 = vmatprep.subr.bf16.mxu0 0
    %436 = vmatpush1.bf16.xpose.msra.mxu0 0
    %437 = vmatprep.subr.bf16.mxu0 0
    %438 = vmatpush1.bf16.xpose.msra.mxu0 0
    %439 = vmatprep.subr.bf16.mxu0 0
    %440 = vmatpush1.bf16.xpose.msra.mxu0 0
    %441 = vmatprep.subr.bf16.mxu0 0
    %442 = vmatpush1.bf16.xpose.msra.mxu0 0
    %443 = vmatprep.subr.bf16.mxu0 0
    %444 = vmatpush1.bf16.xpose.msra.mxu0 0
    %445 = vmatprep.subr.bf16.mxu0 0
    %446 = vmatpush1.bf16.xpose.msra.mxu0 0
    %447 = vmatprep.subr.bf16.mxu0 0
    %448 = vmatpush1.bf16.xpose.msra.mxu0 0
    %449 = vmatprep.subr.bf16.mxu0 0
    %450 = vmatpush1.bf16.xpose.msra.mxu0 %v433
    %451 = vmatprep.subr.bf16.mxu0 0
    %452 = vmatpush2.bf16.xpose.msra.mxu0 0
    %453 = vmatprep.subr.bf16.mxu0 0
    %454 = vmatpush2.bf16.xpose.msra.mxu0 0
    %455 = vmatprep.subr.bf16.mxu0 0
    %456 = vmatpush2.bf16.xpose.msra.mxu0 0
    %457 = vmatprep.subr.bf16.mxu0 0
    %458 = vmatpush2.bf16.xpose.msra.mxu0 0
    %459 = vmatprep.subr.bf16.mxu0 0
    %460 = vmatpush2.bf16.xpose.msra.mxu0 0
    %461 = vmatprep.subr.bf16.mxu0 0
    %462 = vmatpush2.bf16.xpose.msra.mxu0 0
    %463 = vmatprep.subr.bf16.mxu0 0
    %464 = vmatpush2.bf16.xpose.msra.mxu0 0
    %465 = vmatprep.subr.bf16.mxu0 0
    %466 = vmatpush2.bf16.xpose.msra.mxu0 0
    %467 = vmatprep.mubr.bf16.mxu0 0
    %468 = vmatmul.mubr.bf16.gmra.mxu0 %v430
    %v469 = vpop.f32.mrf.mxu0
    %v470 = vadd.f32 %v178, %v469
    %v471 = vpop.f32.mrf.mxu0
    %v472 = vpop.f32.mrf.mxu0
    %v473 = vadd.f32 %v179, %v472
    %v474 = vpop.f32.mrf.mxu0
    %475 = vdwg.mxu0
    %v476 = vsel %vm354, %v470, -inf
    %477 = vmax.xlane.f32.xlu0 %v476
    %v478 = vpop.xlane.xlu0 %477
    %v479 = vsel %vm354, %v473, -inf
    %480 = vmax.xlane.f32.xlu0 %v479
    %v481 = vpop.xlane.xlu0 %480
    %v482 = vsub.f32 %v470, %v478
    %v483 = vsub.f32 %v473, %v481
    %v484 = vmul.f32 %v482, 1.442695
    %v485 = vpow.pop %v484
    %v486 = vmul.f32 %v483, 1.442695
    %v487 = vpow.pop %v486
    %v488 = vsel %vm354, %v485, 0.0
    %489 = vadd.xlane.f32.xlu0 %v488
    %v490 = vpop.xlane.xlu0 %489
    %v491 = vsel %vm354, %v487, 0.0
    %492 = vadd.xlane.f32.xlu0 %v491
    %v493 = vpop.xlane.xlu0 %492
    %v494 = vrcp.pop %v490
    %v495 = vrcp.pop %v493
    %v496 = vmul.f32 %v485, %v494
    %v497 = vmul.f32 %v487, %v495
    %v498 = vpack.c.bf16 %v497, %v496
    %499 = vrot.lane.b32.xlu0 %v302, 56
    %v500 = vpop.permute.xlu0 %499
    %v503 = vsel %vm354, %v498, 0
    %505 = vmatprep.subr.bf16.mxu0 0
    %506 = vmatpush1.bf16.msra.mxu0 0
    %507 = vmatprep.subr.bf16.mxu0 0
    %508 = vmatpush1.bf16.msra.mxu0 0
    %509 = vmatprep.subr.bf16.mxu0 0
    %510 = vmatpush1.bf16.msra.mxu0 0
    %511 = vmatprep.subr.bf16.mxu0 0
    %512 = vmatpush1.bf16.msra.mxu0 0
    %513 = vmatprep.subr.bf16.mxu0 0
    %514 = vmatpush1.bf16.msra.mxu0 0
    %515 = vmatprep.subr.bf16.mxu0 0
    %516 = vmatpush1.bf16.msra.mxu0 0
    %517 = vmatprep.subr.bf16.mxu0 0
    %518 = vmatpush1.bf16.msra.mxu0 0
    %519 = vmatprep.subr.bf16.mxu0 0
    %520 = vmatpush1.bf16.msra.mxu0 %v500
    %521 = vmatprep.subr.bf16.mxu0 0
    %522 = vmatpush2.bf16.msra.mxu0 0
    %523 = vmatprep.subr.bf16.mxu0 0
    %524 = vmatpush2.bf16.msra.mxu0 0
    %525 = vmatprep.subr.bf16.mxu0 0
    %526 = vmatpush2.bf16.msra.mxu0 0
    %527 = vmatprep.subr.bf16.mxu0 0
    %528 = vmatpush2.bf16.msra.mxu0 0
    %529 = vmatprep.subr.bf16.mxu0 0
    %530 = vmatpush2.bf16.msra.mxu0 0
    %531 = vmatprep.subr.bf16.mxu0 0
    %532 = vmatpush2.bf16.msra.mxu0 0
    %533 = vmatprep.subr.bf16.mxu0 0
    %534 = vmatpush2.bf16.msra.mxu0 0
    %535 = vmatprep.subr.bf16.mxu0 0
    %536 = vmatpush2.bf16.msra.mxu0 0
    %537 = vmatprep.mubr.bf16.mxu0 0
    %538 = vmatmul.mubr.bf16.gmra.mxu0 %v503
    %v539 = vpop.f32.mrf.mxu0
    %v540 = vadd.f32 0.0, %v539
    %v541 = vpop.f32.mrf.mxu0
    %v542 = vpop.f32.mrf.mxu0
    %v543 = vadd.f32 0.0, %v542
    %v544 = vpop.f32.mrf.mxu0
    %545 = vdwg.mxu0
    %546 = vrot.lane.b32.xlu0 %v302, 112
    %v547 = vpop.permute.xlu0 %546
    %548 = vrot.lane.b32.xlu0 %v302, 80
    %v549 = vpop.permute.xlu0 %548
    %v551 = vsel %vm306, %v547, 0
    %v554 = vsel %vm306, %v549, 0
    %556 = vmatprep.subr.bf16.mxu0 0
    %557 = vmatpush1.bf16.xpose.msra.mxu0 0
    %558 = vmatprep.subr.bf16.mxu0 0
    %559 = vmatpush1.bf16.xpose.msra.mxu0 0
    %560 = vmatprep.subr.bf16.mxu0 0
    %561 = vmatpush1.bf16.xpose.msra.mxu0 0
    %562 = vmatprep.subr.bf16.mxu0 0
    %563 = vmatpush1.bf16.xpose.msra.mxu0 0
    %564 = vmatprep.subr.bf16.mxu0 0
    %565 = vmatpush1.bf16.xpose.msra.mxu0 0
    %566 = vmatprep.subr.bf16.mxu0 0
    %567 = vmatpush1.bf16.xpose.msra.mxu0 0
    %568 = vmatprep.subr.bf16.mxu0 0
    %569 = vmatpush1.bf16.xpose.msra.mxu0 0
    %570 = vmatprep.subr.bf16.mxu0 0
    %571 = vmatpush1.bf16.xpose.msra.mxu0 %v554
    %572 = vmatprep.subr.bf16.mxu0 0
    %573 = vmatpush2.bf16.xpose.msra.mxu0 0
    %574 = vmatprep.subr.bf16.mxu0 0
    %575 = vmatpush2.bf16.xpose.msra.mxu0 0
    %576 = vmatprep.subr.bf16.mxu0 0
    %577 = vmatpush2.bf16.xpose.msra.mxu0 0
    %578 = vmatprep.subr.bf16.mxu0 0
    %579 = vmatpush2.bf16.xpose.msra.mxu0 0
    %580 = vmatprep.subr.bf16.mxu0 0
    %581 = vmatpush2.bf16.xpose.msra.mxu0 0
    %582 = vmatprep.subr.bf16.mxu0 0
    %583 = vmatpush2.bf16.xpose.msra.mxu0 0
    %584 = vmatprep.subr.bf16.mxu0 0
    %585 = vmatpush2.bf16.xpose.msra.mxu0 0
    %586 = vmatprep.subr.bf16.mxu0 0
    %587 = vmatpush2.bf16.xpose.msra.mxu0 0
    %588 = vmatprep.mubr.bf16.mxu0 0
    %589 = vmatmul.mubr.bf16.gmra.mxu0 %v551
    %v590 = vpop.f32.mrf.mxu0
    %v591 = vadd.f32 %v178, %v590
    %v592 = vpop.f32.mrf.mxu0
    %v593 = vpop.f32.mrf.mxu0
    %v594 = vadd.f32 %v179, %v593
    %v595 = vpop.f32.mrf.mxu0
    %596 = vdwg.mxu0
    %v597 = vsel %vm354, %v591, -inf
    %598 = vmax.xlane.f32.xlu0 %v597
    %v599 = vpop.xlane.xlu0 %598
    %v600 = vsel %vm354, %v594, -inf
    %601 = vmax.xlane.f32.xlu0 %v600
    %v602 = vpop.xlane.xlu0 %601
    %v603 = vsub.f32 %v591, %v599
    %v604 = vsub.f32 %v594, %v602
    %v605 = vmul.f32 %v603, 1.442695
    %v606 = vpow.pop %v605
    %v607 = vmul.f32 %v604, 1.442695
    %v608 = vpow.pop %v607
    %v609 = vsel %vm354, %v606, 0.0
    %610 = vadd.xlane.f32.xlu0 %v609
    %v611 = vpop.xlane.xlu0 %610
    %v612 = vsel %vm354, %v608, 0.0
    %613 = vadd.xlane.f32.xlu0 %v612
    %v614 = vpop.xlane.xlu0 %613
    %v615 = vrcp.pop %v611
    %v616 = vrcp.pop %v614
    %v617 = vmul.f32 %v606, %v615
    %v618 = vmul.f32 %v608, %v616
    %v619 = vpack.c.bf16 %v618, %v617
    %620 = vrot.lane.b32.xlu0 %v302, 48
    %v621 = vpop.permute.xlu0 %620
    %v624 = vsel %vm354, %v619, 0
    %626 = vmatprep.subr.bf16.mxu0 0
    %627 = vmatpush1.bf16.msra.mxu0 0
    %628 = vmatprep.subr.bf16.mxu0 0
    %629 = vmatpush1.bf16.msra.mxu0 0
    %630 = vmatprep.subr.bf16.mxu0 0
    %631 = vmatpush1.bf16.msra.mxu0 0
    %632 = vmatprep.subr.bf16.mxu0 0
    %633 = vmatpush1.bf16.msra.mxu0 0
    %634 = vmatprep.subr.bf16.mxu0 0
    %635 = vmatpush1.bf16.msra.mxu0 0
    %636 = vmatprep.subr.bf16.mxu0 0
    %637 = vmatpush1.bf16.msra.mxu0 0
    %638 = vmatprep.subr.bf16.mxu0 0
    %639 = vmatpush1.bf16.msra.mxu0 0
    %640 = vmatprep.subr.bf16.mxu0 0
    %641 = vmatpush1.bf16.msra.mxu0 %v621
    %642 = vmatprep.subr.bf16.mxu0 0
    %643 = vmatpush2.bf16.msra.mxu0 0
    %644 = vmatprep.subr.bf16.mxu0 0
    %645 = vmatpush2.bf16.msra.mxu0 0
    %646 = vmatprep.subr.bf16.mxu0 0
    %647 = vmatpush2.bf16.msra.mxu0 0
    %648 = vmatprep.subr.bf16.mxu0 0
    %649 = vmatpush2.bf16.msra.mxu0 0
    %650 = vmatprep.subr.bf16.mxu0 0
    %651 = vmatpush2.bf16.msra.mxu0 0
    %652 = vmatprep.subr.bf16.mxu0 0
    %653 = vmatpush2.bf16.msra.mxu0 0
    %654 = vmatprep.subr.bf16.mxu0 0
    %655 = vmatpush2.bf16.msra.mxu0 0
    %656 = vmatprep.subr.bf16.mxu0 0
    %657 = vmatpush2.bf16.msra.mxu0 0
    %658 = vmatprep.mubr.bf16.mxu0 0
    %659 = vmatmul.mubr.bf16.gmra.mxu0 %v624
    %v660 = vpop.f32.mrf.mxu0
    %v661 = vadd.f32 0.0, %v660
    %v662 = vpop.f32.mrf.mxu0
    %v663 = vpop.f32.mrf.mxu0
    %v664 = vadd.f32 0.0, %v663
    %v665 = vpop.f32.mrf.mxu0
    %666 = vdwg.mxu0
    %667 = vrot.lane.b32.xlu0 %v302, 104
    %v668 = vpop.permute.xlu0 %667
    %669 = vrot.lane.b32.xlu0 %v302, 72
    %v670 = vpop.permute.xlu0 %669
    %v672 = vsel %vm306, %v668, 0
    %v675 = vsel %vm306, %v670, 0
    %677 = vmatprep.subr.bf16.mxu0 0
    %678 = vmatpush1.bf16.xpose.msra.mxu0 0
    %679 = vmatprep.subr.bf16.mxu0 0
    %680 = vmatpush1.bf16.xpose.msra.mxu0 0
    %681 = vmatprep.subr.bf16.mxu0 0
    %682 = vmatpush1.bf16.xpose.msra.mxu0 0
    %683 = vmatprep.subr.bf16.mxu0 0
    %684 = vmatpush1.bf16.xpose.msra.mxu0 0
    %685 = vmatprep.subr.bf16.mxu0 0
    %686 = vmatpush1.bf16.xpose.msra.mxu0 0
    %687 = vmatprep.subr.bf16.mxu0 0
    %688 = vmatpush1.bf16.xpose.msra.mxu0 0
    %689 = vmatprep.subr.bf16.mxu0 0
    %690 = vmatpush1.bf16.xpose.msra.mxu0 0
    %691 = vmatprep.subr.bf16.mxu0 0
    %692 = vmatpush1.bf16.xpose.msra.mxu0 %v675
    %693 = vmatprep.subr.bf16.mxu0 0
    %694 = vmatpush2.bf16.xpose.msra.mxu0 0
    %695 = vmatprep.subr.bf16.mxu0 0
    %696 = vmatpush2.bf16.xpose.msra.mxu0 0
    %697 = vmatprep.subr.bf16.mxu0 0
    %698 = vmatpush2.bf16.xpose.msra.mxu0 0
    %699 = vmatprep.subr.bf16.mxu0 0
    %700 = vmatpush2.bf16.xpose.msra.mxu0 0
    %701 = vmatprep.subr.bf16.mxu0 0
    %702 = vmatpush2.bf16.xpose.msra.mxu0 0
    %703 = vmatprep.subr.bf16.mxu0 0
    %704 = vmatpush2.bf16.xpose.msra.mxu0 0
    %705 = vmatprep.subr.bf16.mxu0 0
    %706 = vmatpush2.bf16.xpose.msra.mxu0 0
    %707 = vmatprep.subr.bf16.mxu0 0
    %708 = vmatpush2.bf16.xpose.msra.mxu0 0
    %709 = vmatprep.mubr.bf16.mxu0 0
    %710 = vmatmul.mubr.bf16.gmra.mxu0 %v672
    %v711 = vpop.f32.mrf.mxu0
    %v712 = vadd.f32 %v178, %v711
    %v713 = vpop.f32.mrf.mxu0
    %v714 = vpop.f32.mrf.mxu0
    %v715 = vadd.f32 %v179, %v714
    %v716 = vpop.f32.mrf.mxu0
    %717 = vdwg.mxu0
    %v718 = vsel %vm354, %v712, -inf
    %719 = vmax.xlane.f32.xlu0 %v718
    %v720 = vpop.xlane.xlu0 %719
    %v721 = vsel %vm354, %v715, -inf
    %722 = vmax.xlane.f32.xlu0 %v721
    %v723 = vpop.xlane.xlu0 %722
    %v724 = vsub.f32 %v712, %v720
    %v725 = vsub.f32 %v715, %v723
    %v726 = vmul.f32 %v724, 1.442695
    %v727 = vpow.pop %v726
    %v728 = vmul.f32 %v725, 1.442695
    %v729 = vpow.pop %v728
    %v730 = vsel %vm354, %v727, 0.0
    %731 = vadd.xlane.f32.xlu0 %v730
    %v732 = vpop.xlane.xlu0 %731
    %v733 = vsel %vm354, %v729, 0.0
    %734 = vadd.xlane.f32.xlu0 %v733
    %v735 = vpop.xlane.xlu0 %734
    %v736 = vrcp.pop %v732
    %v737 = vrcp.pop %v735
    %v738 = vmul.f32 %v727, %v736
    %v739 = vmul.f32 %v729, %v737
    %v740 = vpack.c.bf16 %v739, %v738
    %741 = vrot.lane.b32.xlu0 %v302, 40
    %v742 = vpop.permute.xlu0 %741
    %v745 = vsel %vm354, %v740, 0
    %747 = vmatprep.subr.bf16.mxu0 0
    %748 = vmatpush1.bf16.msra.mxu0 0
    %749 = vmatprep.subr.bf16.mxu0 0
    %750 = vmatpush1.bf16.msra.mxu0 0
    %751 = vmatprep.subr.bf16.mxu0 0
    %752 = vmatpush1.bf16.msra.mxu0 0
    %753 = vmatprep.subr.bf16.mxu0 0
    %754 = vmatpush1.bf16.msra.mxu0 0
    %755 = vmatprep.subr.bf16.mxu0 0
    %756 = vmatpush1.bf16.msra.mxu0 0
    %757 = vmatprep.subr.bf16.mxu0 0
    %758 = vmatpush1.bf16.msra.mxu0 0
    %759 = vmatprep.subr.bf16.mxu0 0
    %760 = vmatpush1.bf16.msra.mxu0 0
    %761 = vmatprep.subr.bf16.mxu0 0
    %762 = vmatpush1.bf16.msra.mxu0 %v742
    %763 = vmatprep.subr.bf16.mxu0 0
    %764 = vmatpush2.bf16.msra.mxu0 0
    %765 = vmatprep.subr.bf16.mxu0 0
    %766 = vmatpush2.bf16.msra.mxu0 0
    %767 = vmatprep.subr.bf16.mxu0 0
    %768 = vmatpush2.bf16.msra.mxu0 0
    %769 = vmatprep.subr.bf16.mxu0 0
    %770 = vmatpush2.bf16.msra.mxu0 0
    %771 = vmatprep.subr.bf16.mxu0 0
    %772 = vmatpush2.bf16.msra.mxu0 0
    %773 = vmatprep.subr.bf16.mxu0 0
    %774 = vmatpush2.bf16.msra.mxu0 0
    %775 = vmatprep.subr.bf16.mxu0 0
    %776 = vmatpush2.bf16.msra.mxu0 0
    %777 = vmatprep.subr.bf16.mxu0 0
    %778 = vmatpush2.bf16.msra.mxu0 0
    %779 = vmatprep.mubr.bf16.mxu0 0
    %780 = vmatmul.mubr.bf16.gmra.mxu0 %v745
    %v781 = vpop.f32.mrf.mxu0
    %v782 = vadd.f32 0.0, %v781
    %v783 = vpop.f32.mrf.mxu0
    %v784 = vpop.f32.mrf.mxu0
    %v785 = vadd.f32 0.0, %v784
    %v786 = vpop.f32.mrf.mxu0
    %787 = vdwg.mxu0
    %790 = vrot.lane.b32.xlu0 %v540, 8
    %v791 = vpop.permute.xlu0 %790
    %792 = vrot.lane.b32.xlu0 %v543, 8
    %v793 = vpop.permute.xlu0 %792
    %798 = vrot.lane.b32.xlu0 %v661, 16
    %v799 = vpop.permute.xlu0 %798
    %800 = vrot.lane.b32.xlu0 %v664, 16
    %v801 = vpop.permute.xlu0 %800
    %806 = vrot.lane.b32.xlu0 %v782, 24
    %v807 = vpop.permute.xlu0 %806
    %808 = vrot.lane.b32.xlu0 %v785, 24
    %v809 = vpop.permute.xlu0 %808
    %v812 = vsel %vm306, %v419, %v791
    %v813 = vsel %vm306, %v422, %v793
    %v814 = vsel %vm354, %v812, %v799
    %v815 = vsel %vm354, %v813, %v801
    %vm816 = vcmask 195584
    %v817 = vsel %vm816, %v814, %v807
    %v818 = vsel %vm816, %v815, %v809
    %v819 = vpack.c.bf16 %v818, %v817
    %v821 = vlaneseq
    %v822 = vshrl.u32 %v821, 7
    %v823 = vsub.s32 0, %v822
    %v824 = vrot.slane %v301, %v823
    %v830 = vunpack.c.l.b16 %v297
    %v831 = vunpack.c.l.b16 %v298
    %v832 = vunpack.c.l.b16 %v299
    %v833 = vunpack.c.l.b16 %v300
    %v834 = vpack.c.b16 %v831, %v830
    %v835 = vpack.c.b16 %v833, %v832
    %v839 = vsel %vm185, %v819, 0
    %841 = vmatprep.subr.bf16.mxu0 0
    %842 = vmatpush1.bf16.msra.mxu0 0
    %843 = vmatprep.subr.bf16.mxu0 0
    %844 = vmatpush1.bf16.msra.mxu0 0
    %845 = vmatprep.subr.bf16.mxu0 0
    %846 = vmatpush1.bf16.msra.mxu0 0
    %847 = vmatprep.subr.bf16.mxu0 0
    %848 = vmatpush1.bf16.msra.mxu0 0
    %849 = vmatprep.subr.bf16.mxu0 0
    %850 = vmatpush1.bf16.msra.mxu0 0
    %851 = vmatprep.subr.bf16.mxu0 0
    %852 = vmatpush1.bf16.msra.mxu0 0
    %853 = vmatprep.subr.bf16.mxu0 0
    %854 = vmatpush1.bf16.msra.mxu0 %v835
    %855 = vmatprep.subr.bf16.mxu0 0
    %856 = vmatpush1.bf16.msra.mxu0 %v834
    %857 = vmatprep.subr.bf16.mxu0 0
    %858 = vmatpush2.bf16.msra.mxu0 0
    %859 = vmatprep.subr.bf16.mxu0 0
    %860 = vmatpush2.bf16.msra.mxu0 0
    %861 = vmatprep.subr.bf16.mxu0 0
    %862 = vmatpush2.bf16.msra.mxu0 0
    %863 = vmatprep.subr.bf16.mxu0 0
    %864 = vmatpush2.bf16.msra.mxu0 0
    %865 = vmatprep.subr.bf16.mxu0 0
    %866 = vmatpush2.bf16.msra.mxu0 0
    %867 = vmatprep.subr.bf16.mxu0 0
    %868 = vmatpush2.bf16.msra.mxu0 0
    %869 = vmatprep.subr.bf16.mxu0 0
    %870 = vmatpush2.bf16.msra.mxu0 0
    %871 = vmatprep.subr.bf16.mxu0 0
    %872 = vmatpush2.bf16.msra.mxu0 0
    %873 = vmatprep.mubr.bf16.mxu0 0
    %874 = vmatmul.mubr.bf16.gmra.mxu0 %v839
    %v875 = vpop.f32.mrf.mxu0
    %v876 = vadd.f32 %v824, %v875
    %v877 = vpop.f32.mrf.mxu0
    %v878 = vpop.f32.mrf.mxu0
    %v879 = vadd.f32 %v824, %v878
    %v880 = vpop.f32.mrf.mxu0
    %881 = vdwg.mxu0
    %v882 = vadd.f32 %v169, %v876
    %v883 = vadd.f32 %v170, %v879
    %vm884 = vcmask 1040384
    %v885 = vsel %vm884, %v171, %v176
    %vm886 = vcmask 1041408
    %v887 = vsel %vm886, %v885, %v176
    %vm888 = vcmask 1042432
    %v889 = vsel %vm888, %v887, %v176
    %vm892 = vcmask 1043456
    %v893 = vrot.slane %v882, 4
    %v894 = vrot.slane %v883, 4
    %v895 = vsel %vm892, %v893, %v894
    %v899 = vsel %vm892, %v889, %v893
    %v900 = vld [vmem:[%s13] sm:$0x1]
    %v901 = vld [vmem:[%s14] sm:$0x1]
    %v902 = vsel %vm185, %v899, 0.0
    %903 = vadd.xlane.f32.xlu0 %v902
    %v904 = vpop.xlane.xlu0 %903
    %v905 = vsel %vm185, %v895, 0.0
    %906 = vadd.xlane.f32.xlu0 %v905
    %v907 = vpop.xlane.xlu0 %906
    %vm908 = vcmask 257024
    %v909 = vsel %vm908, %v894, 0.0
    %910 = vadd.xlane.f32.xlu0 %v909
    %v911 = vpop.xlane.xlu0 %910
    %v912 = vmul.f32 %v904, %v192
    %v913 = vmul.f32 %v907, %v192
    %v914 = vmul.f32 %v911, %v192
    %v915 = vsub.f32 %v899, %v912
    %v916 = vsub.f32 %v895, %v913
    %v917 = vsub.f32 %v894, %v914
    %v918 = vmul.f32 %v915, %v915
    %v919 = vmul.f32 %v916, %v916
    %v920 = vmul.f32 %v917, %v917
    %v921 = vsel %vm185, %v918, 0.0
    %922 = vadd.xlane.f32.xlu0 %v921
    %v923 = vpop.xlane.xlu0 %922
    %v924 = vsel %vm185, %v919, 0.0
    %925 = vadd.xlane.f32.xlu0 %v924
    %v926 = vpop.xlane.xlu0 %925
    %v927 = vsel %vm908, %v920, 0.0
    %928 = vadd.xlane.f32.xlu0 %v927
    %v929 = vpop.xlane.xlu0 %928
    %v930 = vmul.f32 %v923, %v192
    %v931 = vmul.f32 %v926, %v192
    %v932 = vmul.f32 %v929, %v192
    %v933 = vadd.f32 %v930, 1e-05
    %v934 = vadd.f32 %v931, 1e-05
    %v935 = vadd.f32 %v932, 1e-05
    %v936 = vrsqrt.pop %v933
    %v937 = vrsqrt.pop %v934
    %v938 = vrsqrt.pop %v935
    %v939 = vmul.f32 %v915, %v936
    %v940 = vmul.f32 %v916, %v937
    %v941 = vmul.f32 %v917, %v938
    %v943 = vlaneseq
    %v944 = vshrl.u32 %v943, 7
    %v945 = vsub.s32 0, %v944
    %v946 = vrot.slane %v900, %v945
    %v948 = vmul.f32 %v939, %v946
    %v949 = vmul.f32 %v940, %v946
    %v950 = vmul.f32 %v941, %v946
    %v952 = vlaneseq
    %v953 = vshrl.u32 %v952, 7
    %v954 = vsub.s32 0, %v953
    %v955 = vrot.slane %v901, %v954
    %v957 = vadd.f32 %v948, %v955
    %v958 = vadd.f32 %v949, %v955
    %v959 = vadd.f32 %v950, %v955
    %v960 = vld [vmem:[%s15] sm:$0xf]
    %v961 = vld [vmem:[%s15 + $0x4] sm:$0xf]
    %v962 = vld [vmem:[%s15 + $0x8] sm:$0xf]
    %v963 = vld [vmem:[%s15 + $0xc] sm:$0xf]
    %v964 = vld [vmem:[%s16] sm:$0x1]
    %v965 = vpack.c.bf16 %v958, %v957
    %v966 = vpack.c.bf16 %v959, %v959
    %v968 = vlaneseq
    %v969 = vshrl.u32 %v968, 7
    %v970 = vsub.s32 0, %v969
    %v971 = vrot.slane %v964, %v970
    %v977 = vunpack.c.l.b16 %v960
    %v978 = vunpack.c.l.b16 %v961
    %v979 = vunpack.c.l.b16 %v962
    %v980 = vunpack.c.l.b16 %v963
    %v981 = vpack.c.b16 %v978, %v977
    %v982 = vpack.c.b16 %v980, %v979
    %v986 = vsel %vm185, %v965, 0
    %v989 = vsel %vm185, %v966, 0
    %991 = vmatprep.subr.bf16.mxu0 0
    %992 = vmatpush1.bf16.msra.mxu0 0
    %993 = vmatprep.subr.bf16.mxu0 0
    %994 = vmatpush1.bf16.msra.mxu0 0
    %995 = vmatprep.subr.bf16.mxu0 0
    %996 = vmatpush1.bf16.msra.mxu0 0
    %997 = vmatprep.subr.bf16.mxu0 0
    %998 = vmatpush1.bf16.msra.mxu0 0
    %999 = vmatprep.subr.bf16.mxu0 0
    %1000 = vmatpush1.bf16.msra.mxu0 0
    %1001 = vmatprep.subr.bf16.mxu0 0
    %1002 = vmatpush1.bf16.msra.mxu0 0
    %1003 = vmatprep.subr.bf16.mxu0 0
    %1004 = vmatpush1.bf16.msra.mxu0 %v982
    %1005 = vmatprep.subr.bf16.mxu0 0
    %1006 = vmatpush1.bf16.msra.mxu0 %v981
    %1007 = vmatprep.subr.bf16.mxu0 0
    %1008 = vmatpush2.bf16.msra.mxu0 0
    %1009 = vmatprep.subr.bf16.mxu0 0
    %1010 = vmatpush2.bf16.msra.mxu0 0
    %1011 = vmatprep.subr.bf16.mxu0 0
    %1012 = vmatpush2.bf16.msra.mxu0 0
    %1013 = vmatprep.subr.bf16.mxu0 0
    %1014 = vmatpush2.bf16.msra.mxu0 0
    %1015 = vmatprep.subr.bf16.mxu0 0
    %1016 = vmatpush2.bf16.msra.mxu0 0
    %1017 = vmatprep.subr.bf16.mxu0 0
    %1018 = vmatpush2.bf16.msra.mxu0 0
    %1019 = vmatprep.subr.bf16.mxu0 0
    %1020 = vmatpush2.bf16.msra.mxu0 0
    %1021 = vmatprep.subr.bf16.mxu0 0
    %1022 = vmatpush2.bf16.msra.mxu0 0
    %1023 = vmatprep.mubr.bf16.mxu0 0
    %1024 = vmatmul.mubr.bf16.gmra.mxu0 %v986
    %v1025 = vpop.f32.mrf.mxu0
    %v1026 = vadd.f32 %v971, %v1025
    %v1027 = vpop.f32.mrf.mxu0
    %v1028 = vpop.f32.mrf.mxu0
    %v1029 = vadd.f32 %v971, %v1028
    %v1030 = vpop.f32.mrf.mxu0
    %1031 = vmatprep.mubr.bf16.mxu0 0
    %1032 = vmatmul.mubr.bf16.gmra.mxu0 %v989
    %v1033 = vpop.f32.mrf.mxu0
    %v1034 = vadd.f32 %v971, %v1033
    %v1035 = vpop.f32.mrf.mxu0
    %v1036 = vpop.f32.mrf.mxu0
    %v1037 = vpop.f32.mrf.mxu0
    %1038 = vdwg.mxu0
    %v1039 = vld [vmem:[%s17] sm:$0xf]
    %v1040 = vld [vmem:[%s17 + $0x4] sm:$0xf]
    %v1041 = vld [vmem:[%s17 + $0x8] sm:$0xf]
    %v1042 = vld [vmem:[%s17 + $0xc] sm:$0xf]
    %v1043 = vld [vmem:[%s18] sm:$0x1]
    %v1044 = vpack.c.bf16 %v1029, %v1026
    %v1045 = vpack.c.bf16 %v1034, %v1034
    %1048 = vrot.lane.b32.xlu0 %v1044, 96
    %v1049 = vpop.permute.xlu0 %1048
    %1050 = vrot.lane.b32.xlu0 %v1045, 96
    %v1051 = vpop.permute.xlu0 %1050
    %v1053 = vsel %vm306, %v1044, 0
    %v1056 = vsel %vm306, %v1045, 0
    %v1059 = vsel %vm306, %v1049, 0
    %v1062 = vsel %vm306, %v1051, 0
    %1064 = vmatprep.subr.bf16.mxu0 0
    %1065 = vmatpush1.bf16.xpose.msra.mxu0 0
    %1066 = vmatprep.subr.bf16.mxu0 0
    %1067 = vmatpush1.bf16.xpose.msra.mxu0 0
    %1068 = vmatprep.subr.bf16.mxu0 0
    %1069 = vmatpush1.bf16.xpose.msra.mxu0 0
    %1070 = vmatprep.subr.bf16.mxu0 0
    %1071 = vmatpush1.bf16.xpose.msra.mxu0 0
    %1072 = vmatprep.subr.bf16.mxu0 0
    %1073 = vmatpush1.bf16.xpose.msra.mxu0 0
    %1074 = vmatprep.subr.bf16.mxu0 0
    %1075 = vmatpush1.bf16.xpose.msra.mxu0 0
    %1076 = vmatprep.subr.bf16.mxu0 0
    %1077 = vmatpush1.bf16.xpose.msra.mxu0 %v1062
    %1078 = vmatprep.subr.bf16.mxu0 0
    %1079 = vmatpush1.bf16.xpose.msra.mxu0 %v1059
    %1080 = vmatprep.subr.bf16.mxu0 0
    %1081 = vmatpush2.bf16.xpose.msra.mxu0 0
    %1082 = vmatprep.subr.bf16.mxu0 0
    %1083 = vmatpush2.bf16.xpose.msra.mxu0 0
    %1084 = vmatprep.subr.bf16.mxu0 0
    %1085 = vmatpush2.bf16.xpose.msra.mxu0 0
    %1086 = vmatprep.subr.bf16.mxu0 0
    %1087 = vmatpush2.bf16.xpose.msra.mxu0 0
    %1088 = vmatprep.subr.bf16.mxu0 0
    %1089 = vmatpush2.bf16.xpose.msra.mxu0 0
    %1090 = vmatprep.subr.bf16.mxu0 0
    %1091 = vmatpush2.bf16.xpose.msra.mxu0 0
    %1092 = vmatprep.subr.bf16.mxu0 0
    %1093 = vmatpush2.bf16.xpose.msra.mxu0 0
    %1094 = vmatprep.subr.bf16.mxu0 0
    %1095 = vmatpush2.bf16.xpose.msra.mxu0 0
    %1096 = vmatprep.mubr.bf16.mxu0 0
    %1097 = vmatmul.mubr.bf16.gmra.mxu0 %v1053
    %v1098 = vpop.f32.mrf.mxu0
    %v1099 = vadd.f32 %v180, %v1098
    %v1100 = vpop.f32.mrf.mxu0
    %v1101 = vpop.f32.mrf.mxu0
    %v1102 = vadd.f32 %v181, %v1101
    %v1103 = vpop.f32.mrf.mxu0
    %1104 = vmatprep.mubr.bf16.mxu0 0
    %1105 = vmatmul.mubr.bf16.gmra.mxu0 %v1056
    %v1106 = vpop.f32.mrf.mxu0
    %v1107 = vadd.f32 %v182, %v1106
    %v1108 = vpop.f32.mrf.mxu0
    %v1109 = vpop.f32.mrf.mxu0
    %v1110 = vpop.f32.mrf.mxu0
    %1111 = vdwg.mxu0
    %vm1112 = vcmask 162816
    %v1113 = vsel %vm1112, %v1099, -inf
    %1114 = vmax.xlane.f32.xlu0 %v1113
    %v1115 = vpop.xlane.xlu0 %1114
    %v1116 = vsel %vm1112, %v1102, -inf
    %1117 = vmax.xlane.f32.xlu0 %v1116
    %v1118 = vpop.xlane.xlu0 %1117
    %vm1119 = vcmask 158720
    %v1120 = vsel %vm1119, %v1107, -inf
    %1121 = vmax.xlane.f32.xlu0 %v1120
    %v1122 = vpop.xlane.xlu0 %1121
    %v1123 = vsub.f32 %v1099, %v1115
    %v1124 = vsub.f32 %v1102, %v1118
    %v1125 = vsub.f32 %v1107, %v1122
    %v1126 = vmul.f32 %v1123, 1.442695
    %v1127 = vpow.pop %v1126
    %v1128 = vmul.f32 %v1124, 1.442695
    %v1129 = vpow.pop %v1128
    %v1130 = vmul.f32 %v1125, 1.442695
    %v1131 = vpow.pop %v1130
    %v1132 = vsel %vm1112, %v1127, 0.0
    %1133 = vadd.xlane.f32.xlu0 %v1132
    %v1134 = vpop.xlane.xlu0 %1133
    %v1135 = vsel %vm1112, %v1129, 0.0
    %1136 = vadd.xlane.f32.xlu0 %v1135
    %v1137 = vpop.xlane.xlu0 %1136
    %v1138 = vsel %vm1119, %v1131, 0.0
    %1139 = vadd.xlane.f32.xlu0 %v1138
    %v1140 = vpop.xlane.xlu0 %1139
    %v1141 = vrcp.pop %v1134
    %v1142 = vrcp.pop %v1137
    %v1143 = vrcp.pop %v1140
    %v1144 = vmul.f32 %v1127, %v1141
    %v1145 = vmul.f32 %v1129, %v1142
    %v1146 = vmul.f32 %v1131, %v1143
    %v1147 = vpack.c.bf16 %v1145, %v1144
    %v1148 = vpack.c.bf16 %v1146, %v1146
    %1149 = vrot.lane.b32.xlu0 %v1044, 64
    %v1150 = vpop.permute.xlu0 %1149
    %1151 = vrot.lane.b32.xlu0 %v1045, 64
    %v1152 = vpop.permute.xlu0 %1151
    %v1155 = vsel %vm1112, %v1147, 0
    %v1158 = vsel %vm1112, %v1148, 0
    %v1161 = vsel %vm886, %v1152, 0
    %1163 = vmatprep.subr.bf16.mxu0 0
    %1164 = vmatpush1.bf16.msra.mxu0 0
    %1165 = vmatprep.subr.bf16.mxu0 0
    %1166 = vmatpush1.bf16.msra.mxu0 0
    %1167 = vmatprep.subr.bf16.mxu0 0
    %1168 = vmatpush1.bf16.msra.mxu0 0
    %1169 = vmatprep.subr.bf16.mxu0 0
    %1170 = vmatpush1.bf16.msra.mxu0 0
    %1171 = vmatprep.subr.bf16.mxu0 0
    %1172 = vmatpush1.bf16.msra.mxu0 0
    %1173 = vmatprep.subr.bf16.mxu0 0
    %1174 = vmatpush1.bf16.msra.mxu0 0
    %1175 = vmatprep.subr.bf16.mxu0 0
    %1176 = vmatpush1.bf16.msra.mxu0 %v1161
    %1177 = vmatprep.subr.bf16.mxu0 0
    %1178 = vmatpush1.bf16.msra.mxu0 %v1150
    %1179 = vmatprep.subr.bf16.mxu0 0
    %1180 = vmatpush2.bf16.msra.mxu0 0
    %1181 = vmatprep.subr.bf16.mxu0 0
    %1182 = vmatpush2.bf16.msra.mxu0 0
    %1183 = vmatprep.subr.bf16.mxu0 0
    %1184 = vmatpush2.bf16.msra.mxu0 0
    %1185 = vmatprep.subr.bf16.mxu0 0
    %1186 = vmatpush2.bf16.msra.mxu0 0
    %1187 = vmatprep.subr.bf16.mxu0 0
    %1188 = vmatpush2.bf16.msra.mxu0 0
    %1189 = vmatprep.subr.bf16.mxu0 0
    %1190 = vmatpush2.bf16.msra.mxu0 0
    %1191 = vmatprep.subr.bf16.mxu0 0
    %1192 = vmatpush2.bf16.msra.mxu0 0
    %1193 = vmatprep.subr.bf16.mxu0 0
    %1194 = vmatpush2.bf16.msra.mxu0 0
    %1195 = vmatprep.mubr.bf16.mxu0 0
    %1196 = vmatmul.mubr.bf16.gmra.mxu0 %v1155
    %v1197 = vpop.f32.mrf.mxu0
    %v1198 = vadd.f32 0.0, %v1197
    %v1199 = vpop.f32.mrf.mxu0
    %v1200 = vpop.f32.mrf.mxu0
    %v1201 = vadd.f32 0.0, %v1200
    %v1202 = vpop.f32.mrf.mxu0
    %1203 = vmatprep.mubr.bf16.mxu0 0
    %1204 = vmatmul.mubr.bf16.gmra.mxu0 %v1158
    %v1205 = vpop.f32.mrf.mxu0
    %v1206 = vadd.f32 0.0, %v1205
    %v1207 = vpop.f32.mrf.mxu0
    %v1208 = vpop.f32.mrf.mxu0
    %v1209 = vpop.f32.mrf.mxu0
    %1210 = vdwg.mxu0
    %1211 = vrot.lane.b32.xlu0 %v1044, 120
    %v1212 = vpop.permute.xlu0 %1211
    %1213 = vrot.lane.b32.xlu0 %v1045, 120
    %v1214 = vpop.permute.xlu0 %1213
    %1215 = vrot.lane.b32.xlu0 %v1044, 88
    %v1216 = vpop.permute.xlu0 %1215
    %1217 = vrot.lane.b32.xlu0 %v1045, 88
    %v1218 = vpop.permute.xlu0 %1217
    %v1220 = vsel %vm306, %v1212, 0
    %v1223 = vsel %vm306, %v1214, 0
    %v1226 = vsel %vm306, %v1216, 0
    %v1229 = vsel %vm306, %v1218, 0
    %1231 = vmatprep.subr.bf16.mxu0 0
    %1232 = vmatpush1.bf16.xpose.msra.mxu0 0
    %1233 = vmatprep.subr.bf16.mxu0 0
    %1234 = vmatpush1.bf16.xpose.msra.mxu0 0
    %1235 = vmatprep.subr.bf16.mxu0 0
    %1236 = vmatpush1.bf16.xpose.msra.mxu0 0
    %1237 = vmatprep.subr.bf16.mxu0 0
    %1238 = vmatpush1.bf16.xpose.msra.mxu0 0
    %1239 = vmatprep.subr.bf16.mxu0 0
    %1240 = vmatpush1.bf16.xpose.msra.mxu0 0
    %1241 = vmatprep.subr.bf16.mxu0 0
    %1242 = vmatpush1.bf16.xpose.msra.mxu0 0
    %1243 = vmatprep.subr.bf16.mxu0 0
    %1244 = vmatpush1.bf16.xpose.msra.mxu0 %v1229
    %1245 = vmatprep.subr.bf16.mxu0 0
    %1246 = vmatpush1.bf16.xpose.msra.mxu0 %v1226
    %1247 = vmatprep.subr.bf16.mxu0 0
    %1248 = vmatpush2.bf16.xpose.msra.mxu0 0
    %1249 = vmatprep.subr.bf16.mxu0 0
    %1250 = vmatpush2.bf16.xpose.msra.mxu0 0
    %1251 = vmatprep.subr.bf16.mxu0 0
    %1252 = vmatpush2.bf16.xpose.msra.mxu0 0
    %1253 = vmatprep.subr.bf16.mxu0 0
    %1254 = vmatpush2.bf16.xpose.msra.mxu0 0
    %1255 = vmatprep.subr.bf16.mxu0 0
    %1256 = vmatpush2.bf16.xpose.msra.mxu0 0
    %1257 = vmatprep.subr.bf16.mxu0 0
    %1258 = vmatpush2.bf16.xpose.msra.mxu0 0
    %1259 = vmatprep.subr.bf16.mxu0 0
    %1260 = vmatpush2.bf16.xpose.msra.mxu0 0
    %1261 = vmatprep.subr.bf16.mxu0 0
    %1262 = vmatpush2.bf16.xpose.msra.mxu0 0
    %1263 = vmatprep.mubr.bf16.mxu0 0
    %1264 = vmatmul.mubr.bf16.gmra.mxu0 %v1220
    %v1265 = vpop.f32.mrf.mxu0
    %v1266 = vadd.f32 %v180, %v1265
    %v1267 = vpop.f32.mrf.mxu0
    %v1268 = vpop.f32.mrf.mxu0
    %v1269 = vadd.f32 %v181, %v1268
    %v1270 = vpop.f32.mrf.mxu0
    %1271 = vmatprep.mubr.bf16.mxu0 0
    %1272 = vmatmul.mubr.bf16.gmra.mxu0 %v1223
    %v1273 = vpop.f32.mrf.mxu0
    %v1274 = vadd.f32 %v182, %v1273
    %v1275 = vpop.f32.mrf.mxu0
    %v1276 = vpop.f32.mrf.mxu0
    %v1277 = vpop.f32.mrf.mxu0
    %1278 = vdwg.mxu0
    %v1279 = vsel %vm1112, %v1266, -inf
    %1280 = vmax.xlane.f32.xlu0 %v1279
    %v1281 = vpop.xlane.xlu0 %1280
    %v1282 = vsel %vm1112, %v1269, -inf
    %1283 = vmax.xlane.f32.xlu0 %v1282
    %v1284 = vpop.xlane.xlu0 %1283
    %v1285 = vsel %vm1119, %v1274, -inf
    %1286 = vmax.xlane.f32.xlu0 %v1285
    %v1287 = vpop.xlane.xlu0 %1286
    %v1288 = vsub.f32 %v1266, %v1281
    %v1289 = vsub.f32 %v1269, %v1284
    %v1290 = vsub.f32 %v1274, %v1287
    %v1291 = vmul.f32 %v1288, 1.442695
    %v1292 = vpow.pop %v1291
    %v1293 = vmul.f32 %v1289, 1.442695
    %v1294 = vpow.pop %v1293
    %v1295 = vmul.f32 %v1290, 1.442695
    %v1296 = vpow.pop %v1295
    %v1297 = vsel %vm1112, %v1292, 0.0
    %1298 = vadd.xlane.f32.xlu0 %v1297
    %v1299 = vpop.xlane.xlu0 %1298
    %v1300 = vsel %vm1112, %v1294, 0.0
    %1301 = vadd.xlane.f32.xlu0 %v1300
    %v1302 = vpop.xlane.xlu0 %1301
    %v1303 = vsel %vm1119, %v1296, 0.0
    %1304 = vadd.xlane.f32.xlu0 %v1303
    %v1305 = vpop.xlane.xlu0 %1304
    %v1306 = vrcp.pop %v1299
    %v1307 = vrcp.pop %v1302
    %v1308 = vrcp.pop %v1305
    %v1309 = vmul.f32 %v1292, %v1306
    %v1310 = vmul.f32 %v1294, %v1307
    %v1311 = vmul.f32 %v1296, %v1308
    %v1312 = vpack.c.bf16 %v1310, %v1309
    %v1313 = vpack.c.bf16 %v1311, %v1311
    %1314 = vrot.lane.b32.xlu0 %v1044, 56
    %v1315 = vpop.permute.xlu0 %1314
    %1316 = vrot.lane.b32.xlu0 %v1045, 56
    %v1317 = vpop.permute.xlu0 %1316
    %v1320 = vsel %vm1112, %v1312, 0
    %v1323 = vsel %vm1112, %v1313, 0
    %v1326 = vsel %vm886, %v1317, 0
    %1328 = vmatprep.subr.bf16.mxu0 0
    %1329 = vmatpush1.bf16.msra.mxu0 0
    %1330 = vmatprep.subr.bf16.mxu0 0
    %1331 = vmatpush1.bf16.msra.mxu0 0
    %1332 = vmatprep.subr.bf16.mxu0 0
    %1333 = vmatpush1.bf16.msra.mxu0 0
    %1334 = vmatprep.subr.bf16.mxu0 0
    %1335 = vmatpush1.bf16.msra.mxu0 0
    %1336 = vmatprep.subr.bf16.mxu0 0
    %1337 = vmatpush1.bf16.msra.mxu0 0
    %1338 = vmatprep.subr.bf16.mxu0 0
    %1339 = vmatpush1.bf16.msra.mxu0 0
    %1340 = vmatprep.subr.bf16.mxu0 0
    %1341 = vmatpush1.bf16.msra.mxu0 %v1326
    %1342 = vmatprep.subr.bf16.mxu0 0
    %1343 = vmatpush1.bf16.msra.mxu0 %v1315
    %1344 = vmatprep.subr.bf16.mxu0 0
    %1345 = vmatpush2.bf16.msra.mxu0 0
    %1346 = vmatprep.subr.bf16.mxu0 0
    %1347 = vmatpush2.bf16.msra.mxu0 0
    %1348 = vmatprep.subr.bf16.mxu0 0
    %1349 = vmatpush2.bf16.msra.mxu0 0
    %1350 = vmatprep.subr.bf16.mxu0 0
    %1351 = vmatpush2.bf16.msra.mxu0 0
    %1352 = vmatprep.subr.bf16.mxu0 0
    %1353 = vmatpush2.bf16.msra.mxu0 0
    %1354 = vmatprep.subr.bf16.mxu0 0
    %1355 = vmatpush2.bf16.msra.mxu0 0
    %1356 = vmatprep.subr.bf16.mxu0 0
    %1357 = vmatpush2.bf16.msra.mxu0 0
    %1358 = vmatprep.subr.bf16.mxu0 0
    %1359 = vmatpush2.bf16.msra.mxu0 0
    %1360 = vmatprep.mubr.bf16.mxu0 0
    %1361 = vmatmul.mubr.bf16.gmra.mxu0 %v1320
    %v1362 = vpop.f32.mrf.mxu0
    %v1363 = vadd.f32 0.0, %v1362
    %v1364 = vpop.f32.mrf.mxu0
    %v1365 = vpop.f32.mrf.mxu0
    %v1366 = vadd.f32 0.0, %v1365
    %v1367 = vpop.f32.mrf.mxu0
    %1368 = vmatprep.mubr.bf16.mxu0 0
    %1369 = vmatmul.mubr.bf16.gmra.mxu0 %v1323
    %v1370 = vpop.f32.mrf.mxu0
    %v1371 = vadd.f32 0.0, %v1370
    %v1372 = vpop.f32.mrf.mxu0
    %v1373 = vpop.f32.mrf.mxu0
    %v1374 = vpop.f32.mrf.mxu0
    %1375 = vdwg.mxu0
    %1376 = vrot.lane.b32.xlu0 %v1044, 112
    %v1377 = vpop.permute.xlu0 %1376
    %1378 = vrot.lane.b32.xlu0 %v1045, 112
    %v1379 = vpop.permute.xlu0 %1378
    %1380 = vrot.lane.b32.xlu0 %v1044, 80
    %v1381 = vpop.permute.xlu0 %1380
    %1382 = vrot.lane.b32.xlu0 %v1045, 80
    %v1383 = vpop.permute.xlu0 %1382
    %v1385 = vsel %vm306, %v1377, 0
    %v1388 = vsel %vm306, %v1379, 0
    %v1391 = vsel %vm306, %v1381, 0
    %v1394 = vsel %vm306, %v1383, 0
    %1396 = vmatprep.subr.bf16.mxu0 0
    %1397 = vmatpush1.bf16.xpose.msra.mxu0 0
    %1398 = vmatprep.subr.bf16.mxu0 0
    %1399 = vmatpush1.bf16.xpose.msra.mxu0 0
    %1400 = vmatprep.subr.bf16.mxu0 0
    %1401 = vmatpush1.bf16.xpose.msra.mxu0 0
    %1402 = vmatprep.subr.bf16.mxu0 0
    %1403 = vmatpush1.bf16.xpose.msra.mxu0 0
    %1404 = vmatprep.subr.bf16.mxu0 0
    %1405 = vmatpush1.bf16.xpose.msra.mxu0 0
    %1406 = vmatprep.subr.bf16.mxu0 0
    %1407 = vmatpush1.bf16.xpose.msra.mxu0 0
    %1408 = vmatprep.subr.bf16.mxu0 0
    %1409 = vmatpush1.bf16.xpose.msra.mxu0 %v1394
    %1410 = vmatprep.subr.bf16.mxu0 0
    %1411 = vmatpush1.bf16.xpose.msra.mxu0 %v1391
    %1412 = vmatprep.subr.bf16.mxu0 0
    %1413 = vmatpush2.bf16.xpose.msra.mxu0 0
    %1414 = vmatprep.subr.bf16.mxu0 0
    %1415 = vmatpush2.bf16.xpose.msra.mxu0 0
    %1416 = vmatprep.subr.bf16.mxu0 0
    %1417 = vmatpush2.bf16.xpose.msra.mxu0 0
    %1418 = vmatprep.subr.bf16.mxu0 0
    %1419 = vmatpush2.bf16.xpose.msra.mxu0 0
    %1420 = vmatprep.subr.bf16.mxu0 0
    %1421 = vmatpush2.bf16.xpose.msra.mxu0 0
    %1422 = vmatprep.subr.bf16.mxu0 0
    %1423 = vmatpush2.bf16.xpose.msra.mxu0 0
    %1424 = vmatprep.subr.bf16.mxu0 0
    %1425 = vmatpush2.bf16.xpose.msra.mxu0 0
    %1426 = vmatprep.subr.bf16.mxu0 0
    %1427 = vmatpush2.bf16.xpose.msra.mxu0 0
    %1428 = vmatprep.mubr.bf16.mxu0 0
    %1429 = vmatmul.mubr.bf16.gmra.mxu0 %v1385
    %v1430 = vpop.f32.mrf.mxu0
    %v1431 = vadd.f32 %v180, %v1430
    %v1432 = vpop.f32.mrf.mxu0
    %v1433 = vpop.f32.mrf.mxu0
    %v1434 = vadd.f32 %v181, %v1433
    %v1435 = vpop.f32.mrf.mxu0
    %1436 = vmatprep.mubr.bf16.mxu0 0
    %1437 = vmatmul.mubr.bf16.gmra.mxu0 %v1388
    %v1438 = vpop.f32.mrf.mxu0
    %v1439 = vadd.f32 %v182, %v1438
    %v1440 = vpop.f32.mrf.mxu0
    %v1441 = vpop.f32.mrf.mxu0
    %v1442 = vpop.f32.mrf.mxu0
    %1443 = vdwg.mxu0
    %v1444 = vsel %vm1112, %v1431, -inf
    %1445 = vmax.xlane.f32.xlu0 %v1444
    %v1446 = vpop.xlane.xlu0 %1445
    %v1447 = vsel %vm1112, %v1434, -inf
    %1448 = vmax.xlane.f32.xlu0 %v1447
    %v1449 = vpop.xlane.xlu0 %1448
    %v1450 = vsel %vm1119, %v1439, -inf
    %1451 = vmax.xlane.f32.xlu0 %v1450
    %v1452 = vpop.xlane.xlu0 %1451
    %v1453 = vsub.f32 %v1431, %v1446
    %v1454 = vsub.f32 %v1434, %v1449
    %v1455 = vsub.f32 %v1439, %v1452
    %v1456 = vmul.f32 %v1453, 1.442695
    %v1457 = vpow.pop %v1456
    %v1458 = vmul.f32 %v1454, 1.442695
    %v1459 = vpow.pop %v1458
    %v1460 = vmul.f32 %v1455, 1.442695
    %v1461 = vpow.pop %v1460
    %v1462 = vsel %vm1112, %v1457, 0.0
    %1463 = vadd.xlane.f32.xlu0 %v1462
    %v1464 = vpop.xlane.xlu0 %1463
    %v1465 = vsel %vm1112, %v1459, 0.0
    %1466 = vadd.xlane.f32.xlu0 %v1465
    %v1467 = vpop.xlane.xlu0 %1466
    %v1468 = vsel %vm1119, %v1461, 0.0
    %1469 = vadd.xlane.f32.xlu0 %v1468
    %v1470 = vpop.xlane.xlu0 %1469
    %v1471 = vrcp.pop %v1464
    %v1472 = vrcp.pop %v1467
    %v1473 = vrcp.pop %v1470
    %v1474 = vmul.f32 %v1457, %v1471
    %v1475 = vmul.f32 %v1459, %v1472
    %v1476 = vmul.f32 %v1461, %v1473
    %v1477 = vpack.c.bf16 %v1475, %v1474
    %v1478 = vpack.c.bf16 %v1476, %v1476
    %1479 = vrot.lane.b32.xlu0 %v1044, 48
    %v1480 = vpop.permute.xlu0 %1479
    %1481 = vrot.lane.b32.xlu0 %v1045, 48
    %v1482 = vpop.permute.xlu0 %1481
    %v1485 = vsel %vm1112, %v1477, 0
    %v1488 = vsel %vm1112, %v1478, 0
    %v1491 = vsel %vm886, %v1482, 0
    %1493 = vmatprep.subr.bf16.mxu0 0
    %1494 = vmatpush1.bf16.msra.mxu0 0
    %1495 = vmatprep.subr.bf16.mxu0 0
    %1496 = vmatpush1.bf16.msra.mxu0 0
    %1497 = vmatprep.subr.bf16.mxu0 0
    %1498 = vmatpush1.bf16.msra.mxu0 0
    %1499 = vmatprep.subr.bf16.mxu0 0
    %1500 = vmatpush1.bf16.msra.mxu0 0
    %1501 = vmatprep.subr.bf16.mxu0 0
    %1502 = vmatpush1.bf16.msra.mxu0 0
    %1503 = vmatprep.subr.bf16.mxu0 0
    %1504 = vmatpush1.bf16.msra.mxu0 0
    %1505 = vmatprep.subr.bf16.mxu0 0
    %1506 = vmatpush1.bf16.msra.mxu0 %v1491
    %1507 = vmatprep.subr.bf16.mxu0 0
    %1508 = vmatpush1.bf16.msra.mxu0 %v1480
    %1509 = vmatprep.subr.bf16.mxu0 0
    %1510 = vmatpush2.bf16.msra.mxu0 0
    %1511 = vmatprep.subr.bf16.mxu0 0
    %1512 = vmatpush2.bf16.msra.mxu0 0
    %1513 = vmatprep.subr.bf16.mxu0 0
    %1514 = vmatpush2.bf16.msra.mxu0 0
    %1515 = vmatprep.subr.bf16.mxu0 0
    %1516 = vmatpush2.bf16.msra.mxu0 0
    %1517 = vmatprep.subr.bf16.mxu0 0
    %1518 = vmatpush2.bf16.msra.mxu0 0
    %1519 = vmatprep.subr.bf16.mxu0 0
    %1520 = vmatpush2.bf16.msra.mxu0 0
    %1521 = vmatprep.subr.bf16.mxu0 0
    %1522 = vmatpush2.bf16.msra.mxu0 0
    %1523 = vmatprep.subr.bf16.mxu0 0
    %1524 = vmatpush2.bf16.msra.mxu0 0
    %1525 = vmatprep.mubr.bf16.mxu0 0
    %1526 = vmatmul.mubr.bf16.gmra.mxu0 %v1485
    %v1527 = vpop.f32.mrf.mxu0
    %v1528 = vadd.f32 0.0, %v1527
    %v1529 = vpop.f32.mrf.mxu0
    %v1530 = vpop.f32.mrf.mxu0
    %v1531 = vadd.f32 0.0, %v1530
    %v1532 = vpop.f32.mrf.mxu0
    %1533 = vmatprep.mubr.bf16.mxu0 0
    %1534 = vmatmul.mubr.bf16.gmra.mxu0 %v1488
    %v1535 = vpop.f32.mrf.mxu0
    %v1536 = vadd.f32 0.0, %v1535
    %v1537 = vpop.f32.mrf.mxu0
    %v1538 = vpop.f32.mrf.mxu0
    %v1539 = vpop.f32.mrf.mxu0
    %1540 = vdwg.mxu0
    %1541 = vrot.lane.b32.xlu0 %v1044, 104
    %v1542 = vpop.permute.xlu0 %1541
    %1543 = vrot.lane.b32.xlu0 %v1045, 104
    %v1544 = vpop.permute.xlu0 %1543
    %1545 = vrot.lane.b32.xlu0 %v1044, 72
    %v1546 = vpop.permute.xlu0 %1545
    %1547 = vrot.lane.b32.xlu0 %v1045, 72
    %v1548 = vpop.permute.xlu0 %1547
    %v1550 = vsel %vm306, %v1542, 0
    %v1553 = vsel %vm306, %v1544, 0
    %v1556 = vsel %vm306, %v1546, 0
    %v1559 = vsel %vm306, %v1548, 0
    %1561 = vmatprep.subr.bf16.mxu0 0
    %1562 = vmatpush1.bf16.xpose.msra.mxu0 0
    %1563 = vmatprep.subr.bf16.mxu0 0
    %1564 = vmatpush1.bf16.xpose.msra.mxu0 0
    %1565 = vmatprep.subr.bf16.mxu0 0
    %1566 = vmatpush1.bf16.xpose.msra.mxu0 0
    %1567 = vmatprep.subr.bf16.mxu0 0
    %1568 = vmatpush1.bf16.xpose.msra.mxu0 0
    %1569 = vmatprep.subr.bf16.mxu0 0
    %1570 = vmatpush1.bf16.xpose.msra.mxu0 0
    %1571 = vmatprep.subr.bf16.mxu0 0
    %1572 = vmatpush1.bf16.xpose.msra.mxu0 0
    %1573 = vmatprep.subr.bf16.mxu0 0
    %1574 = vmatpush1.bf16.xpose.msra.mxu0 %v1559
    %1575 = vmatprep.subr.bf16.mxu0 0
    %1576 = vmatpush1.bf16.xpose.msra.mxu0 %v1556
    %1577 = vmatprep.subr.bf16.mxu0 0
    %1578 = vmatpush2.bf16.xpose.msra.mxu0 0
    %1579 = vmatprep.subr.bf16.mxu0 0
    %1580 = vmatpush2.bf16.xpose.msra.mxu0 0
    %1581 = vmatprep.subr.bf16.mxu0 0
    %1582 = vmatpush2.bf16.xpose.msra.mxu0 0
    %1583 = vmatprep.subr.bf16.mxu0 0
    %1584 = vmatpush2.bf16.xpose.msra.mxu0 0
    %1585 = vmatprep.subr.bf16.mxu0 0
    %1586 = vmatpush2.bf16.xpose.msra.mxu0 0
    %1587 = vmatprep.subr.bf16.mxu0 0
    %1588 = vmatpush2.bf16.xpose.msra.mxu0 0
    %1589 = vmatprep.subr.bf16.mxu0 0
    %1590 = vmatpush2.bf16.xpose.msra.mxu0 0
    %1591 = vmatprep.subr.bf16.mxu0 0
    %1592 = vmatpush2.bf16.xpose.msra.mxu0 0
    %1593 = vmatprep.mubr.bf16.mxu0 0
    %1594 = vmatmul.mubr.bf16.gmra.mxu0 %v1550
    %v1595 = vpop.f32.mrf.mxu0
    %v1596 = vadd.f32 %v180, %v1595
    %v1597 = vpop.f32.mrf.mxu0
    %v1598 = vpop.f32.mrf.mxu0
    %v1599 = vadd.f32 %v181, %v1598
    %v1600 = vpop.f32.mrf.mxu0
    %1601 = vmatprep.mubr.bf16.mxu0 0
    %1602 = vmatmul.mubr.bf16.gmra.mxu0 %v1553
    %v1603 = vpop.f32.mrf.mxu0
    %v1604 = vadd.f32 %v182, %v1603
    %v1605 = vpop.f32.mrf.mxu0
    %v1606 = vpop.f32.mrf.mxu0
    %v1607 = vpop.f32.mrf.mxu0
    %1608 = vdwg.mxu0
    %v1609 = vsel %vm1112, %v1596, -inf
    %1610 = vmax.xlane.f32.xlu0 %v1609
    %v1611 = vpop.xlane.xlu0 %1610
    %v1612 = vsel %vm1112, %v1599, -inf
    %1613 = vmax.xlane.f32.xlu0 %v1612
    %v1614 = vpop.xlane.xlu0 %1613
    %v1615 = vsel %vm1119, %v1604, -inf
    %1616 = vmax.xlane.f32.xlu0 %v1615
    %v1617 = vpop.xlane.xlu0 %1616
    %v1618 = vsub.f32 %v1596, %v1611
    %v1619 = vsub.f32 %v1599, %v1614
    %v1620 = vsub.f32 %v1604, %v1617
    %v1621 = vmul.f32 %v1618, 1.442695
    %v1622 = vpow.pop %v1621
    %v1623 = vmul.f32 %v1619, 1.442695
    %v1624 = vpow.pop %v1623
    %v1625 = vmul.f32 %v1620, 1.442695
    %v1626 = vpow.pop %v1625
    %v1627 = vsel %vm1112, %v1622, 0.0
    %1628 = vadd.xlane.f32.xlu0 %v1627
    %v1629 = vpop.xlane.xlu0 %1628
    %v1630 = vsel %vm1112, %v1624, 0.0
    %1631 = vadd.xlane.f32.xlu0 %v1630
    %v1632 = vpop.xlane.xlu0 %1631
    %v1633 = vsel %vm1119, %v1626, 0.0
    %1634 = vadd.xlane.f32.xlu0 %v1633
    %v1635 = vpop.xlane.xlu0 %1634
    %v1636 = vrcp.pop %v1629
    %v1637 = vrcp.pop %v1632
    %v1638 = vrcp.pop %v1635
    %v1639 = vmul.f32 %v1622, %v1636
    %v1640 = vmul.f32 %v1624, %v1637
    %v1641 = vmul.f32 %v1626, %v1638
    %v1642 = vpack.c.bf16 %v1640, %v1639
    %v1643 = vpack.c.bf16 %v1641, %v1641
    %1644 = vrot.lane.b32.xlu0 %v1044, 40
    %v1645 = vpop.permute.xlu0 %1644
    %1646 = vrot.lane.b32.xlu0 %v1045, 40
    %v1647 = vpop.permute.xlu0 %1646
    %v1650 = vsel %vm1112, %v1642, 0
    %v1653 = vsel %vm1112, %v1643, 0
    %v1656 = vsel %vm886, %v1647, 0
    %1658 = vmatprep.subr.bf16.mxu0 0
    %1659 = vmatpush1.bf16.msra.mxu0 0
    %1660 = vmatprep.subr.bf16.mxu0 0
    %1661 = vmatpush1.bf16.msra.mxu0 0
    %1662 = vmatprep.subr.bf16.mxu0 0
    %1663 = vmatpush1.bf16.msra.mxu0 0
    %1664 = vmatprep.subr.bf16.mxu0 0
    %1665 = vmatpush1.bf16.msra.mxu0 0
    %1666 = vmatprep.subr.bf16.mxu0 0
    %1667 = vmatpush1.bf16.msra.mxu0 0
    %1668 = vmatprep.subr.bf16.mxu0 0
    %1669 = vmatpush1.bf16.msra.mxu0 0
    %1670 = vmatprep.subr.bf16.mxu0 0
    %1671 = vmatpush1.bf16.msra.mxu0 %v1656
    %1672 = vmatprep.subr.bf16.mxu0 0
    %1673 = vmatpush1.bf16.msra.mxu0 %v1645
    %1674 = vmatprep.subr.bf16.mxu0 0
    %1675 = vmatpush2.bf16.msra.mxu0 0
    %1676 = vmatprep.subr.bf16.mxu0 0
    %1677 = vmatpush2.bf16.msra.mxu0 0
    %1678 = vmatprep.subr.bf16.mxu0 0
    %1679 = vmatpush2.bf16.msra.mxu0 0
    %1680 = vmatprep.subr.bf16.mxu0 0
    %1681 = vmatpush2.bf16.msra.mxu0 0
    %1682 = vmatprep.subr.bf16.mxu0 0
    %1683 = vmatpush2.bf16.msra.mxu0 0
    %1684 = vmatprep.subr.bf16.mxu0 0
    %1685 = vmatpush2.bf16.msra.mxu0 0
    %1686 = vmatprep.subr.bf16.mxu0 0
    %1687 = vmatpush2.bf16.msra.mxu0 0
    %1688 = vmatprep.subr.bf16.mxu0 0
    %1689 = vmatpush2.bf16.msra.mxu0 0
    %1690 = vmatprep.mubr.bf16.mxu0 0
    %1691 = vmatmul.mubr.bf16.gmra.mxu0 %v1650
    %v1692 = vpop.f32.mrf.mxu0
    %v1693 = vadd.f32 0.0, %v1692
    %v1694 = vpop.f32.mrf.mxu0
    %v1695 = vpop.f32.mrf.mxu0
    %v1696 = vadd.f32 0.0, %v1695
    %v1697 = vpop.f32.mrf.mxu0
    %1698 = vmatprep.mubr.bf16.mxu0 0
    %1699 = vmatmul.mubr.bf16.gmra.mxu0 %v1653
    %v1700 = vpop.f32.mrf.mxu0
    %v1701 = vadd.f32 0.0, %v1700
    %v1702 = vpop.f32.mrf.mxu0
    %v1703 = vpop.f32.mrf.mxu0
    %v1704 = vpop.f32.mrf.mxu0
    %1705 = vdwg.mxu0
    %1709 = vrot.lane.b32.xlu0 %v1363, 8
    %v1710 = vpop.permute.xlu0 %1709
    %1711 = vrot.lane.b32.xlu0 %v1366, 8
    %v1712 = vpop.permute.xlu0 %1711
    %1713 = vrot.lane.b32.xlu0 %v1371, 8
    %v1714 = vpop.permute.xlu0 %1713
    %1721 = vrot.lane.b32.xlu0 %v1528, 16
    %v1722 = vpop.permute.xlu0 %1721
    %1723 = vrot.lane.b32.xlu0 %v1531, 16
    %v1724 = vpop.permute.xlu0 %1723
    %1725 = vrot.lane.b32.xlu0 %v1536, 16
    %v1726 = vpop.permute.xlu0 %1725
    %1733 = vrot.lane.b32.xlu0 %v1693, 24
    %v1734 = vpop.permute.xlu0 %1733
    %1735 = vrot.lane.b32.xlu0 %v1696, 24
    %v1736 = vpop.permute.xlu0 %1735
    %1737 = vrot.lane.b32.xlu0 %v1701, 24
    %v1738 = vpop.permute.xlu0 %1737
    %v1742 = vsel %vm306, %v1198, %v1710
    %v1743 = vsel %vm306, %v1201, %v1712
    %v1744 = vsel %vm306, %v1206, %v1714
    %v1745 = vsel %vm354, %v1742, %v1722
    %v1746 = vsel %vm354, %v1743, %v1724
    %v1747 = vsel %vm354, %v1744, %v1726
    %v1748 = vsel %vm816, %v1745, %v1734
    %v1749 = vsel %vm816, %v1746, %v1736
    %v1750 = vsel %vm816, %v1747, %v1738
    %v1751 = vpack.c.bf16 %v1749, %v1748
    %v1752 = vpack.c.bf16 %v1750, %v1750
    %v1754 = vlaneseq
    %v1755 = vshrl.u32 %v1754, 7
    %v1756 = vsub.s32 0, %v1755
    %v1757 = vrot.slane %v1043, %v1756
    %v1763 = vunpack.c.l.b16 %v1039
    %v1764 = vunpack.c.l.b16 %v1040
    %v1765 = vunpack.c.l.b16 %v1041
    %v1766 = vunpack.c.l.b16 %v1042
    %v1767 = vpack.c.b16 %v1764, %v1763
    %v1768 = vpack.c.b16 %v1766, %v1765
    %v1772 = vsel %vm185, %v1751, 0
    %v1775 = vsel %vm185, %v1752, 0
    %1777 = vmatprep.subr.bf16.mxu0 0
    %1778 = vmatpush1.bf16.msra.mxu0 0
    %1779 = vmatprep.subr.bf16.mxu0 0
    %1780 = vmatpush1.bf16.msra.mxu0 0
    %1781 = vmatprep.subr.bf16.mxu0 0
    %1782 = vmatpush1.bf16.msra.mxu0 0
    %1783 = vmatprep.subr.bf16.mxu0 0
    %1784 = vmatpush1.bf16.msra.mxu0 0
    %1785 = vmatprep.subr.bf16.mxu0 0
    %1786 = vmatpush1.bf16.msra.mxu0 0
    %1787 = vmatprep.subr.bf16.mxu0 0
    %1788 = vmatpush1.bf16.msra.mxu0 0
    %1789 = vmatprep.subr.bf16.mxu0 0
    %1790 = vmatpush1.bf16.msra.mxu0 %v1768
    %1791 = vmatprep.subr.bf16.mxu0 0
    %1792 = vmatpush1.bf16.msra.mxu0 %v1767
    %1793 = vmatprep.subr.bf16.mxu0 0
    %1794 = vmatpush2.bf16.msra.mxu0 0
    %1795 = vmatprep.subr.bf16.mxu0 0
    %1796 = vmatpush2.bf16.msra.mxu0 0
    %1797 = vmatprep.subr.bf16.mxu0 0
    %1798 = vmatpush2.bf16.msra.mxu0 0
    %1799 = vmatprep.subr.bf16.mxu0 0
    %1800 = vmatpush2.bf16.msra.mxu0 0
    %1801 = vmatprep.subr.bf16.mxu0 0
    %1802 = vmatpush2.bf16.msra.mxu0 0
    %1803 = vmatprep.subr.bf16.mxu0 0
    %1804 = vmatpush2.bf16.msra.mxu0 0
    %1805 = vmatprep.subr.bf16.mxu0 0
    %1806 = vmatpush2.bf16.msra.mxu0 0
    %1807 = vmatprep.subr.bf16.mxu0 0
    %1808 = vmatpush2.bf16.msra.mxu0 0
    %1809 = vmatprep.mubr.bf16.mxu0 0
    %1810 = vmatmul.mubr.bf16.gmra.mxu0 %v1772
    %v1811 = vpop.f32.mrf.mxu0
    %v1812 = vadd.f32 %v1757, %v1811
    %v1813 = vpop.f32.mrf.mxu0
    %v1814 = vpop.f32.mrf.mxu0
    %v1815 = vadd.f32 %v1757, %v1814
    %v1816 = vpop.f32.mrf.mxu0
    %1817 = vmatprep.mubr.bf16.mxu0 0
    %1818 = vmatmul.mubr.bf16.gmra.mxu0 %v1775
    %v1819 = vpop.f32.mrf.mxu0
    %v1820 = vadd.f32 %v1757, %v1819
    %v1821 = vpop.f32.mrf.mxu0
    %v1822 = vpop.f32.mrf.mxu0
    %v1823 = vpop.f32.mrf.mxu0
    %1824 = vdwg.mxu0
    %v1826 = vrot.slane %v1812, 1
    %v1828 = vadd.f32 %v1812, %v1826
    %v1829 = vmul.f32 %v1828, 0.5
    %v1831 = vrot.slane %v1829, 1
    %v1833 = vsel %vm884, %v1829, %v1831
    %v1834 = vadd.f32 %v176, %v1833
    %v1837 = vrot.slane %v1812, 4
    %v1838 = vrot.slane %v1815, 4
    %v1839 = vsel %vm892, %v1837, %v1838
    %v1840 = vrot.slane %v1820, 4
    %v1841 = vsel %vm892, %v1838, %v1840
    %v1844 = vadd.f32 %v882, %v1839
    %v1845 = vadd.f32 %v883, %v1841
    %v1848 = vrot.slane %v1844, 6
    %v1849 = vrot.slane %v1845, 6
    %v1850 = vsel %vm886, %v1848, %v1849
    %v1854 = vsel %vm886, %v1834, %v1848
    %v1855 = vld [vmem:[%s19] sm:$0x1]
    %v1856 = vld [vmem:[%s20] sm:$0x1]
    %v1857 = vsel %vm185, %v1854, 0.0
    %1858 = vadd.xlane.f32.xlu0 %v1857
    %v1859 = vpop.xlane.xlu0 %1858
    %v1860 = vsel %vm185, %v1850, 0.0
    %1861 = vadd.xlane.f32.xlu0 %v1860
    %v1862 = vpop.xlane.xlu0 %1861
    %vm1863 = vcmask 254976
    %v1864 = vsel %vm1863, %v1849, 0.0
    %1865 = vadd.xlane.f32.xlu0 %v1864
    %v1866 = vpop.xlane.xlu0 %1865
    %v1867 = vmul.f32 %v1859, %v192
    %v1868 = vmul.f32 %v1862, %v192
    %v1869 = vmul.f32 %v1866, %v192
    %v1870 = vsub.f32 %v1854, %v1867
    %v1871 = vsub.f32 %v1850, %v1868
    %v1872 = vsub.f32 %v1849, %v1869
    %v1873 = vmul.f32 %v1870, %v1870
    %v1874 = vmul.f32 %v1871, %v1871
    %v1875 = vmul.f32 %v1872, %v1872
    %v1876 = vsel %vm185, %v1873, 0.0
    %1877 = vadd.xlane.f32.xlu0 %v1876
    %v1878 = vpop.xlane.xlu0 %1877
    %v1879 = vsel %vm185, %v1874, 0.0
    %1880 = vadd.xlane.f32.xlu0 %v1879
    %v1881 = vpop.xlane.xlu0 %1880
    %v1882 = vsel %vm1863, %v1875, 0.0
    %1883 = vadd.xlane.f32.xlu0 %v1882
    %v1884 = vpop.xlane.xlu0 %1883
    %v1885 = vmul.f32 %v1878, %v192
    %v1886 = vmul.f32 %v1881, %v192
    %v1887 = vmul.f32 %v1884, %v192
    %v1888 = vadd.f32 %v1885, 1e-05
    %v1889 = vadd.f32 %v1886, 1e-05
    %v1890 = vadd.f32 %v1887, 1e-05
    %v1891 = vrsqrt.pop %v1888
    %v1892 = vrsqrt.pop %v1889
    %v1893 = vrsqrt.pop %v1890
    %v1894 = vmul.f32 %v1870, %v1891
    %v1895 = vmul.f32 %v1871, %v1892
    %v1896 = vmul.f32 %v1872, %v1893
    %v1898 = vlaneseq
    %v1899 = vshrl.u32 %v1898, 7
    %v1900 = vsub.s32 0, %v1899
    %v1901 = vrot.slane %v1855, %v1900
    %v1903 = vmul.f32 %v1894, %v1901
    %v1904 = vmul.f32 %v1895, %v1901
    %v1905 = vmul.f32 %v1896, %v1901
    %v1907 = vlaneseq
    %v1908 = vshrl.u32 %v1907, 7
    %v1909 = vsub.s32 0, %v1908
    %v1910 = vrot.slane %v1856, %v1909
    %v1912 = vadd.f32 %v1903, %v1910
    %v1913 = vadd.f32 %v1904, %v1910
    %v1914 = vadd.f32 %v1905, %v1910
    %v1915 = vld [vmem:[%s21] sm:$0xf]
    %v1916 = vld [vmem:[%s21 + $0x4] sm:$0xf]
    %v1917 = vld [vmem:[%s21 + $0x8] sm:$0xf]
    %v1918 = vld [vmem:[%s21 + $0xc] sm:$0xf]
    %v1919 = vld [vmem:[%s22] sm:$0x1]
    %v1920 = vpack.c.bf16 %v1913, %v1912
    %v1921 = vpack.c.bf16 %v1914, %v1914
    %v1923 = vlaneseq
    %v1924 = vshrl.u32 %v1923, 7
    %v1925 = vsub.s32 0, %v1924
    %v1926 = vrot.slane %v1919, %v1925
    %v1932 = vunpack.c.l.b16 %v1915
    %v1933 = vunpack.c.l.b16 %v1916
    %v1934 = vunpack.c.l.b16 %v1917
    %v1935 = vunpack.c.l.b16 %v1918
    %v1936 = vpack.c.b16 %v1933, %v1932
    %v1937 = vpack.c.b16 %v1935, %v1934
    %v1941 = vsel %vm185, %v1920, 0
    %v1944 = vsel %vm185, %v1921, 0
    %1946 = vmatprep.subr.bf16.mxu0 0
    %1947 = vmatpush1.bf16.msra.mxu0 0
    %1948 = vmatprep.subr.bf16.mxu0 0
    %1949 = vmatpush1.bf16.msra.mxu0 0
    %1950 = vmatprep.subr.bf16.mxu0 0
    %1951 = vmatpush1.bf16.msra.mxu0 0
    %1952 = vmatprep.subr.bf16.mxu0 0
    %1953 = vmatpush1.bf16.msra.mxu0 0
    %1954 = vmatprep.subr.bf16.mxu0 0
    %1955 = vmatpush1.bf16.msra.mxu0 0
    %1956 = vmatprep.subr.bf16.mxu0 0
    %1957 = vmatpush1.bf16.msra.mxu0 0
    %1958 = vmatprep.subr.bf16.mxu0 0
    %1959 = vmatpush1.bf16.msra.mxu0 %v1937
    %1960 = vmatprep.subr.bf16.mxu0 0
    %1961 = vmatpush1.bf16.msra.mxu0 %v1936
    %1962 = vmatprep.subr.bf16.mxu0 0
    %1963 = vmatpush2.bf16.msra.mxu0 0
    %1964 = vmatprep.subr.bf16.mxu0 0
    %1965 = vmatpush2.bf16.msra.mxu0 0
    %1966 = vmatprep.subr.bf16.mxu0 0
    %1967 = vmatpush2.bf16.msra.mxu0 0
    %1968 = vmatprep.subr.bf16.mxu0 0
    %1969 = vmatpush2.bf16.msra.mxu0 0
    %1970 = vmatprep.subr.bf16.mxu0 0
    %1971 = vmatpush2.bf16.msra.mxu0 0
    %1972 = vmatprep.subr.bf16.mxu0 0
    %1973 = vmatpush2.bf16.msra.mxu0 0
    %1974 = vmatprep.subr.bf16.mxu0 0
    %1975 = vmatpush2.bf16.msra.mxu0 0
    %1976 = vmatprep.subr.bf16.mxu0 0
    %1977 = vmatpush2.bf16.msra.mxu0 0
    %1978 = vmatprep.mubr.bf16.mxu0 0
    %1979 = vmatmul.mubr.bf16.gmra.mxu0 %v1941
    %v1980 = vpop.f32.mrf.mxu0
    %v1981 = vadd.f32 %v1926, %v1980
    %v1982 = vpop.f32.mrf.mxu0
    %v1983 = vpop.f32.mrf.mxu0
    %v1984 = vadd.f32 %v1926, %v1983
    %v1985 = vpop.f32.mrf.mxu0
    %1986 = vmatprep.mubr.bf16.mxu0 0
    %1987 = vmatmul.mubr.bf16.gmra.mxu0 %v1944
    %v1988 = vpop.f32.mrf.mxu0
    %v1989 = vadd.f32 %v1926, %v1988
    %v1990 = vpop.f32.mrf.mxu0
    %v1991 = vpop.f32.mrf.mxu0
    %v1992 = vpop.f32.mrf.mxu0
    %1993 = vdwg.mxu0
    %v1994 = vmul.f32 %v1981, 0.5
    %v1995 = vmul.f32 %v1984, 0.5
    %v1996 = vmul.f32 %v1989, 0.5
    %v1997 = vmul.f32 %v1981, 0.044715
    %v1998 = vmul.f32 %v1984, 0.044715
    %v1999 = vmul.f32 %v1989, 0.044715
    %v2000 = vmul.f32 %v1997, %v1981
    %v2001 = vmul.f32 %v1998, %v1984
    %v2002 = vmul.f32 %v1999, %v1989
    %v2003 = vmul.f32 %v2000, %v1981
    %v2004 = vmul.f32 %v2001, %v1984
    %v2005 = vmul.f32 %v2002, %v1989
    %v2006 = vadd.f32 %v1981, %v2003
    %v2007 = vadd.f32 %v1984, %v2004
    %v2008 = vadd.f32 %v1989, %v2005
    %v2009 = vmul.f32 %v2006, 0.7978846
    %v2010 = vmul.f32 %v2007, 0.7978846
    %v2011 = vmul.f32 %v2008, 0.7978846
    %v2012 = vtanh.pop %v2009
    %v2013 = vtanh.pop %v2010
    %v2014 = vtanh.pop %v2011
    %v2015 = vadd.f32 %v2012, 1.0
    %v2016 = vadd.f32 %v2013, 1.0
    %v2017 = vadd.f32 %v2014, 1.0
    %v2018 = vmul.f32 %v1994, %v2015
    %v2019 = vmul.f32 %v1995, %v2016
    %v2020 = vmul.f32 %v1996, %v2017
    %v2021 = vld [vmem:[%s23] sm:$0xf]
    %v2022 = vld [vmem:[%s23 + $0x4] sm:$0xf]
    %v2023 = vld [vmem:[%s23 + $0x8] sm:$0xf]
    %v2024 = vld [vmem:[%s23 + $0xc] sm:$0xf]
    %v2025 = vld [vmem:[%s23 + $0x10] sm:$0xf]
    %v2026 = vld [vmem:[%s23 + $0x14] sm:$0xf]
    %v2027 = vld [vmem:[%s23 + $0x18] sm:$0xf]
    %v2028 = vld [vmem:[%s23 + $0x1c] sm:$0xf]
    %v2029 = vld [vmem:[%s23 + $0x20] sm:$0xf]
    %v2030 = vld [vmem:[%s23 + $0x24] sm:$0xf]
    %v2031 = vld [vmem:[%s23 + $0x28] sm:$0xf]
    %v2032 = vld [vmem:[%s23 + $0x2c] sm:$0xf]
    %v2033 = vld [vmem:[%s23 + $0x30] sm:$0xf]
    %v2034 = vld [vmem:[%s23 + $0x34] sm:$0xf]
    %v2035 = vld [vmem:[%s23 + $0x38] sm:$0xf]
    %v2036 = vld [vmem:[%s23 + $0x3c] sm:$0xf]
    %v2037 = vld [vmem:[%s24] sm:$0x1]
    %v2038 = vpack.c.bf16 %v2019, %v2018
    %v2039 = vpack.c.bf16 %v2020, %v2020
    %v2041 = vlaneseq
    %v2042 = vshrl.u32 %v2041, 7
    %v2043 = vsub.s32 0, %v2042
    %v2044 = vrot.slane %v2037, %v2043
    %v2062 = vunpack.c.l.b16 %v2021
    %v2063 = vunpack.c.l.b16 %v2022
    %v2064 = vunpack.c.l.b16 %v2023
    %v2065 = vunpack.c.l.b16 %v2024
    %v2066 = vunpack.c.l.b16 %v2025
    %v2067 = vunpack.c.l.b16 %v2026
    %v2068 = vunpack.c.l.b16 %v2027
    %v2069 = vunpack.c.l.b16 %v2028
    %v2070 = vunpack.c.l.b16 %v2029
    %v2071 = vunpack.c.l.b16 %v2030
    %v2072 = vunpack.c.l.b16 %v2031
    %v2073 = vunpack.c.l.b16 %v2032
    %v2074 = vunpack.c.l.b16 %v2033
    %v2075 = vunpack.c.l.b16 %v2034
    %v2076 = vunpack.c.l.b16 %v2035
    %v2077 = vunpack.c.l.b16 %v2036
    %v2078 = vpack.c.b16 %v2063, %v2062
    %v2079 = vpack.c.b16 %v2065, %v2064
    %v2080 = vpack.c.b16 %v2067, %v2066
    %v2081 = vpack.c.b16 %v2069, %v2068
    %v2082 = vpack.c.b16 %v2071, %v2070
    %v2083 = vpack.c.b16 %v2073, %v2072
    %v2084 = vpack.c.b16 %v2075, %v2074
    %v2085 = vpack.c.b16 %v2077, %v2076
    %2094 = vmatprep.subr.bf16.mxu0 0
    %2095 = vmatpush1.bf16.msra.mxu0 %v2085
    %2096 = vmatprep.subr.bf16.mxu0 0
    %2097 = vmatpush1.bf16.msra.mxu0 %v2084
    %2098 = vmatprep.subr.bf16.mxu0 0
    %2099 = vmatpush1.bf16.msra.mxu0 %v2083
    %2100 = vmatprep.subr.bf16.mxu0 0
    %2101 = vmatpush1.bf16.msra.mxu0 %v2082
    %2102 = vmatprep.subr.bf16.mxu0 0
    %2103 = vmatpush1.bf16.msra.mxu0 %v2081
    %2104 = vmatprep.subr.bf16.mxu0 0
    %2105 = vmatpush1.bf16.msra.mxu0 %v2080
    %2106 = vmatprep.subr.bf16.mxu0 0
    %2107 = vmatpush1.bf16.msra.mxu0 %v2079
    %2108 = vmatprep.subr.bf16.mxu0 0
    %2109 = vmatpush1.bf16.msra.mxu0 %v2078
    %2110 = vmatprep.subr.bf16.mxu0 0
    %2111 = vmatpush2.bf16.msra.mxu0 0
    %2112 = vmatprep.subr.bf16.mxu0 0
    %2113 = vmatpush2.bf16.msra.mxu0 0
    %2114 = vmatprep.subr.bf16.mxu0 0
    %2115 = vmatpush2.bf16.msra.mxu0 0
    %2116 = vmatprep.subr.bf16.mxu0 0
    %2117 = vmatpush2.bf16.msra.mxu0 0
    %2118 = vmatprep.subr.bf16.mxu0 0
    %2119 = vmatpush2.bf16.msra.mxu0 0
    %2120 = vmatprep.subr.bf16.mxu0 0
    %2121 = vmatpush2.bf16.msra.mxu0 0
    %2122 = vmatprep.subr.bf16.mxu0 0
    %2123 = vmatpush2.bf16.msra.mxu0 0
    %2124 = vmatprep.subr.bf16.mxu0 0
    %2125 = vmatpush2.bf16.msra.mxu0 0
    %2126 = vmatprep.mubr.bf16.mxu0 0
    %2127 = vmatmul.mubr.bf16.gmra.mxu0 %v2038
    %v2128 = vpop.f32.mrf.mxu0
    %v2129 = vadd.f32 %v2044, %v2128
    %v2130 = vpop.f32.mrf.mxu0
    %v2131 = vpop.f32.mrf.mxu0
    %v2132 = vadd.f32 %v2044, %v2131
    %v2133 = vpop.f32.mrf.mxu0
    %2134 = vmatprep.mubr.bf16.mxu0 0
    %2135 = vmatmul.mubr.bf16.gmra.mxu0 %v2039
    %v2136 = vpop.f32.mrf.mxu0
    %v2137 = vadd.f32 %v2044, %v2136
    %v2138 = vpop.f32.mrf.mxu0
    %v2139 = vpop.f32.mrf.mxu0
    %v2140 = vpop.f32.mrf.mxu0
    %2141 = vdwg.mxu0
    %v2142 = vadd.f32 %v1854, %v2129
    %v2143 = vadd.f32 %v1850, %v2132
    %v2144 = vadd.f32 %v1849, %v2137
    %s2145 = scalar_lea.vmem %s7, 1
    %v2146 = vld [vmem:[%s2145] sm:$0x1]
    %s2147 = scalar_lea.vmem %s8, 1
    %v2148 = vld [vmem:[%s2147] sm:$0x1]
    %vm2149 = vcmask 261122
    %v2150 = vsel %vm2149, %v2142, 0.0
    %2151 = vadd.xlane.f32.xlu0 %v2150
    %v2152 = vpop.xlane.xlu0 %2151
    %v2153 = vsel %vm185, %v2143, 0.0
    %2154 = vadd.xlane.f32.xlu0 %v2153
    %v2155 = vpop.xlane.xlu0 %2154
    %v2156 = vsel %vm1863, %v2144, 0.0
    %2157 = vadd.xlane.f32.xlu0 %v2156
    %v2158 = vpop.xlane.xlu0 %2157
    %v2159 = vmul.f32 %v2152, %v192
    %v2160 = vmul.f32 %v2155, %v192
    %v2161 = vmul.f32 %v2158, %v192
    %v2162 = vsub.f32 %v2142, %v2159
    %v2163 = vsub.f32 %v2143, %v2160
    %v2164 = vsub.f32 %v2144, %v2161
    %v2165 = vmul.f32 %v2162, %v2162
    %v2166 = vmul.f32 %v2163, %v2163
    %v2167 = vmul.f32 %v2164, %v2164
    %v2168 = vsel %vm2149, %v2165, 0.0
    %2169 = vadd.xlane.f32.xlu0 %v2168
    %v2170 = vpop.xlane.xlu0 %2169
    %v2171 = vsel %vm185, %v2166, 0.0
    %2172 = vadd.xlane.f32.xlu0 %v2171
    %v2173 = vpop.xlane.xlu0 %2172
    %v2174 = vsel %vm1863, %v2167, 0.0
    %2175 = vadd.xlane.f32.xlu0 %v2174
    %v2176 = vpop.xlane.xlu0 %2175
    %v2177 = vmul.f32 %v2170, %v192
    %v2178 = vmul.f32 %v2173, %v192
    %v2179 = vmul.f32 %v2176, %v192
    %v2180 = vadd.f32 %v2177, 1e-05
    %v2181 = vadd.f32 %v2178, 1e-05
    %v2182 = vadd.f32 %v2179, 1e-05
    %v2183 = vrsqrt.pop %v2180
    %v2184 = vrsqrt.pop %v2181
    %v2185 = vrsqrt.pop %v2182
    %v2186 = vmul.f32 %v2162, %v2183
    %v2187 = vmul.f32 %v2163, %v2184
    %v2188 = vmul.f32 %v2164, %v2185
    %v2190 = vlaneseq
    %v2191 = vshrl.u32 %v2190, 7
    %v2192 = vsub.s32 0, %v2191
    %v2193 = vrot.slane %v2146, %v2192
    %v2195 = vmul.f32 %v2186, %v2193
    %v2196 = vmul.f32 %v2187, %v2193
    %v2197 = vmul.f32 %v2188, %v2193
    %v2199 = vlaneseq
    %v2200 = vshrl.u32 %v2199, 7
    %v2201 = vsub.s32 0, %v2200
    %v2202 = vrot.slane %v2148, %v2201
    %v2204 = vadd.f32 %v2195, %v2202
    %v2205 = vadd.f32 %v2196, %v2202
    %v2206 = vadd.f32 %v2197, %v2202
    %s2207 = scalar_lea.vmem %s9, 16
    %v2208 = vld [vmem:[%s2207] sm:$0xf]
    %v2209 = vld [vmem:[%s2207 + $0x4] sm:$0xf]
    %v2210 = vld [vmem:[%s2207 + $0x8] sm:$0xf]
    %v2211 = vld [vmem:[%s2207 + $0xc] sm:$0xf]
    %s2212 = scalar_lea.vmem %s10, 1
    %v2213 = vld [vmem:[%s2212] sm:$0x1]
    %v2214 = vpack.c.bf16 %v2205, %v2204
    %v2215 = vpack.c.bf16 %v2206, %v2206
    %v2217 = vlaneseq
    %v2218 = vshrl.u32 %v2217, 7
    %v2219 = vsub.s32 0, %v2218
    %v2220 = vrot.slane %v2213, %v2219
    %vm2224 = vcmask 1046528
    %v2225 = vrot.slane %v2214, 1
    %v2226 = vrot.slane %v2215, 1
    %v2227 = vsel %vm2224, %v2225, %v2226
    %v2232 = vunpack.c.l.b16 %v2208
    %v2233 = vunpack.c.l.b16 %v2209
    %v2234 = vunpack.c.l.b16 %v2210
    %v2235 = vunpack.c.l.b16 %v2211
    %v2236 = vpack.c.b16 %v2233, %v2232
    %v2237 = vpack.c.b16 %v2235, %v2234
    %v2241 = vsel %vm185, %v2227, 0
    %2243 = vmatprep.subr.bf16.mxu0 0
    %2244 = vmatpush1.bf16.msra.mxu0 0
    %2245 = vmatprep.subr.bf16.mxu0 0
    %2246 = vmatpush1.bf16.msra.mxu0 0
    %2247 = vmatprep.subr.bf16.mxu0 0
    %2248 = vmatpush1.bf16.msra.mxu0 0
    %2249 = vmatprep.subr.bf16.mxu0 0
    %2250 = vmatpush1.bf16.msra.mxu0 0
    %2251 = vmatprep.subr.bf16.mxu0 0
    %2252 = vmatpush1.bf16.msra.mxu0 0
    %2253 = vmatprep.subr.bf16.mxu0 0
    %2254 = vmatpush1.bf16.msra.mxu0 0
    %2255 = vmatprep.subr.bf16.mxu0 0
    %2256 = vmatpush1.bf16.msra.mxu0 %v2237
    %2257 = vmatprep.subr.bf16.mxu0 0
    %2258 = vmatpush1.bf16.msra.mxu0 %v2236
    %2259 = vmatprep.subr.bf16.mxu0 0
    %2260 = vmatpush2.bf16.msra.mxu0 0
    %2261 = vmatprep.subr.bf16.mxu0 0
    %2262 = vmatpush2.bf16.msra.mxu0 0
    %2263 = vmatprep.subr.bf16.mxu0 0
    %2264 = vmatpush2.bf16.msra.mxu0 0
    %2265 = vmatprep.subr.bf16.mxu0 0
    %2266 = vmatpush2.bf16.msra.mxu0 0
    %2267 = vmatprep.subr.bf16.mxu0 0
    %2268 = vmatpush2.bf16.msra.mxu0 0
    %2269 = vmatprep.subr.bf16.mxu0 0
    %2270 = vmatpush2.bf16.msra.mxu0 0
    %2271 = vmatprep.subr.bf16.mxu0 0
    %2272 = vmatpush2.bf16.msra.mxu0 0
    %2273 = vmatprep.subr.bf16.mxu0 0
    %2274 = vmatpush2.bf16.msra.mxu0 0
    %2275 = vmatprep.mubr.bf16.mxu0 0
    %2276 = vmatmul.mubr.bf16.gmra.mxu0 %v2241
    %v2277 = vpop.f32.mrf.mxu0
    %v2278 = vadd.f32 %v2220, %v2277
    %v2279 = vpop.f32.mrf.mxu0
    %v2280 = vpop.f32.mrf.mxu0
    %v2281 = vadd.f32 %v2220, %v2280
    %v2282 = vpop.f32.mrf.mxu0
    %2283 = vdwg.mxu0
    %s2284 = scalar_lea.vmem %s11, 16
    %v2285 = vld [vmem:[%s2284] sm:$0xf]
    %v2286 = vld [vmem:[%s2284 + $0x4] sm:$0xf]
    %v2287 = vld [vmem:[%s2284 + $0x8] sm:$0xf]
    %v2288 = vld [vmem:[%s2284 + $0xc] sm:$0xf]
    %s2289 = scalar_lea.vmem %s12, 1
    %v2290 = vld [vmem:[%s2289] sm:$0x1]
    %v2291 = vpack.c.bf16 %v2281, %v2278
    %2293 = vrot.lane.b32.xlu0 %v2291, 96
    %v2294 = vpop.permute.xlu0 %2293
    %v2296 = vsel %vm306, %v2291, 0
    %v2299 = vsel %vm306, %v2294, 0
    %2301 = vmatprep.subr.bf16.mxu0 0
    %2302 = vmatpush1.bf16.xpose.msra.mxu0 0
    %2303 = vmatprep.subr.bf16.mxu0 0
    %2304 = vmatpush1.bf16.xpose.msra.mxu0 0
    %2305 = vmatprep.subr.bf16.mxu0 0
    %2306 = vmatpush1.bf16.xpose.msra.mxu0 0
    %2307 = vmatprep.subr.bf16.mxu0 0
    %2308 = vmatpush1.bf16.xpose.msra.mxu0 0
    %2309 = vmatprep.subr.bf16.mxu0 0
    %2310 = vmatpush1.bf16.xpose.msra.mxu0 0
    %2311 = vmatprep.subr.bf16.mxu0 0
    %2312 = vmatpush1.bf16.xpose.msra.mxu0 0
    %2313 = vmatprep.subr.bf16.mxu0 0
    %2314 = vmatpush1.bf16.xpose.msra.mxu0 0
    %2315 = vmatprep.subr.bf16.mxu0 0
    %2316 = vmatpush1.bf16.xpose.msra.mxu0 %v2299
    %2317 = vmatprep.subr.bf16.mxu0 0
    %2318 = vmatpush2.bf16.xpose.msra.mxu0 0
    %2319 = vmatprep.subr.bf16.mxu0 0
    %2320 = vmatpush2.bf16.xpose.msra.mxu0 0
    %2321 = vmatprep.subr.bf16.mxu0 0
    %2322 = vmatpush2.bf16.xpose.msra.mxu0 0
    %2323 = vmatprep.subr.bf16.mxu0 0
    %2324 = vmatpush2.bf16.xpose.msra.mxu0 0
    %2325 = vmatprep.subr.bf16.mxu0 0
    %2326 = vmatpush2.bf16.xpose.msra.mxu0 0
    %2327 = vmatprep.subr.bf16.mxu0 0
    %2328 = vmatpush2.bf16.xpose.msra.mxu0 0
    %2329 = vmatprep.subr.bf16.mxu0 0
    %2330 = vmatpush2.bf16.xpose.msra.mxu0 0
    %2331 = vmatprep.subr.bf16.mxu0 0
    %2332 = vmatpush2.bf16.xpose.msra.mxu0 0
    %2333 = vmatprep.mubr.bf16.mxu0 0
    %2334 = vmatmul.mubr.bf16.gmra.mxu0 %v2296
    %v2335 = vpop.f32.mrf.mxu0
    %v2336 = vadd.f32 %v178, %v2335
    %v2337 = vpop.f32.mrf.mxu0
    %v2338 = vpop.f32.mrf.mxu0
    %v2339 = vadd.f32 %v179, %v2338
    %v2340 = vpop.f32.mrf.mxu0
    %2341 = vdwg.mxu0
    %v2342 = vsel %vm354, %v2336, -inf
    %2343 = vmax.xlane.f32.xlu0 %v2342
    %v2344 = vpop.xlane.xlu0 %2343
    %v2345 = vsel %vm354, %v2339, -inf
    %2346 = vmax.xlane.f32.xlu0 %v2345
    %v2347 = vpop.xlane.xlu0 %2346
    %v2348 = vsub.f32 %v2336, %v2344
    %v2349 = vsub.f32 %v2339, %v2347
    %v2350 = vmul.f32 %v2348, 1.442695
    %v2351 = vpow.pop %v2350
    %v2352 = vmul.f32 %v2349, 1.442695
    %v2353 = vpow.pop %v2352
    %v2354 = vsel %vm354, %v2351, 0.0
    %2355 = vadd.xlane.f32.xlu0 %v2354
    %v2356 = vpop.xlane.xlu0 %2355
    %v2357 = vsel %vm354, %v2353, 0.0
    %2358 = vadd.xlane.f32.xlu0 %v2357
    %v2359 = vpop.xlane.xlu0 %2358
    %v2360 = vrcp.pop %v2356
    %v2361 = vrcp.pop %v2359
    %v2362 = vmul.f32 %v2351, %v2360
    %v2363 = vmul.f32 %v2353, %v2361
    %v2364 = vpack.c.bf16 %v2363, %v2362
    %2365 = vrot.lane.b32.xlu0 %v2291, 64
    %v2366 = vpop.permute.xlu0 %2365
    %v2369 = vsel %vm354, %v2364, 0
    %2371 = vmatprep.subr.bf16.mxu0 0
    %2372 = vmatpush1.bf16.msra.mxu0 0
    %2373 = vmatprep.subr.bf16.mxu0 0
    %2374 = vmatpush1.bf16.msra.mxu0 0
    %2375 = vmatprep.subr.bf16.mxu0 0
    %2376 = vmatpush1.bf16.msra.mxu0 0
    %2377 = vmatprep.subr.bf16.mxu0 0
    %2378 = vmatpush1.bf16.msra.mxu0 0
    %2379 = vmatprep.subr.bf16.mxu0 0
    %2380 = vmatpush1.bf16.msra.mxu0 0
    %2381 = vmatprep.subr.bf16.mxu0 0
    %2382 = vmatpush1.bf16.msra.mxu0 0
    %2383 = vmatprep.subr.bf16.mxu0 0
    %2384 = vmatpush1.bf16.msra.mxu0 0
    %2385 = vmatprep.subr.bf16.mxu0 0
    %2386 = vmatpush1.bf16.msra.mxu0 %v2366
    %2387 = vmatprep.subr.bf16.mxu0 0
    %2388 = vmatpush2.bf16.msra.mxu0 0
    %2389 = vmatprep.subr.bf16.mxu0 0
    %2390 = vmatpush2.bf16.msra.mxu0 0
    %2391 = vmatprep.subr.bf16.mxu0 0
    %2392 = vmatpush2.bf16.msra.mxu0 0
    %2393 = vmatprep.subr.bf16.mxu0 0
    %2394 = vmatpush2.bf16.msra.mxu0 0
    %2395 = vmatprep.subr.bf16.mxu0 0
    %2396 = vmatpush2.bf16.msra.mxu0 0
    %2397 = vmatprep.subr.bf16.mxu0 0
    %2398 = vmatpush2.bf16.msra.mxu0 0
    %2399 = vmatprep.subr.bf16.mxu0 0
    %2400 = vmatpush2.bf16.msra.mxu0 0
    %2401 = vmatprep.subr.bf16.mxu0 0
    %2402 = vmatpush2.bf16.msra.mxu0 0
    %2403 = vmatprep.mubr.bf16.mxu0 0
    %2404 = vmatmul.mubr.bf16.gmra.mxu0 %v2369
    %v2405 = vpop.f32.mrf.mxu0
    %v2406 = vadd.f32 0.0, %v2405
    %v2407 = vpop.f32.mrf.mxu0
    %v2408 = vpop.f32.mrf.mxu0
    %v2409 = vadd.f32 0.0, %v2408
    %v2410 = vpop.f32.mrf.mxu0
    %2411 = vdwg.mxu0
    %2412 = vrot.lane.b32.xlu0 %v2291, 120
    %v2413 = vpop.permute.xlu0 %2412
    %2414 = vrot.lane.b32.xlu0 %v2291, 88
    %v2415 = vpop.permute.xlu0 %2414
    %v2417 = vsel %vm306, %v2413, 0
    %v2420 = vsel %vm306, %v2415, 0
    %2422 = vmatprep.subr.bf16.mxu0 0
    %2423 = vmatpush1.bf16.xpose.msra.mxu0 0
    %2424 = vmatprep.subr.bf16.mxu0 0
    %2425 = vmatpush1.bf16.xpose.msra.mxu0 0
    %2426 = vmatprep.subr.bf16.mxu0 0
    %2427 = vmatpush1.bf16.xpose.msra.mxu0 0
    %2428 = vmatprep.subr.bf16.mxu0 0
    %2429 = vmatpush1.bf16.xpose.msra.mxu0 0
    %2430 = vmatprep.subr.bf16.mxu0 0
    %2431 = vmatpush1.bf16.xpose.msra.mxu0 0
    %2432 = vmatprep.subr.bf16.mxu0 0
    %2433 = vmatpush1.bf16.xpose.msra.mxu0 0
    %2434 = vmatprep.subr.bf16.mxu0 0
    %2435 = vmatpush1.bf16.xpose.msra.mxu0 0
    %2436 = vmatprep.subr.bf16.mxu0 0
    %2437 = vmatpush1.bf16.xpose.msra.mxu0 %v2420
    %2438 = vmatprep.subr.bf16.mxu0 0
    %2439 = vmatpush2.bf16.xpose.msra.mxu0 0
    %2440 = vmatprep.subr.bf16.mxu0 0
    %2441 = vmatpush2.bf16.xpose.msra.mxu0 0
    %2442 = vmatprep.subr.bf16.mxu0 0
    %2443 = vmatpush2.bf16.xpose.msra.mxu0 0
    %2444 = vmatprep.subr.bf16.mxu0 0
    %2445 = vmatpush2.bf16.xpose.msra.mxu0 0
    %2446 = vmatprep.subr.bf16.mxu0 0
    %2447 = vmatpush2.bf16.xpose.msra.mxu0 0
    %2448 = vmatprep.subr.bf16.mxu0 0
    %2449 = vmatpush2.bf16.xpose.msra.mxu0 0
    %2450 = vmatprep.subr.bf16.mxu0 0
    %2451 = vmatpush2.bf16.xpose.msra.mxu0 0
    %2452 = vmatprep.subr.bf16.mxu0 0
    %2453 = vmatpush2.bf16.xpose.msra.mxu0 0
    %2454 = vmatprep.mubr.bf16.mxu0 0
    %2455 = vmatmul.mubr.bf16.gmra.mxu0 %v2417
    %v2456 = vpop.f32.mrf.mxu0
    %v2457 = vadd.f32 %v178, %v2456
    %v2458 = vpop.f32.mrf.mxu0
    %v2459 = vpop.f32.mrf.mxu0
    %v2460 = vadd.f32 %v179, %v2459
    %v2461 = vpop.f32.mrf.mxu0
    %2462 = vdwg.mxu0
    %v2463 = vsel %vm354, %v2457, -inf
    %2464 = vmax.xlane.f32.xlu0 %v2463
    %v2465 = vpop.xlane.xlu0 %2464
    %v2466 = vsel %vm354, %v2460, -inf
    %2467 = vmax.xlane.f32.xlu0 %v2466
    %v2468 = vpop.xlane.xlu0 %2467
    %v2469 = vsub.f32 %v2457, %v2465
    %v2470 = vsub.f32 %v2460, %v2468
    %v2471 = vmul.f32 %v2469, 1.442695
    %v2472 = vpow.pop %v2471
    %v2473 = vmul.f32 %v2470, 1.442695
    %v2474 = vpow.pop %v2473
    %v2475 = vsel %vm354, %v2472, 0.0
    %2476 = vadd.xlane.f32.xlu0 %v2475
    %v2477 = vpop.xlane.xlu0 %2476
    %v2478 = vsel %vm354, %v2474, 0.0
    %2479 = vadd.xlane.f32.xlu0 %v2478
    %v2480 = vpop.xlane.xlu0 %2479
    %v2481 = vrcp.pop %v2477
    %v2482 = vrcp.pop %v2480
    %v2483 = vmul.f32 %v2472, %v2481
    %v2484 = vmul.f32 %v2474, %v2482
    %v2485 = vpack.c.bf16 %v2484, %v2483
    %2486 = vrot.lane.b32.xlu0 %v2291, 56
    %v2487 = vpop.permute.xlu0 %2486
    %v2490 = vsel %vm354, %v2485, 0
    %2492 = vmatprep.subr.bf16.mxu0 0
    %2493 = vmatpush1.bf16.msra.mxu0 0
    %2494 = vmatprep.subr.bf16.mxu0 0
    %2495 = vmatpush1.bf16.msra.mxu0 0
    %2496 = vmatprep.subr.bf16.mxu0 0
    %2497 = vmatpush1.bf16.msra.mxu0 0
    %2498 = vmatprep.subr.bf16.mxu0 0
    %2499 = vmatpush1.bf16.msra.mxu0 0
    %2500 = vmatprep.subr.bf16.mxu0 0
    %2501 = vmatpush1.bf16.msra.mxu0 0
    %2502 = vmatprep.subr.bf16.mxu0 0
    %2503 = vmatpush1.bf16.msra.mxu0 0
    %2504 = vmatprep.subr.bf16.mxu0 0
    %2505 = vmatpush1.bf16.msra.mxu0 0
    %2506 = vmatprep.subr.bf16.mxu0 0
    %2507 = vmatpush1.bf16.msra.mxu0 %v2487
    %2508 = vmatprep.subr.bf16.mxu0 0
    %2509 = vmatpush2.bf16.msra.mxu0 0
    %2510 = vmatprep.subr.bf16.mxu0 0
    %2511 = vmatpush2.bf16.msra.mxu0 0
    %2512 = vmatprep.subr.bf16.mxu0 0
    %2513 = vmatpush2.bf16.msra.mxu0 0
    %2514 = vmatprep.subr.bf16.mxu0 0
    %2515 = vmatpush2.bf16.msra.mxu0 0
    %2516 = vmatprep.subr.bf16.mxu0 0
    %2517 = vmatpush2.bf16.msra.mxu0 0
    %2518 = vmatprep.subr.bf16.mxu0 0
    %2519 = vmatpush2.bf16.msra.mxu0 0
    %2520 = vmatprep.subr.bf16.mxu0 0
    %2521 = vmatpush2.bf16.msra.mxu0 0
    %2522 = vmatprep.subr.bf16.mxu0 0
    %2523 = vmatpush2.bf16.msra.mxu0 0
    %2524 = vmatprep.mubr.bf16.mxu0 0
    %2525 = vmatmul.mubr.bf16.gmra.mxu0 %v2490
    %v2526 = vpop.f32.mrf.mxu0
    %v2527 = vadd.f32 0.0, %v2526
    %v2528 = vpop.f32.mrf.mxu0
    %v2529 = vpop.f32.mrf.mxu0
    %v2530 = vadd.f32 0.0, %v2529
    %v2531 = vpop.f32.mrf.mxu0
    %2532 = vdwg.mxu0
    %2533 = vrot.lane.b32.xlu0 %v2291, 112
    %v2534 = vpop.permute.xlu0 %2533
    %2535 = vrot.lane.b32.xlu0 %v2291, 80
    %v2536 = vpop.permute.xlu0 %2535
    %v2538 = vsel %vm306, %v2534, 0
    %v2541 = vsel %vm306, %v2536, 0
    %2543 = vmatprep.subr.bf16.mxu0 0
    %2544 = vmatpush1.bf16.xpose.msra.mxu0 0
    %2545 = vmatprep.subr.bf16.mxu0 0
    %2546 = vmatpush1.bf16.xpose.msra.mxu0 0
    %2547 = vmatprep.subr.bf16.mxu0 0
    %2548 = vmatpush1.bf16.xpose.msra.mxu0 0
    %2549 = vmatprep.subr.bf16.mxu0 0
    %2550 = vmatpush1.bf16.xpose.msra.mxu0 0
    %2551 = vmatprep.subr.bf16.mxu0 0
    %2552 = vmatpush1.bf16.xpose.msra.mxu0 0
    %2553 = vmatprep.subr.bf16.mxu0 0
    %2554 = vmatpush1.bf16.xpose.msra.mxu0 0
    %2555 = vmatprep.subr.bf16.mxu0 0
    %2556 = vmatpush1.bf16.xpose.msra.mxu0 0
    %2557 = vmatprep.subr.bf16.mxu0 0
    %2558 = vmatpush1.bf16.xpose.msra.mxu0 %v2541
    %2559 = vmatprep.subr.bf16.mxu0 0
    %2560 = vmatpush2.bf16.xpose.msra.mxu0 0
    %2561 = vmatprep.subr.bf16.mxu0 0
    %2562 = vmatpush2.bf16.xpose.msra.mxu0 0
    %2563 = vmatprep.subr.bf16.mxu0 0
    %2564 = vmatpush2.bf16.xpose.msra.mxu0 0
    %2565 = vmatprep.subr.bf16.mxu0 0
    %2566 = vmatpush2.bf16.xpose.msra.mxu0 0
    %2567 = vmatprep.subr.bf16.mxu0 0
    %2568 = vmatpush2.bf16.xpose.msra.mxu0 0
    %2569 = vmatprep.subr.bf16.mxu0 0
    %2570 = vmatpush2.bf16.xpose.msra.mxu0 0
    %2571 = vmatprep.subr.bf16.mxu0 0
    %2572 = vmatpush2.bf16.xpose.msra.mxu0 0
    %2573 = vmatprep.subr.bf16.mxu0 0
    %2574 = vmatpush2.bf16.xpose.msra.mxu0 0
    %2575 = vmatprep.mubr.bf16.mxu0 0
    %2576 = vmatmul.mubr.bf16.gmra.mxu0 %v2538
    %v2577 = vpop.f32.mrf.mxu0
    %v2578 = vadd.f32 %v178, %v2577
    %v2579 = vpop.f32.mrf.mxu0
    %v2580 = vpop.f32.mrf.mxu0
    %v2581 = vadd.f32 %v179, %v2580
    %v2582 = vpop.f32.mrf.mxu0
    %2583 = vdwg.mxu0
    %v2584 = vsel %vm354, %v2578, -inf
    %2585 = vmax.xlane.f32.xlu0 %v2584
    %v2586 = vpop.xlane.xlu0 %2585
    %v2587 = vsel %vm354, %v2581, -inf
    %2588 = vmax.xlane.f32.xlu0 %v2587
    %v2589 = vpop.xlane.xlu0 %2588
    %v2590 = vsub.f32 %v2578, %v2586
    %v2591 = vsub.f32 %v2581, %v2589
    %v2592 = vmul.f32 %v2590, 1.442695
    %v2593 = vpow.pop %v2592
    %v2594 = vmul.f32 %v2591, 1.442695
    %v2595 = vpow.pop %v2594
    %v2596 = vsel %vm354, %v2593, 0.0
    %2597 = vadd.xlane.f32.xlu0 %v2596
    %v2598 = vpop.xlane.xlu0 %2597
    %v2599 = vsel %vm354, %v2595, 0.0
    %2600 = vadd.xlane.f32.xlu0 %v2599
    %v2601 = vpop.xlane.xlu0 %2600
    %v2602 = vrcp.pop %v2598
    %v2603 = vrcp.pop %v2601
    %v2604 = vmul.f32 %v2593, %v2602
    %v2605 = vmul.f32 %v2595, %v2603
    %v2606 = vpack.c.bf16 %v2605, %v2604
    %2607 = vrot.lane.b32.xlu0 %v2291, 48
    %v2608 = vpop.permute.xlu0 %2607
    %v2611 = vsel %vm354, %v2606, 0
    %2613 = vmatprep.subr.bf16.mxu0 0
    %2614 = vmatpush1.bf16.msra.mxu0 0
    %2615 = vmatprep.subr.bf16.mxu0 0
    %2616 = vmatpush1.bf16.msra.mxu0 0
    %2617 = vmatprep.subr.bf16.mxu0 0
    %2618 = vmatpush1.bf16.msra.mxu0 0
    %2619 = vmatprep.subr.bf16.mxu0 0
    %2620 = vmatpush1.bf16.msra.mxu0 0
    %2621 = vmatprep.subr.bf16.mxu0 0
    %2622 = vmatpush1.bf16.msra.mxu0 0
    %2623 = vmatprep.subr.bf16.mxu0 0
    %2624 = vmatpush1.bf16.msra.mxu0 0
    %2625 = vmatprep.subr.bf16.mxu0 0
    %2626 = vmatpush1.bf16.msra.mxu0 0
    %2627 = vmatprep.subr.bf16.mxu0 0
    %2628 = vmatpush1.bf16.msra.mxu0 %v2608
    %2629 = vmatprep.subr.bf16.mxu0 0
    %2630 = vmatpush2.bf16.msra.mxu0 0
    %2631 = vmatprep.subr.bf16.mxu0 0
    %2632 = vmatpush2.bf16.msra.mxu0 0
    %2633 = vmatprep.subr.bf16.mxu0 0
    %2634 = vmatpush2.bf16.msra.mxu0 0
    %2635 = vmatprep.subr.bf16.mxu0 0
    %2636 = vmatpush2.bf16.msra.mxu0 0
    %2637 = vmatprep.subr.bf16.mxu0 0
    %2638 = vmatpush2.bf16.msra.mxu0 0
    %2639 = vmatprep.subr.bf16.mxu0 0
    %2640 = vmatpush2.bf16.msra.mxu0 0
    %2641 = vmatprep.subr.bf16.mxu0 0
    %2642 = vmatpush2.bf16.msra.mxu0 0
    %2643 = vmatprep.subr.bf16.mxu0 0
    %2644 = vmatpush2.bf16.msra.mxu0 0
    %2645 = vmatprep.mubr.bf16.mxu0 0
    %2646 = vmatmul.mubr.bf16.gmra.mxu0 %v2611
    %v2647 = vpop.f32.mrf.mxu0
    %v2648 = vadd.f32 0.0, %v2647
    %v2649 = vpop.f32.mrf.mxu0
    %v2650 = vpop.f32.mrf.mxu0
    %v2651 = vadd.f32 0.0, %v2650
    %v2652 = vpop.f32.mrf.mxu0
    %2653 = vdwg.mxu0
    %2654 = vrot.lane.b32.xlu0 %v2291, 104
    %v2655 = vpop.permute.xlu0 %2654
    %2656 = vrot.lane.b32.xlu0 %v2291, 72
    %v2657 = vpop.permute.xlu0 %2656
    %v2659 = vsel %vm306, %v2655, 0
    %v2662 = vsel %vm306, %v2657, 0
    %2664 = vmatprep.subr.bf16.mxu0 0
    %2665 = vmatpush1.bf16.xpose.msra.mxu0 0
    %2666 = vmatprep.subr.bf16.mxu0 0
    %2667 = vmatpush1.bf16.xpose.msra.mxu0 0
    %2668 = vmatprep.subr.bf16.mxu0 0
    %2669 = vmatpush1.bf16.xpose.msra.mxu0 0
    %2670 = vmatprep.subr.bf16.mxu0 0
    %2671 = vmatpush1.bf16.xpose.msra.mxu0 0
    %2672 = vmatprep.subr.bf16.mxu0 0
    %2673 = vmatpush1.bf16.xpose.msra.mxu0 0
    %2674 = vmatprep.subr.bf16.mxu0 0
    %2675 = vmatpush1.bf16.xpose.msra.mxu0 0
    %2676 = vmatprep.subr.bf16.mxu0 0
    %2677 = vmatpush1.bf16.xpose.msra.mxu0 0
    %2678 = vmatprep.subr.bf16.mxu0 0
    %2679 = vmatpush1.bf16.xpose.msra.mxu0 %v2662
    %2680 = vmatprep.subr.bf16.mxu0 0
    %2681 = vmatpush2.bf16.xpose.msra.mxu0 0
    %2682 = vmatprep.subr.bf16.mxu0 0
    %2683 = vmatpush2.bf16.xpose.msra.mxu0 0
    %2684 = vmatprep.subr.bf16.mxu0 0
    %2685 = vmatpush2.bf16.xpose.msra.mxu0 0
    %2686 = vmatprep.subr.bf16.mxu0 0
    %2687 = vmatpush2.bf16.xpose.msra.mxu0 0
    %2688 = vmatprep.subr.bf16.mxu0 0
    %2689 = vmatpush2.bf16.xpose.msra.mxu0 0
    %2690 = vmatprep.subr.bf16.mxu0 0
    %2691 = vmatpush2.bf16.xpose.msra.mxu0 0
    %2692 = vmatprep.subr.bf16.mxu0 0
    %2693 = vmatpush2.bf16.xpose.msra.mxu0 0
    %2694 = vmatprep.subr.bf16.mxu0 0
    %2695 = vmatpush2.bf16.xpose.msra.mxu0 0
    %2696 = vmatprep.mubr.bf16.mxu0 0
    %2697 = vmatmul.mubr.bf16.gmra.mxu0 %v2659
    %v2698 = vpop.f32.mrf.mxu0
    %v2699 = vadd.f32 %v178, %v2698
    %v2700 = vpop.f32.mrf.mxu0
    %v2701 = vpop.f32.mrf.mxu0
    %v2702 = vadd.f32 %v179, %v2701
    %v2703 = vpop.f32.mrf.mxu0
    %2704 = vdwg.mxu0
    %v2705 = vsel %vm354, %v2699, -inf
    %2706 = vmax.xlane.f32.xlu0 %v2705
    %v2707 = vpop.xlane.xlu0 %2706
    %v2708 = vsel %vm354, %v2702, -inf
    %2709 = vmax.xlane.f32.xlu0 %v2708
    %v2710 = vpop.xlane.xlu0 %2709
    %v2711 = vsub.f32 %v2699, %v2707
    %v2712 = vsub.f32 %v2702, %v2710
    %v2713 = vmul.f32 %v2711, 1.442695
    %v2714 = vpow.pop %v2713
    %v2715 = vmul.f32 %v2712, 1.442695
    %v2716 = vpow.pop %v2715
    %v2717 = vsel %vm354, %v2714, 0.0
    %2718 = vadd.xlane.f32.xlu0 %v2717
    %v2719 = vpop.xlane.xlu0 %2718
    %v2720 = vsel %vm354, %v2716, 0.0
    %2721 = vadd.xlane.f32.xlu0 %v2720
    %v2722 = vpop.xlane.xlu0 %2721
    %v2723 = vrcp.pop %v2719
    %v2724 = vrcp.pop %v2722
    %v2725 = vmul.f32 %v2714, %v2723
    %v2726 = vmul.f32 %v2716, %v2724
    %v2727 = vpack.c.bf16 %v2726, %v2725
    %2728 = vrot.lane.b32.xlu0 %v2291, 40
    %v2729 = vpop.permute.xlu0 %2728
    %v2732 = vsel %vm354, %v2727, 0
    %2734 = vmatprep.subr.bf16.mxu0 0
    %2735 = vmatpush1.bf16.msra.mxu0 0
    %2736 = vmatprep.subr.bf16.mxu0 0
    %2737 = vmatpush1.bf16.msra.mxu0 0
    %2738 = vmatprep.subr.bf16.mxu0 0
    %2739 = vmatpush1.bf16.msra.mxu0 0
    %2740 = vmatprep.subr.bf16.mxu0 0
    %2741 = vmatpush1.bf16.msra.mxu0 0
    %2742 = vmatprep.subr.bf16.mxu0 0
    %2743 = vmatpush1.bf16.msra.mxu0 0
    %2744 = vmatprep.subr.bf16.mxu0 0
    %2745 = vmatpush1.bf16.msra.mxu0 0
    %2746 = vmatprep.subr.bf16.mxu0 0
    %2747 = vmatpush1.bf16.msra.mxu0 0
    %2748 = vmatprep.subr.bf16.mxu0 0
    %2749 = vmatpush1.bf16.msra.mxu0 %v2729
    %2750 = vmatprep.subr.bf16.mxu0 0
    %2751 = vmatpush2.bf16.msra.mxu0 0
    %2752 = vmatprep.subr.bf16.mxu0 0
    %2753 = vmatpush2.bf16.msra.mxu0 0
    %2754 = vmatprep.subr.bf16.mxu0 0
    %2755 = vmatpush2.bf16.msra.mxu0 0
    %2756 = vmatprep.subr.bf16.mxu0 0
    %2757 = vmatpush2.bf16.msra.mxu0 0
    %2758 = vmatprep.subr.bf16.mxu0 0
    %2759 = vmatpush2.bf16.msra.mxu0 0
    %2760 = vmatprep.subr.bf16.mxu0 0
    %2761 = vmatpush2.bf16.msra.mxu0 0
    %2762 = vmatprep.subr.bf16.mxu0 0
    %2763 = vmatpush2.bf16.msra.mxu0 0
    %2764 = vmatprep.subr.bf16.mxu0 0
    %2765 = vmatpush2.bf16.msra.mxu0 0
    %2766 = vmatprep.mubr.bf16.mxu0 0
    %2767 = vmatmul.mubr.bf16.gmra.mxu0 %v2732
    %v2768 = vpop.f32.mrf.mxu0
    %v2769 = vadd.f32 0.0, %v2768
    %v2770 = vpop.f32.mrf.mxu0
    %v2771 = vpop.f32.mrf.mxu0
    %v2772 = vadd.f32 0.0, %v2771
    %v2773 = vpop.f32.mrf.mxu0
    %2774 = vdwg.mxu0
    %2777 = vrot.lane.b32.xlu0 %v2527, 8
    %v2778 = vpop.permute.xlu0 %2777
    %2779 = vrot.lane.b32.xlu0 %v2530, 8
    %v2780 = vpop.permute.xlu0 %2779
    %2785 = vrot.lane.b32.xlu0 %v2648, 16
    %v2786 = vpop.permute.xlu0 %2785
    %2787 = vrot.lane.b32.xlu0 %v2651, 16
    %v2788 = vpop.permute.xlu0 %2787
    %2793 = vrot.lane.b32.xlu0 %v2769, 24
    %v2794 = vpop.permute.xlu0 %2793
    %2795 = vrot.lane.b32.xlu0 %v2772, 24
    %v2796 = vpop.permute.xlu0 %2795
    %v2799 = vsel %vm306, %v2406, %v2778
    %v2800 = vsel %vm306, %v2409, %v2780
    %v2801 = vsel %vm354, %v2799, %v2786
    %v2802 = vsel %vm354, %v2800, %v2788
    %v2803 = vsel %vm816, %v2801, %v2794
    %v2804 = vsel %vm816, %v2802, %v2796
    %v2805 = vpack.c.bf16 %v2804, %v2803
    %v2807 = vlaneseq
    %v2808 = vshrl.u32 %v2807, 7
    %v2809 = vsub.s32 0, %v2808
    %v2810 = vrot.slane %v2290, %v2809
    %v2816 = vunpack.c.l.b16 %v2285
    %v2817 = vunpack.c.l.b16 %v2286
    %v2818 = vunpack.c.l.b16 %v2287
    %v2819 = vunpack.c.l.b16 %v2288
    %v2820 = vpack.c.b16 %v2817, %v2816
    %v2821 = vpack.c.b16 %v2819, %v2818
    %v2825 = vsel %vm185, %v2805, 0
    %2827 = vmatprep.subr.bf16.mxu0 0
    %2828 = vmatpush1.bf16.msra.mxu0 0
    %2829 = vmatprep.subr.bf16.mxu0 0
    %2830 = vmatpush1.bf16.msra.mxu0 0
    %2831 = vmatprep.subr.bf16.mxu0 0
    %2832 = vmatpush1.bf16.msra.mxu0 0
    %2833 = vmatprep.subr.bf16.mxu0 0
    %2834 = vmatpush1.bf16.msra.mxu0 0
    %2835 = vmatprep.subr.bf16.mxu0 0
    %2836 = vmatpush1.bf16.msra.mxu0 0
    %2837 = vmatprep.subr.bf16.mxu0 0
    %2838 = vmatpush1.bf16.msra.mxu0 0
    %2839 = vmatprep.subr.bf16.mxu0 0
    %2840 = vmatpush1.bf16.msra.mxu0 %v2821
    %2841 = vmatprep.subr.bf16.mxu0 0
    %2842 = vmatpush1.bf16.msra.mxu0 %v2820
    %2843 = vmatprep.subr.bf16.mxu0 0
    %2844 = vmatpush2.bf16.msra.mxu0 0
    %2845 = vmatprep.subr.bf16.mxu0 0
    %2846 = vmatpush2.bf16.msra.mxu0 0
    %2847 = vmatprep.subr.bf16.mxu0 0
    %2848 = vmatpush2.bf16.msra.mxu0 0
    %2849 = vmatprep.subr.bf16.mxu0 0
    %2850 = vmatpush2.bf16.msra.mxu0 0
    %2851 = vmatprep.subr.bf16.mxu0 0
    %2852 = vmatpush2.bf16.msra.mxu0 0
    %2853 = vmatprep.subr.bf16.mxu0 0
    %2854 = vmatpush2.bf16.msra.mxu0 0
    %2855 = vmatprep.subr.bf16.mxu0 0
    %2856 = vmatpush2.bf16.msra.mxu0 0
    %2857 = vmatprep.subr.bf16.mxu0 0
    %2858 = vmatpush2.bf16.msra.mxu0 0
    %2859 = vmatprep.mubr.bf16.mxu0 0
    %2860 = vmatmul.mubr.bf16.gmra.mxu0 %v2825
    %v2861 = vpop.f32.mrf.mxu0
    %v2862 = vadd.f32 %v2810, %v2861
    %v2863 = vpop.f32.mrf.mxu0
    %v2864 = vpop.f32.mrf.mxu0
    %v2865 = vadd.f32 %v2810, %v2864
    %v2866 = vpop.f32.mrf.mxu0
    %2867 = vdwg.mxu0
    %v2870 = vrot.slane %v2862, 6
    %v2871 = vrot.slane %v2865, 6
    %v2872 = vsel %vm886, %v2870, %v2871
    %v2876 = vadd.f32 %v2142, %v2870
    %v2877 = vadd.f32 %v2143, %v2872
    %v2878 = vadd.f32 %v2144, %v2871
    %v2880 = vrot.slane %v2142, 7
    %v2882 = vrot.slane %v2142, 6
    %v2884 = vsel %vm884, %v2142, %v2880
    %v2885 = vsel %vm886, %v2884, %v2880
    %v2886 = vsel %vm888, %v2885, %v2882
    %v2890 = vrot.slane %v2876, 6
    %v2891 = vrot.slane %v2877, 6
    %v2892 = vsel %vm886, %v2890, %v2891
    %v2893 = vrot.slane %v2878, 6
    %v2894 = vsel %vm886, %v2891, %v2893
    %v2898 = vsel %vm892, %v2886, %v2890
    %s2899 = scalar_lea.vmem %s13, 1
    %v2900 = vld [vmem:[%s2899] sm:$0x1]
    %s2901 = scalar_lea.vmem %s14, 1
    %v2902 = vld [vmem:[%s2901] sm:$0x1]
    %v2903 = vsel %vm185, %v2898, 0.0
    %2904 = vadd.xlane.f32.xlu0 %v2903
    %v2905 = vpop.xlane.xlu0 %2904
    %v2906 = vsel %vm185, %v2892, 0.0
    %2907 = vadd.xlane.f32.xlu0 %v2906
    %v2908 = vpop.xlane.xlu0 %2907
    %v2909 = vsel %vm908, %v2894, 0.0
    %2910 = vadd.xlane.f32.xlu0 %v2909
    %v2911 = vpop.xlane.xlu0 %2910
    %v2912 = vmul.f32 %v2905, %v192
    %v2913 = vmul.f32 %v2908, %v192
    %v2914 = vmul.f32 %v2911, %v192
    %v2915 = vsub.f32 %v2898, %v2912
    %v2916 = vsub.f32 %v2892, %v2913
    %v2917 = vsub.f32 %v2894, %v2914
    %v2918 = vmul.f32 %v2915, %v2915
    %v2919 = vmul.f32 %v2916, %v2916
    %v2920 = vmul.f32 %v2917, %v2917
    %v2921 = vsel %vm185, %v2918, 0.0
    %2922 = vadd.xlane.f32.xlu0 %v2921
    %v2923 = vpop.xlane.xlu0 %2922
    %v2924 = vsel %vm185, %v2919, 0.0
    %2925 = vadd.xlane.f32.xlu0 %v2924
    %v2926 = vpop.xlane.xlu0 %2925
    %v2927 = vsel %vm908, %v2920, 0.0
    %2928 = vadd.xlane.f32.xlu0 %v2927
    %v2929 = vpop.xlane.xlu0 %2928
    %v2930 = vmul.f32 %v2923, %v192
    %v2931 = vmul.f32 %v2926, %v192
    %v2932 = vmul.f32 %v2929, %v192
    %v2933 = vadd.f32 %v2930, 1e-05
    %v2934 = vadd.f32 %v2931, 1e-05
    %v2935 = vadd.f32 %v2932, 1e-05
    %v2936 = vrsqrt.pop %v2933
    %v2937 = vrsqrt.pop %v2934
    %v2938 = vrsqrt.pop %v2935
    %v2939 = vmul.f32 %v2915, %v2936
    %v2940 = vmul.f32 %v2916, %v2937
    %v2941 = vmul.f32 %v2917, %v2938
    %v2943 = vlaneseq
    %v2944 = vshrl.u32 %v2943, 7
    %v2945 = vsub.s32 0, %v2944
    %v2946 = vrot.slane %v2900, %v2945
    %v2948 = vmul.f32 %v2939, %v2946
    %v2949 = vmul.f32 %v2940, %v2946
    %v2950 = vmul.f32 %v2941, %v2946
    %v2952 = vlaneseq
    %v2953 = vshrl.u32 %v2952, 7
    %v2954 = vsub.s32 0, %v2953
    %v2955 = vrot.slane %v2902, %v2954
    %v2957 = vadd.f32 %v2948, %v2955
    %v2958 = vadd.f32 %v2949, %v2955
    %v2959 = vadd.f32 %v2950, %v2955
    %s2960 = scalar_lea.vmem %s15, 16
    %v2961 = vld [vmem:[%s2960] sm:$0xf]
    %v2962 = vld [vmem:[%s2960 + $0x4] sm:$0xf]
    %v2963 = vld [vmem:[%s2960 + $0x8] sm:$0xf]
    %v2964 = vld [vmem:[%s2960 + $0xc] sm:$0xf]
    %s2965 = scalar_lea.vmem %s16, 1
    %v2966 = vld [vmem:[%s2965] sm:$0x1]
    %v2967 = vpack.c.bf16 %v2958, %v2957
    %v2968 = vpack.c.bf16 %v2959, %v2959
    %v2970 = vlaneseq
    %v2971 = vshrl.u32 %v2970, 7
    %v2972 = vsub.s32 0, %v2971
    %v2973 = vrot.slane %v2966, %v2972
    %v2979 = vunpack.c.l.b16 %v2961
    %v2980 = vunpack.c.l.b16 %v2962
    %v2981 = vunpack.c.l.b16 %v2963
    %v2982 = vunpack.c.l.b16 %v2964
    %v2983 = vpack.c.b16 %v2980, %v2979
    %v2984 = vpack.c.b16 %v2982, %v2981
    %v2988 = vsel %vm185, %v2967, 0
    %v2991 = vsel %vm185, %v2968, 0
    %2993 = vmatprep.subr.bf16.mxu0 0
    %2994 = vmatpush1.bf16.msra.mxu0 0
    %2995 = vmatprep.subr.bf16.mxu0 0
    %2996 = vmatpush1.bf16.msra.mxu0 0
    %2997 = vmatprep.subr.bf16.mxu0 0
    %2998 = vmatpush1.bf16.msra.mxu0 0
    %2999 = vmatprep.subr.bf16.mxu0 0
    %3000 = vmatpush1.bf16.msra.mxu0 0
    %3001 = vmatprep.subr.bf16.mxu0 0
    %3002 = vmatpush1.bf16.msra.mxu0 0
    %3003 = vmatprep.subr.bf16.mxu0 0
    %3004 = vmatpush1.bf16.msra.mxu0 0
    %3005 = vmatprep.subr.bf16.mxu0 0
    %3006 = vmatpush1.bf16.msra.mxu0 %v2984
    %3007 = vmatprep.subr.bf16.mxu0 0
    %3008 = vmatpush1.bf16.msra.mxu0 %v2983
    %3009 = vmatprep.subr.bf16.mxu0 0
    %3010 = vmatpush2.bf16.msra.mxu0 0
    %3011 = vmatprep.subr.bf16.mxu0 0
    %3012 = vmatpush2.bf16.msra.mxu0 0
    %3013 = vmatprep.subr.bf16.mxu0 0
    %3014 = vmatpush2.bf16.msra.mxu0 0
    %3015 = vmatprep.subr.bf16.mxu0 0
    %3016 = vmatpush2.bf16.msra.mxu0 0
    %3017 = vmatprep.subr.bf16.mxu0 0
    %3018 = vmatpush2.bf16.msra.mxu0 0
    %3019 = vmatprep.subr.bf16.mxu0 0
    %3020 = vmatpush2.bf16.msra.mxu0 0
    %3021 = vmatprep.subr.bf16.mxu0 0
    %3022 = vmatpush2.bf16.msra.mxu0 0
    %3023 = vmatprep.subr.bf16.mxu0 0
    %3024 = vmatpush2.bf16.msra.mxu0 0
    %3025 = vmatprep.mubr.bf16.mxu0 0
    %3026 = vmatmul.mubr.bf16.gmra.mxu0 %v2988
    %v3027 = vpop.f32.mrf.mxu0
    %v3028 = vadd.f32 %v2973, %v3027
    %v3029 = vpop.f32.mrf.mxu0
    %v3030 = vpop.f32.mrf.mxu0
    %v3031 = vadd.f32 %v2973, %v3030
    %v3032 = vpop.f32.mrf.mxu0
    %3033 = vmatprep.mubr.bf16.mxu0 0
    %3034 = vmatmul.mubr.bf16.gmra.mxu0 %v2991
    %v3035 = vpop.f32.mrf.mxu0
    %v3036 = vadd.f32 %v2973, %v3035
    %v3037 = vpop.f32.mrf.mxu0
    %v3038 = vpop.f32.mrf.mxu0
    %v3039 = vpop.f32.mrf.mxu0
    %3040 = vdwg.mxu0
    %s3041 = scalar_lea.vmem %s17, 16
    %v3042 = vld [vmem:[%s3041] sm:$0xf]
    %v3043 = vld [vmem:[%s3041 + $0x4] sm:$0xf]
    %v3044 = vld [vmem:[%s3041 + $0x8] sm:$0xf]
    %v3045 = vld [vmem:[%s3041 + $0xc] sm:$0xf]
    %s3046 = scalar_lea.vmem %s18, 1
    %v3047 = vld [vmem:[%s3046] sm:$0x1]
    %v3048 = vpack.c.bf16 %v3031, %v3028
    %v3049 = vpack.c.bf16 %v3036, %v3036
    %3052 = vrot.lane.b32.xlu0 %v3048, 96
    %v3053 = vpop.permute.xlu0 %3052
    %3054 = vrot.lane.b32.xlu0 %v3049, 96
    %v3055 = vpop.permute.xlu0 %3054
    %v3057 = vsel %vm306, %v3048, 0
    %v3060 = vsel %vm306, %v3049, 0
    %v3063 = vsel %vm306, %v3053, 0
    %v3066 = vsel %vm306, %v3055, 0
    %3068 = vmatprep.subr.bf16.mxu0 0
    %3069 = vmatpush1.bf16.xpose.msra.mxu0 0
    %3070 = vmatprep.subr.bf16.mxu0 0
    %3071 = vmatpush1.bf16.xpose.msra.mxu0 0
    %3072 = vmatprep.subr.bf16.mxu0 0
    %3073 = vmatpush1.bf16.xpose.msra.mxu0 0
    %3074 = vmatprep.subr.bf16.mxu0 0
    %3075 = vmatpush1.bf16.xpose.msra.mxu0 0
    %3076 = vmatprep.subr.bf16.mxu0 0
    %3077 = vmatpush1.bf16.xpose.msra.mxu0 0
    %3078 = vmatprep.subr.bf16.mxu0 0
    %3079 = vmatpush1.bf16.xpose.msra.mxu0 0
    %3080 = vmatprep.subr.bf16.mxu0 0
    %3081 = vmatpush1.bf16.xpose.msra.mxu0 %v3066
    %3082 = vmatprep.subr.bf16.mxu0 0
    %3083 = vmatpush1.bf16.xpose.msra.mxu0 %v3063
    %3084 = vmatprep.subr.bf16.mxu0 0
    %3085 = vmatpush2.bf16.xpose.msra.mxu0 0
    %3086 = vmatprep.subr.bf16.mxu0 0
    %3087 = vmatpush2.bf16.xpose.msra.mxu0 0
    %3088 = vmatprep.subr.bf16.mxu0 0
    %3089 = vmatpush2.bf16.xpose.msra.mxu0 0
    %3090 = vmatprep.subr.bf16.mxu0 0
    %3091 = vmatpush2.bf16.xpose.msra.mxu0 0
    %3092 = vmatprep.subr.bf16.mxu0 0
    %3093 = vmatpush2.bf16.xpose.msra.mxu0 0
    %3094 = vmatprep.subr.bf16.mxu0 0
    %3095 = vmatpush2.bf16.xpose.msra.mxu0 0
    %3096 = vmatprep.subr.bf16.mxu0 0
    %3097 = vmatpush2.bf16.xpose.msra.mxu0 0
    %3098 = vmatprep.subr.bf16.mxu0 0
    %3099 = vmatpush2.bf16.xpose.msra.mxu0 0
    %3100 = vmatprep.mubr.bf16.mxu0 0
    %3101 = vmatmul.mubr.bf16.gmra.mxu0 %v3057
    %v3102 = vpop.f32.mrf.mxu0
    %v3103 = vadd.f32 %v180, %v3102
    %v3104 = vpop.f32.mrf.mxu0
    %v3105 = vpop.f32.mrf.mxu0
    %v3106 = vadd.f32 %v181, %v3105
    %v3107 = vpop.f32.mrf.mxu0
    %3108 = vmatprep.mubr.bf16.mxu0 0
    %3109 = vmatmul.mubr.bf16.gmra.mxu0 %v3060
    %v3110 = vpop.f32.mrf.mxu0
    %v3111 = vadd.f32 %v182, %v3110
    %v3112 = vpop.f32.mrf.mxu0
    %v3113 = vpop.f32.mrf.mxu0
    %v3114 = vpop.f32.mrf.mxu0
    %3115 = vdwg.mxu0
    %v3116 = vsel %vm1112, %v3103, -inf
    %3117 = vmax.xlane.f32.xlu0 %v3116
    %v3118 = vpop.xlane.xlu0 %3117
    %v3119 = vsel %vm1112, %v3106, -inf
    %3120 = vmax.xlane.f32.xlu0 %v3119
    %v3121 = vpop.xlane.xlu0 %3120
    %v3122 = vsel %vm1119, %v3111, -inf
    %3123 = vmax.xlane.f32.xlu0 %v3122
    %v3124 = vpop.xlane.xlu0 %3123
    %v3125 = vsub.f32 %v3103, %v3118
    %v3126 = vsub.f32 %v3106, %v3121
    %v3127 = vsub.f32 %v3111, %v3124
    %v3128 = vmul.f32 %v3125, 1.442695
    %v3129 = vpow.pop %v3128
    %v3130 = vmul.f32 %v3126, 1.442695
    %v3131 = vpow.pop %v3130
    %v3132 = vmul.f32 %v3127, 1.442695
    %v3133 = vpow.pop %v3132
    %v3134 = vsel %vm1112, %v3129, 0.0
    %3135 = vadd.xlane.f32.xlu0 %v3134
    %v3136 = vpop.xlane.xlu0 %3135
    %v3137 = vsel %vm1112, %v3131, 0.0
    %3138 = vadd.xlane.f32.xlu0 %v3137
    %v3139 = vpop.xlane.xlu0 %3138
    %v3140 = vsel %vm1119, %v3133, 0.0
    %3141 = vadd.xlane.f32.xlu0 %v3140
    %v3142 = vpop.xlane.xlu0 %3141
    %v3143 = vrcp.pop %v3136
    %v3144 = vrcp.pop %v3139
    %v3145 = vrcp.pop %v3142
    %v3146 = vmul.f32 %v3129, %v3143
    %v3147 = vmul.f32 %v3131, %v3144
    %v3148 = vmul.f32 %v3133, %v3145
    %v3149 = vpack.c.bf16 %v3147, %v3146
    %v3150 = vpack.c.bf16 %v3148, %v3148
    %3151 = vrot.lane.b32.xlu0 %v3048, 64
    %v3152 = vpop.permute.xlu0 %3151
    %3153 = vrot.lane.b32.xlu0 %v3049, 64
    %v3154 = vpop.permute.xlu0 %3153
    %v3157 = vsel %vm1112, %v3149, 0
    %v3160 = vsel %vm1112, %v3150, 0
    %v3163 = vsel %vm886, %v3154, 0
    %3165 = vmatprep.subr.bf16.mxu0 0
    %3166 = vmatpush1.bf16.msra.mxu0 0
    %3167 = vmatprep.subr.bf16.mxu0 0
    %3168 = vmatpush1.bf16.msra.mxu0 0
    %3169 = vmatprep.subr.bf16.mxu0 0
    %3170 = vmatpush1.bf16.msra.mxu0 0
    %3171 = vmatprep.subr.bf16.mxu0 0
    %3172 = vmatpush1.bf16.msra.mxu0 0
    %3173 = vmatprep.subr.bf16.mxu0 0
    %3174 = vmatpush1.bf16.msra.mxu0 0
    %3175 = vmatprep.subr.bf16.mxu0 0
    %3176 = vmatpush1.bf16.msra.mxu0 0
    %3177 = vmatprep.subr.bf16.mxu0 0
    %3178 = vmatpush1.bf16.msra.mxu0 %v3163
    %3179 = vmatprep.subr.bf16.mxu0 0
    %3180 = vmatpush1.bf16.msra.mxu0 %v3152
    %3181 = vmatprep.subr.bf16.mxu0 0
    %3182 = vmatpush2.bf16.msra.mxu0 0
    %3183 = vmatprep.subr.bf16.mxu0 0
    %3184 = vmatpush2.bf16.msra.mxu0 0
    %3185 = vmatprep.subr.bf16.mxu0 0
    %3186 = vmatpush2.bf16.msra.mxu0 0
    %3187 = vmatprep.subr.bf16.mxu0 0
    %3188 = vmatpush2.bf16.msra.mxu0 0
    %3189 = vmatprep.subr.bf16.mxu0 0
    %3190 = vmatpush2.bf16.msra.mxu0 0
    %3191 = vmatprep.subr.bf16.mxu0 0
    %3192 = vmatpush2.bf16.msra.mxu0 0
    %3193 = vmatprep.subr.bf16.mxu0 0
    %3194 = vmatpush2.bf16.msra.mxu0 0
    %3195 = vmatprep.subr.bf16.mxu0 0
    %3196 = vmatpush2.bf16.msra.mxu0 0
    %3197 = vmatprep.mubr.bf16.mxu0 0
    %3198 = vmatmul.mubr.bf16.gmra.mxu0 %v3157
    %v3199 = vpop.f32.mrf.mxu0
    %v3200 = vadd.f32 0.0, %v3199
    %v3201 = vpop.f32.mrf.mxu0
    %v3202 = vpop.f32.mrf.mxu0
    %v3203 = vadd.f32 0.0, %v3202
    %v3204 = vpop.f32.mrf.mxu0
    %3205 = vmatprep.mubr.bf16.mxu0 0
    %3206 = vmatmul.mubr.bf16.gmra.mxu0 %v3160
    %v3207 = vpop.f32.mrf.mxu0
    %v3208 = vadd.f32 0.0, %v3207
    %v3209 = vpop.f32.mrf.mxu0
    %v3210 = vpop.f32.mrf.mxu0
    %v3211 = vpop.f32.mrf.mxu0
    %3212 = vdwg.mxu0
    %3213 = vrot.lane.b32.xlu0 %v3048, 120
    %v3214 = vpop.permute.xlu0 %3213
    %3215 = vrot.lane.b32.xlu0 %v3049, 120
    %v3216 = vpop.permute.xlu0 %3215
    %3217 = vrot.lane.b32.xlu0 %v3048, 88
    %v3218 = vpop.permute.xlu0 %3217
    %3219 = vrot.lane.b32.xlu0 %v3049, 88
    %v3220 = vpop.permute.xlu0 %3219
    %v3222 = vsel %vm306, %v3214, 0
    %v3225 = vsel %vm306, %v3216, 0
    %v3228 = vsel %vm306, %v3218, 0
    %v3231 = vsel %vm306, %v3220, 0
    %3233 = vmatprep.subr.bf16.mxu0 0
    %3234 = vmatpush1.bf16.xpose.msra.mxu0 0
    %3235 = vmatprep.subr.bf16.mxu0 0
    %3236 = vmatpush1.bf16.xpose.msra.mxu0 0
    %3237 = vmatprep.subr.bf16.mxu0 0
    %3238 = vmatpush1.bf16.xpose.msra.mxu0 0
    %3239 = vmatprep.subr.bf16.mxu0 0
    %3240 = vmatpush1.bf16.xpose.msra.mxu0 0
    %3241 = vmatprep.subr.bf16.mxu0 0
    %3242 = vmatpush1.bf16.xpose.msra.mxu0 0
    %3243 = vmatprep.subr.bf16.mxu0 0
    %3244 = vmatpush1.bf16.xpose.msra.mxu0 0
    %3245 = vmatprep.subr.bf16.mxu0 0
    %3246 = vmatpush1.bf16.xpose.msra.mxu0 %v3231
    %3247 = vmatprep.subr.bf16.mxu0 0
    %3248 = vmatpush1.bf16.xpose.msra.mxu0 %v3228
    %3249 = vmatprep.subr.bf16.mxu0 0
    %3250 = vmatpush2.bf16.xpose.msra.mxu0 0
    %3251 = vmatprep.subr.bf16.mxu0 0
    %3252 = vmatpush2.bf16.xpose.msra.mxu0 0
    %3253 = vmatprep.subr.bf16.mxu0 0
    %3254 = vmatpush2.bf16.xpose.msra.mxu0 0
    %3255 = vmatprep.subr.bf16.mxu0 0
    %3256 = vmatpush2.bf16.xpose.msra.mxu0 0
    %3257 = vmatprep.subr.bf16.mxu0 0
    %3258 = vmatpush2.bf16.xpose.msra.mxu0 0
    %3259 = vmatprep.subr.bf16.mxu0 0
    %3260 = vmatpush2.bf16.xpose.msra.mxu0 0
    %3261 = vmatprep.subr.bf16.mxu0 0
    %3262 = vmatpush2.bf16.xpose.msra.mxu0 0
    %3263 = vmatprep.subr.bf16.mxu0 0
    %3264 = vmatpush2.bf16.xpose.msra.mxu0 0
    %3265 = vmatprep.mubr.bf16.mxu0 0
    %3266 = vmatmul.mubr.bf16.gmra.mxu0 %v3222
    %v3267 = vpop.f32.mrf.mxu0
    %v3268 = vadd.f32 %v180, %v3267
    %v3269 = vpop.f32.mrf.mxu0
    %v3270 = vpop.f32.mrf.mxu0
    %v3271 = vadd.f32 %v181, %v3270
    %v3272 = vpop.f32.mrf.mxu0
    %3273 = vmatprep.mubr.bf16.mxu0 0
    %3274 = vmatmul.mubr.bf16.gmra.mxu0 %v3225
    %v3275 = vpop.f32.mrf.mxu0
    %v3276 = vadd.f32 %v182, %v3275
    %v3277 = vpop.f32.mrf.mxu0
    %v3278 = vpop.f32.mrf.mxu0
    %v3279 = vpop.f32.mrf.mxu0
    %3280 = vdwg.mxu0
    %v3281 = vsel %vm1112, %v3268, -inf
    %3282 = vmax.xlane.f32.xlu0 %v3281
    %v3283 = vpop.xlane.xlu0 %3282
    %v3284 = vsel %vm1112, %v3271, -inf
    %3285 = vmax.xlane.f32.xlu0 %v3284
    %v3286 = vpop.xlane.xlu0 %3285
    %v3287 = vsel %vm1119, %v3276, -inf
    %3288 = vmax.xlane.f32.xlu0 %v3287
    %v3289 = vpop.xlane.xlu0 %3288
    %v3290 = vsub.f32 %v3268, %v3283
    %v3291 = vsub.f32 %v3271, %v3286
    %v3292 = vsub.f32 %v3276, %v3289
    %v3293 = vmul.f32 %v3290, 1.442695
    %v3294 = vpow.pop %v3293
    %v3295 = vmul.f32 %v3291, 1.442695
    %v3296 = vpow.pop %v3295
    %v3297 = vmul.f32 %v3292, 1.442695
    %v3298 = vpow.pop %v3297
    %v3299 = vsel %vm1112, %v3294, 0.0
    %3300 = vadd.xlane.f32.xlu0 %v3299
    %v3301 = vpop.xlane.xlu0 %3300
    %v3302 = vsel %vm1112, %v3296, 0.0
    %3303 = vadd.xlane.f32.xlu0 %v3302
    %v3304 = vpop.xlane.xlu0 %3303
    %v3305 = vsel %vm1119, %v3298, 0.0
    %3306 = vadd.xlane.f32.xlu0 %v3305
    %v3307 = vpop.xlane.xlu0 %3306
    %v3308 = vrcp.pop %v3301
    %v3309 = vrcp.pop %v3304
    %v3310 = vrcp.pop %v3307
    %v3311 = vmul.f32 %v3294, %v3308
    %v3312 = vmul.f32 %v3296, %v3309
    %v3313 = vmul.f32 %v3298, %v3310
    %v3314 = vpack.c.bf16 %v3312, %v3311
    %v3315 = vpack.c.bf16 %v3313, %v3313
    %3316 = vrot.lane.b32.xlu0 %v3048, 56
    %v3317 = vpop.permute.xlu0 %3316
    %3318 = vrot.lane.b32.xlu0 %v3049, 56
    %v3319 = vpop.permute.xlu0 %3318
    %v3322 = vsel %vm1112, %v3314, 0
    %v3325 = vsel %vm1112, %v3315, 0
    %v3328 = vsel %vm886, %v3319, 0
    %3330 = vmatprep.subr.bf16.mxu0 0
    %3331 = vmatpush1.bf16.msra.mxu0 0
    %3332 = vmatprep.subr.bf16.mxu0 0
    %3333 = vmatpush1.bf16.msra.mxu0 0
    %3334 = vmatprep.subr.bf16.mxu0 0
    %3335 = vmatpush1.bf16.msra.mxu0 0
    %3336 = vmatprep.subr.bf16.mxu0 0
    %3337 = vmatpush1.bf16.msra.mxu0 0
    %3338 = vmatprep.subr.bf16.mxu0 0
    %3339 = vmatpush1.bf16.msra.mxu0 0
    %3340 = vmatprep.subr.bf16.mxu0 0
    %3341 = vmatpush1.bf16.msra.mxu0 0
    %3342 = vmatprep.subr.bf16.mxu0 0
    %3343 = vmatpush1.bf16.msra.mxu0 %v3328
    %3344 = vmatprep.subr.bf16.mxu0 0
    %3345 = vmatpush1.bf16.msra.mxu0 %v3317
    %3346 = vmatprep.subr.bf16.mxu0 0
    %3347 = vmatpush2.bf16.msra.mxu0 0
    %3348 = vmatprep.subr.bf16.mxu0 0
    %3349 = vmatpush2.bf16.msra.mxu0 0
    %3350 = vmatprep.subr.bf16.mxu0 0
    %3351 = vmatpush2.bf16.msra.mxu0 0
    %3352 = vmatprep.subr.bf16.mxu0 0
    %3353 = vmatpush2.bf16.msra.mxu0 0
    %3354 = vmatprep.subr.bf16.mxu0 0
    %3355 = vmatpush2.bf16.msra.mxu0 0
    %3356 = vmatprep.subr.bf16.mxu0 0
    %3357 = vmatpush2.bf16.msra.mxu0 0
    %3358 = vmatprep.subr.bf16.mxu0 0
    %3359 = vmatpush2.bf16.msra.mxu0 0
    %3360 = vmatprep.subr.bf16.mxu0 0
    %3361 = vmatpush2.bf16.msra.mxu0 0
    %3362 = vmatprep.mubr.bf16.mxu0 0
    %3363 = vmatmul.mubr.bf16.gmra.mxu0 %v3322
    %v3364 = vpop.f32.mrf.mxu0
    %v3365 = vadd.f32 0.0, %v3364
    %v3366 = vpop.f32.mrf.mxu0
    %v3367 = vpop.f32.mrf.mxu0
    %v3368 = vadd.f32 0.0, %v3367
    %v3369 = vpop.f32.mrf.mxu0
    %3370 = vmatprep.mubr.bf16.mxu0 0
    %3371 = vmatmul.mubr.bf16.gmra.mxu0 %v3325
    %v3372 = vpop.f32.mrf.mxu0
    %v3373 = vadd.f32 0.0, %v3372
    %v3374 = vpop.f32.mrf.mxu0
    %v3375 = vpop.f32.mrf.mxu0
    %v3376 = vpop.f32.mrf.mxu0
    %3377 = vdwg.mxu0
    %3378 = vrot.lane.b32.xlu0 %v3048, 112
    %v3379 = vpop.permute.xlu0 %3378
    %3380 = vrot.lane.b32.xlu0 %v3049, 112
    %v3381 = vpop.permute.xlu0 %3380
    %3382 = vrot.lane.b32.xlu0 %v3048, 80
    %v3383 = vpop.permute.xlu0 %3382
    %3384 = vrot.lane.b32.xlu0 %v3049, 80
    %v3385 = vpop.permute.xlu0 %3384
    %v3387 = vsel %vm306, %v3379, 0
    %v3390 = vsel %vm306, %v3381, 0
    %v3393 = vsel %vm306, %v3383, 0
    %v3396 = vsel %vm306, %v3385, 0
    %3398 = vmatprep.subr.bf16.mxu0 0
    %3399 = vmatpush1.bf16.xpose.msra.mxu0 0
    %3400 = vmatprep.subr.bf16.mxu0 0
    %3401 = vmatpush1.bf16.xpose.msra.mxu0 0
    %3402 = vmatprep.subr.bf16.mxu0 0
    %3403 = vmatpush1.bf16.xpose.msra.mxu0 0
    %3404 = vmatprep.subr.bf16.mxu0 0
    %3405 = vmatpush1.bf16.xpose.msra.mxu0 0
    %3406 = vmatprep.subr.bf16.mxu0 0
    %3407 = vmatpush1.bf16.xpose.msra.mxu0 0
    %3408 = vmatprep.subr.bf16.mxu0 0
    %3409 = vmatpush1.bf16.xpose.msra.mxu0 0
    %3410 = vmatprep.subr.bf16.mxu0 0
    %3411 = vmatpush1.bf16.xpose.msra.mxu0 %v3396
    %3412 = vmatprep.subr.bf16.mxu0 0
    %3413 = vmatpush1.bf16.xpose.msra.mxu0 %v3393
    %3414 = vmatprep.subr.bf16.mxu0 0
    %3415 = vmatpush2.bf16.xpose.msra.mxu0 0
    %3416 = vmatprep.subr.bf16.mxu0 0
    %3417 = vmatpush2.bf16.xpose.msra.mxu0 0
    %3418 = vmatprep.subr.bf16.mxu0 0
    %3419 = vmatpush2.bf16.xpose.msra.mxu0 0
    %3420 = vmatprep.subr.bf16.mxu0 0
    %3421 = vmatpush2.bf16.xpose.msra.mxu0 0
    %3422 = vmatprep.subr.bf16.mxu0 0
    %3423 = vmatpush2.bf16.xpose.msra.mxu0 0
    %3424 = vmatprep.subr.bf16.mxu0 0
    %3425 = vmatpush2.bf16.xpose.msra.mxu0 0
    %3426 = vmatprep.subr.bf16.mxu0 0
    %3427 = vmatpush2.bf16.xpose.msra.mxu0 0
    %3428 = vmatprep.subr.bf16.mxu0 0
    %3429 = vmatpush2.bf16.xpose.msra.mxu0 0
    %3430 = vmatprep.mubr.bf16.mxu0 0
    %3431 = vmatmul.mubr.bf16.gmra.mxu0 %v3387
    %v3432 = vpop.f32.mrf.mxu0
    %v3433 = vadd.f32 %v180, %v3432
    %v3434 = vpop.f32.mrf.mxu0
    %v3435 = vpop.f32.mrf.mxu0
    %v3436 = vadd.f32 %v181, %v3435
    %v3437 = vpop.f32.mrf.mxu0
    %3438 = vmatprep.mubr.bf16.mxu0 0
    %3439 = vmatmul.mubr.bf16.gmra.mxu0 %v3390
    %v3440 = vpop.f32.mrf.mxu0
    %v3441 = vadd.f32 %v182, %v3440
    %v3442 = vpop.f32.mrf.mxu0
    %v3443 = vpop.f32.mrf.mxu0
    %v3444 = vpop.f32.mrf.mxu0
    %3445 = vdwg.mxu0
    %v3446 = vsel %vm1112, %v3433, -inf
    %3447 = vmax.xlane.f32.xlu0 %v3446
    %v3448 = vpop.xlane.xlu0 %3447
    %v3449 = vsel %vm1112, %v3436, -inf
    %3450 = vmax.xlane.f32.xlu0 %v3449
    %v3451 = vpop.xlane.xlu0 %3450
    %v3452 = vsel %vm1119, %v3441, -inf
    %3453 = vmax.xlane.f32.xlu0 %v3452
    %v3454 = vpop.xlane.xlu0 %3453
    %v3455 = vsub.f32 %v3433, %v3448
    %v3456 = vsub.f32 %v3436, %v3451
    %v3457 = vsub.f32 %v3441, %v3454
    %v3458 = vmul.f32 %v3455, 1.442695
    %v3459 = vpow.pop %v3458
    %v3460 = vmul.f32 %v3456, 1.442695
    %v3461 = vpow.pop %v3460
    %v3462 = vmul.f32 %v3457, 1.442695
    %v3463 = vpow.pop %v3462
    %v3464 = vsel %vm1112, %v3459, 0.0
    %3465 = vadd.xlane.f32.xlu0 %v3464
    %v3466 = vpop.xlane.xlu0 %3465
    %v3467 = vsel %vm1112, %v3461, 0.0
    %3468 = vadd.xlane.f32.xlu0 %v3467
    %v3469 = vpop.xlane.xlu0 %3468
    %v3470 = vsel %vm1119, %v3463, 0.0
    %3471 = vadd.xlane.f32.xlu0 %v3470
    %v3472 = vpop.xlane.xlu0 %3471
    %v3473 = vrcp.pop %v3466
    %v3474 = vrcp.pop %v3469
    %v3475 = vrcp.pop %v3472
    %v3476 = vmul.f32 %v3459, %v3473
    %v3477 = vmul.f32 %v3461, %v3474
    %v3478 = vmul.f32 %v3463, %v3475
    %v3479 = vpack.c.bf16 %v3477, %v3476
    %v3480 = vpack.c.bf16 %v3478, %v3478
    %3481 = vrot.lane.b32.xlu0 %v3048, 48
    %v3482 = vpop.permute.xlu0 %3481
    %3483 = vrot.lane.b32.xlu0 %v3049, 48
    %v3484 = vpop.permute.xlu0 %3483
    %v3487 = vsel %vm1112, %v3479, 0
    %v3490 = vsel %vm1112, %v3480, 0
    %v3493 = vsel %vm886, %v3484, 0
    %3495 = vmatprep.subr.bf16.mxu0 0
    %3496 = vmatpush1.bf16.msra.mxu0 0
    %3497 = vmatprep.subr.bf16.mxu0 0
    %3498 = vmatpush1.bf16.msra.mxu0 0
    %3499 = vmatprep.subr.bf16.mxu0 0
    %3500 = vmatpush1.bf16.msra.mxu0 0
    %3501 = vmatprep.subr.bf16.mxu0 0
    %3502 = vmatpush1.bf16.msra.mxu0 0
    %3503 = vmatprep.subr.bf16.mxu0 0
    %3504 = vmatpush1.bf16.msra.mxu0 0
    %3505 = vmatprep.subr.bf16.mxu0 0
    %3506 = vmatpush1.bf16.msra.mxu0 0
    %3507 = vmatprep.subr.bf16.mxu0 0
    %3508 = vmatpush1.bf16.msra.mxu0 %v3493
    %3509 = vmatprep.subr.bf16.mxu0 0
    %3510 = vmatpush1.bf16.msra.mxu0 %v3482
    %3511 = vmatprep.subr.bf16.mxu0 0
    %3512 = vmatpush2.bf16.msra.mxu0 0
    %3513 = vmatprep.subr.bf16.mxu0 0
    %3514 = vmatpush2.bf16.msra.mxu0 0
    %3515 = vmatprep.subr.bf16.mxu0 0
    %3516 = vmatpush2.bf16.msra.mxu0 0
    %3517 = vmatprep.subr.bf16.mxu0 0
    %3518 = vmatpush2.bf16.msra.mxu0 0
    %3519 = vmatprep.subr.bf16.mxu0 0
    %3520 = vmatpush2.bf16.msra.mxu0 0
    %3521 = vmatprep.subr.bf16.mxu0 0
    %3522 = vmatpush2.bf16.msra.mxu0 0
    %3523 = vmatprep.subr.bf16.mxu0 0
    %3524 = vmatpush2.bf16.msra.mxu0 0
    %3525 = vmatprep.subr.bf16.mxu0 0
    %3526 = vmatpush2.bf16.msra.mxu0 0
    %3527 = vmatprep.mubr.bf16.mxu0 0
    %3528 = vmatmul.mubr.bf16.gmra.mxu0 %v3487
    %v3529 = vpop.f32.mrf.mxu0
    %v3530 = vadd.f32 0.0, %v3529
    %v3531 = vpop.f32.mrf.mxu0
    %v3532 = vpop.f32.mrf.mxu0
    %v3533 = vadd.f32 0.0, %v3532
    %v3534 = vpop.f32.mrf.mxu0
    %3535 = vmatprep.mubr.bf16.mxu0 0
    %3536 = vmatmul.mubr.bf16.gmra.mxu0 %v3490
    %v3537 = vpop.f32.mrf.mxu0
    %v3538 = vadd.f32 0.0, %v3537
    %v3539 = vpop.f32.mrf.mxu0
    %v3540 = vpop.f32.mrf.mxu0
    %v3541 = vpop.f32.mrf.mxu0
    %3542 = vdwg.mxu0
    %3543 = vrot.lane.b32.xlu0 %v3048, 104
    %v3544 = vpop.permute.xlu0 %3543
    %3545 = vrot.lane.b32.xlu0 %v3049, 104
    %v3546 = vpop.permute.xlu0 %3545
    %3547 = vrot.lane.b32.xlu0 %v3048, 72
    %v3548 = vpop.permute.xlu0 %3547
    %3549 = vrot.lane.b32.xlu0 %v3049, 72
    %v3550 = vpop.permute.xlu0 %3549
    %v3552 = vsel %vm306, %v3544, 0
    %v3555 = vsel %vm306, %v3546, 0
    %v3558 = vsel %vm306, %v3548, 0
    %v3561 = vsel %vm306, %v3550, 0
    %3563 = vmatprep.subr.bf16.mxu0 0
    %3564 = vmatpush1.bf16.xpose.msra.mxu0 0
    %3565 = vmatprep.subr.bf16.mxu0 0
    %3566 = vmatpush1.bf16.xpose.msra.mxu0 0
    %3567 = vmatprep.subr.bf16.mxu0 0
    %3568 = vmatpush1.bf16.xpose.msra.mxu0 0
    %3569 = vmatprep.subr.bf16.mxu0 0
    %3570 = vmatpush1.bf16.xpose.msra.mxu0 0
    %3571 = vmatprep.subr.bf16.mxu0 0
    %3572 = vmatpush1.bf16.xpose.msra.mxu0 0
    %3573 = vmatprep.subr.bf16.mxu0 0
    %3574 = vmatpush1.bf16.xpose.msra.mxu0 0
    %3575 = vmatprep.subr.bf16.mxu0 0
    %3576 = vmatpush1.bf16.xpose.msra.mxu0 %v3561
    %3577 = vmatprep.subr.bf16.mxu0 0
    %3578 = vmatpush1.bf16.xpose.msra.mxu0 %v3558
    %3579 = vmatprep.subr.bf16.mxu0 0
    %3580 = vmatpush2.bf16.xpose.msra.mxu0 0
    %3581 = vmatprep.subr.bf16.mxu0 0
    %3582 = vmatpush2.bf16.xpose.msra.mxu0 0
    %3583 = vmatprep.subr.bf16.mxu0 0
    %3584 = vmatpush2.bf16.xpose.msra.mxu0 0
    %3585 = vmatprep.subr.bf16.mxu0 0
    %3586 = vmatpush2.bf16.xpose.msra.mxu0 0
    %3587 = vmatprep.subr.bf16.mxu0 0
    %3588 = vmatpush2.bf16.xpose.msra.mxu0 0
    %3589 = vmatprep.subr.bf16.mxu0 0
    %3590 = vmatpush2.bf16.xpose.msra.mxu0 0
    %3591 = vmatprep.subr.bf16.mxu0 0
    %3592 = vmatpush2.bf16.xpose.msra.mxu0 0
    %3593 = vmatprep.subr.bf16.mxu0 0
    %3594 = vmatpush2.bf16.xpose.msra.mxu0 0
    %3595 = vmatprep.mubr.bf16.mxu0 0
    %3596 = vmatmul.mubr.bf16.gmra.mxu0 %v3552
    %v3597 = vpop.f32.mrf.mxu0
    %v3598 = vadd.f32 %v180, %v3597
    %v3599 = vpop.f32.mrf.mxu0
    %v3600 = vpop.f32.mrf.mxu0
    %v3601 = vadd.f32 %v181, %v3600
    %v3602 = vpop.f32.mrf.mxu0
    %3603 = vmatprep.mubr.bf16.mxu0 0
    %3604 = vmatmul.mubr.bf16.gmra.mxu0 %v3555
    %v3605 = vpop.f32.mrf.mxu0
    %v3606 = vadd.f32 %v182, %v3605
    %v3607 = vpop.f32.mrf.mxu0
    %v3608 = vpop.f32.mrf.mxu0
    %v3609 = vpop.f32.mrf.mxu0
    %3610 = vdwg.mxu0
    %v3611 = vsel %vm1112, %v3598, -inf
    %3612 = vmax.xlane.f32.xlu0 %v3611
    %v3613 = vpop.xlane.xlu0 %3612
    %v3614 = vsel %vm1112, %v3601, -inf
    %3615 = vmax.xlane.f32.xlu0 %v3614
    %v3616 = vpop.xlane.xlu0 %3615
    %v3617 = vsel %vm1119, %v3606, -inf
    %3618 = vmax.xlane.f32.xlu0 %v3617
    %v3619 = vpop.xlane.xlu0 %3618
    %v3620 = vsub.f32 %v3598, %v3613
    %v3621 = vsub.f32 %v3601, %v3616
    %v3622 = vsub.f32 %v3606, %v3619
    %v3623 = vmul.f32 %v3620, 1.442695
    %v3624 = vpow.pop %v3623
    %v3625 = vmul.f32 %v3621, 1.442695
    %v3626 = vpow.pop %v3625
    %v3627 = vmul.f32 %v3622, 1.442695
    %v3628 = vpow.pop %v3627
    %v3629 = vsel %vm1112, %v3624, 0.0
    %3630 = vadd.xlane.f32.xlu0 %v3629
    %v3631 = vpop.xlane.xlu0 %3630
    %v3632 = vsel %vm1112, %v3626, 0.0
    %3633 = vadd.xlane.f32.xlu0 %v3632
    %v3634 = vpop.xlane.xlu0 %3633
    %v3635 = vsel %vm1119, %v3628, 0.0
    %3636 = vadd.xlane.f32.xlu0 %v3635
    %v3637 = vpop.xlane.xlu0 %3636
    %v3638 = vrcp.pop %v3631
    %v3639 = vrcp.pop %v3634
    %v3640 = vrcp.pop %v3637
    %v3641 = vmul.f32 %v3624, %v3638
    %v3642 = vmul.f32 %v3626, %v3639
    %v3643 = vmul.f32 %v3628, %v3640
    %v3644 = vpack.c.bf16 %v3642, %v3641
    %v3645 = vpack.c.bf16 %v3643, %v3643
    %3646 = vrot.lane.b32.xlu0 %v3048, 40
    %v3647 = vpop.permute.xlu0 %3646
    %3648 = vrot.lane.b32.xlu0 %v3049, 40
    %v3649 = vpop.permute.xlu0 %3648
    %v3652 = vsel %vm1112, %v3644, 0
    %v3655 = vsel %vm1112, %v3645, 0
    %v3658 = vsel %vm886, %v3649, 0
    %3660 = vmatprep.subr.bf16.mxu0 0
    %3661 = vmatpush1.bf16.msra.mxu0 0
    %3662 = vmatprep.subr.bf16.mxu0 0
    %3663 = vmatpush1.bf16.msra.mxu0 0
    %3664 = vmatprep.subr.bf16.mxu0 0
    %3665 = vmatpush1.bf16.msra.mxu0 0
    %3666 = vmatprep.subr.bf16.mxu0 0
    %3667 = vmatpush1.bf16.msra.mxu0 0
    %3668 = vmatprep.subr.bf16.mxu0 0
    %3669 = vmatpush1.bf16.msra.mxu0 0
    %3670 = vmatprep.subr.bf16.mxu0 0
    %3671 = vmatpush1.bf16.msra.mxu0 0
    %3672 = vmatprep.subr.bf16.mxu0 0
    %3673 = vmatpush1.bf16.msra.mxu0 %v3658
    %3674 = vmatprep.subr.bf16.mxu0 0
    %3675 = vmatpush1.bf16.msra.mxu0 %v3647
    %3676 = vmatprep.subr.bf16.mxu0 0
    %3677 = vmatpush2.bf16.msra.mxu0 0
    %3678 = vmatprep.subr.bf16.mxu0 0
    %3679 = vmatpush2.bf16.msra.mxu0 0
    %3680 = vmatprep.subr.bf16.mxu0 0
    %3681 = vmatpush2.bf16.msra.mxu0 0
    %3682 = vmatprep.subr.bf16.mxu0 0
    %3683 = vmatpush2.bf16.msra.mxu0 0
    %3684 = vmatprep.subr.bf16.mxu0 0
    %3685 = vmatpush2.bf16.msra.mxu0 0
    %3686 = vmatprep.subr.bf16.mxu0 0
    %3687 = vmatpush2.bf16.msra.mxu0 0
    %3688 = vmatprep.subr.bf16.mxu0 0
    %3689 = vmatpush2.bf16.msra.mxu0 0
    %3690 = vmatprep.subr.bf16.mxu0 0
    %3691 = vmatpush2.bf16.msra.mxu0 0
    %3692 = vmatprep.mubr.bf16.mxu0 0
    %3693 = vmatmul.mubr.bf16.gmra.mxu0 %v3652
    %v3694 = vpop.f32.mrf.mxu0
    %v3695 = vadd.f32 0.0, %v3694
    %v3696 = vpop.f32.mrf.mxu0
    %v3697 = vpop.f32.mrf.mxu0
    %v3698 = vadd.f32 0.0, %v3697
    %v3699 = vpop.f32.mrf.mxu0
    %3700 = vmatprep.mubr.bf16.mxu0 0
    %3701 = vmatmul.mubr.bf16.gmra.mxu0 %v3655
    %v3702 = vpop.f32.mrf.mxu0
    %v3703 = vadd.f32 0.0, %v3702
    %v3704 = vpop.f32.mrf.mxu0
    %v3705 = vpop.f32.mrf.mxu0
    %v3706 = vpop.f32.mrf.mxu0
    %3707 = vdwg.mxu0
    %3711 = vrot.lane.b32.xlu0 %v3365, 8
    %v3712 = vpop.permute.xlu0 %3711
    %3713 = vrot.lane.b32.xlu0 %v3368, 8
    %v3714 = vpop.permute.xlu0 %3713
    %3715 = vrot.lane.b32.xlu0 %v3373, 8
    %v3716 = vpop.permute.xlu0 %3715
    %3723 = vrot.lane.b32.xlu0 %v3530, 16
    %v3724 = vpop.permute.xlu0 %3723
    %3725 = vrot.lane.b32.xlu0 %v3533, 16
    %v3726 = vpop.permute.xlu0 %3725
    %3727 = vrot.lane.b32.xlu0 %v3538, 16
    %v3728 = vpop.permute.xlu0 %3727
    %3735 = vrot.lane.b32.xlu0 %v3695, 24
    %v3736 = vpop.permute.xlu0 %3735
    %3737 = vrot.lane.b32.xlu0 %v3698, 24
    %v3738 = vpop.permute.xlu0 %3737
    %3739 = vrot.lane.b32.xlu0 %v3703, 24
    %v3740 = vpop.permute.xlu0 %3739
    %v3744 = vsel %vm306, %v3200, %v3712
    %v3745 = vsel %vm306, %v3203, %v3714
    %v3746 = vsel %vm306, %v3208, %v3716
    %v3747 = vsel %vm354, %v3744, %v3724
    %v3748 = vsel %vm354, %v3745, %v3726
    %v3749 = vsel %vm354, %v3746, %v3728
    %v3750 = vsel %vm816, %v3747, %v3736
    %v3751 = vsel %vm816, %v3748, %v3738
    %v3752 = vsel %vm816, %v3749, %v3740
    %v3753 = vpack.c.bf16 %v3751, %v3750
    %v3754 = vpack.c.bf16 %v3752, %v3752
    %v3756 = vlaneseq
    %v3757 = vshrl.u32 %v3756, 7
    %v3758 = vsub.s32 0, %v3757
    %v3759 = vrot.slane %v3047, %v3758
    %v3765 = vunpack.c.l.b16 %v3042
    %v3766 = vunpack.c.l.b16 %v3043
    %v3767 = vunpack.c.l.b16 %v3044
    %v3768 = vunpack.c.l.b16 %v3045
    %v3769 = vpack.c.b16 %v3766, %v3765
    %v3770 = vpack.c.b16 %v3768, %v3767
    %v3774 = vsel %vm185, %v3753, 0
    %v3777 = vsel %vm185, %v3754, 0
    %3779 = vmatprep.subr.bf16.mxu0 0
    %3780 = vmatpush1.bf16.msra.mxu0 0
    %3781 = vmatprep.subr.bf16.mxu0 0
    %3782 = vmatpush1.bf16.msra.mxu0 0
    %3783 = vmatprep.subr.bf16.mxu0 0
    %3784 = vmatpush1.bf16.msra.mxu0 0
    %3785 = vmatprep.subr.bf16.mxu0 0
    %3786 = vmatpush1.bf16.msra.mxu0 0
    %3787 = vmatprep.subr.bf16.mxu0 0
    %3788 = vmatpush1.bf16.msra.mxu0 0
    %3789 = vmatprep.subr.bf16.mxu0 0
    %3790 = vmatpush1.bf16.msra.mxu0 0
    %3791 = vmatprep.subr.bf16.mxu0 0
    %3792 = vmatpush1.bf16.msra.mxu0 %v3770
    %3793 = vmatprep.subr.bf16.mxu0 0
    %3794 = vmatpush1.bf16.msra.mxu0 %v3769
    %3795 = vmatprep.subr.bf16.mxu0 0
    %3796 = vmatpush2.bf16.msra.mxu0 0
    %3797 = vmatprep.subr.bf16.mxu0 0
    %3798 = vmatpush2.bf16.msra.mxu0 0
    %3799 = vmatprep.subr.bf16.mxu0 0
    %3800 = vmatpush2.bf16.msra.mxu0 0
    %3801 = vmatprep.subr.bf16.mxu0 0
    %3802 = vmatpush2.bf16.msra.mxu0 0
    %3803 = vmatprep.subr.bf16.mxu0 0
    %3804 = vmatpush2.bf16.msra.mxu0 0
    %3805 = vmatprep.subr.bf16.mxu0 0
    %3806 = vmatpush2.bf16.msra.mxu0 0
    %3807 = vmatprep.subr.bf16.mxu0 0
    %3808 = vmatpush2.bf16.msra.mxu0 0
    %3809 = vmatprep.subr.bf16.mxu0 0
    %3810 = vmatpush2.bf16.msra.mxu0 0
    %3811 = vmatprep.mubr.bf16.mxu0 0
    %3812 = vmatmul.mubr.bf16.gmra.mxu0 %v3774
    %v3813 = vpop.f32.mrf.mxu0
    %v3814 = vadd.f32 %v3759, %v3813
    %v3815 = vpop.f32.mrf.mxu0
    %v3816 = vpop.f32.mrf.mxu0
    %v3817 = vpop.f32.mrf.mxu0
    %3818 = vmatprep.mubr.bf16.mxu0 0
    %3819 = vmatmul.mubr.bf16.gmra.mxu0 %v3777
    %v3820 = vpop.f32.mrf.mxu0
    %v3821 = vpop.f32.mrf.mxu0
    %v3822 = vpop.f32.mrf.mxu0
    %v3823 = vpop.f32.mrf.mxu0
    %3824 = vdwg.mxu0
    %v3826 = vrot.slane %v3814, 1
    %v3828 = vadd.f32 %v3814, %v3826
    %v3829 = vmul.f32 %v3828, 0.5
    %v3831 = vrot.slane %v3829, 1
    %v3833 = vsel %vm884, %v3829, %v3831
    %v3834 = vadd.f32 %v2142, %v3833
    %s3835 = scalar_lea.vmem %s19, 1
    %v3836 = vld [vmem:[%s3835] sm:$0x1]
    %s3837 = scalar_lea.vmem %s20, 1
    %v3838 = vld [vmem:[%s3837] sm:$0x1]
    %v3839 = vsel %vm1863, %v3834, 0.0
    %3840 = vadd.xlane.f32.xlu0 %v3839
    %v3841 = vpop.xlane.xlu0 %3840
    %v3842 = vmul.f32 %v3841, %v192
    %v3843 = vsub.f32 %v3834, %v3842
    %v3844 = vmul.f32 %v3843, %v3843
    %v3845 = vsel %vm1863, %v3844, 0.0
    %3846 = vadd.xlane.f32.xlu0 %v3845
    %v3847 = vpop.xlane.xlu0 %3846
    %v3848 = vmul.f32 %v3847, %v192
    %v3849 = vadd.f32 %v3848, 1e-05
    %v3850 = vrsqrt.pop %v3849
    %v3851 = vmul.f32 %v3843, %v3850
    %v3853 = vlaneseq
    %v3854 = vshrl.u32 %v3853, 7
    %v3855 = vsub.s32 0, %v3854
    %v3856 = vrot.slane %v3836, %v3855
    %v3858 = vmul.f32 %v3851, %v3856
    %v3860 = vlaneseq
    %v3861 = vshrl.u32 %v3860, 7
    %v3862 = vsub.s32 0, %v3861
    %v3863 = vrot.slane %v3838, %v3862
    %v3865 = vadd.f32 %v3858, %v3863
    %s3866 = scalar_lea.vmem %s21, 16
    %v3867 = vld [vmem:[%s3866] sm:$0xf]
    %v3868 = vld [vmem:[%s3866 + $0x4] sm:$0xf]
    %v3869 = vld [vmem:[%s3866 + $0x8] sm:$0xf]
    %v3870 = vld [vmem:[%s3866 + $0xc] sm:$0xf]
    %s3871 = scalar_lea.vmem %s22, 1
    %v3872 = vld [vmem:[%s3871] sm:$0x1]
    %v3873 = vpack.c.bf16 %v3865, %v3865
    %v3875 = vlaneseq
    %v3876 = vshrl.u32 %v3875, 7
    %v3877 = vsub.s32 0, %v3876
    %v3878 = vrot.slane %v3872, %v3877
    %v3884 = vunpack.c.l.b16 %v3867
    %v3885 = vunpack.c.l.b16 %v3868
    %v3886 = vunpack.c.l.b16 %v3869
    %v3887 = vunpack.c.l.b16 %v3870
    %v3888 = vpack.c.b16 %v3885, %v3884
    %v3889 = vpack.c.b16 %v3887, %v3886
    %v3893 = vsel %vm185, %v3873, 0
    %3895 = vmatprep.subr.bf16.mxu0 0
    %3896 = vmatpush1.bf16.msra.mxu0 0
    %3897 = vmatprep.subr.bf16.mxu0 0
    %3898 = vmatpush1.bf16.msra.mxu0 0
    %3899 = vmatprep.subr.bf16.mxu0 0
    %3900 = vmatpush1.bf16.msra.mxu0 0
    %3901 = vmatprep.subr.bf16.mxu0 0
    %3902 = vmatpush1.bf16.msra.mxu0 0
    %3903 = vmatprep.subr.bf16.mxu0 0
    %3904 = vmatpush1.bf16.msra.mxu0 0
    %3905 = vmatprep.subr.bf16.mxu0 0
    %3906 = vmatpush1.bf16.msra.mxu0 0
    %3907 = vmatprep.subr.bf16.mxu0 0
    %3908 = vmatpush1.bf16.msra.mxu0 %v3889
    %3909 = vmatprep.subr.bf16.mxu0 0
    %3910 = vmatpush1.bf16.msra.mxu0 %v3888
    %3911 = vmatprep.subr.bf16.mxu0 0
    %3912 = vmatpush2.bf16.msra.mxu0 0
    %3913 = vmatprep.subr.bf16.mxu0 0
    %3914 = vmatpush2.bf16.msra.mxu0 0
    %3915 = vmatprep.subr.bf16.mxu0 0
    %3916 = vmatpush2.bf16.msra.mxu0 0
    %3917 = vmatprep.subr.bf16.mxu0 0
    %3918 = vmatpush2.bf16.msra.mxu0 0
    %3919 = vmatprep.subr.bf16.mxu0 0
    %3920 = vmatpush2.bf16.msra.mxu0 0
    %3921 = vmatprep.subr.bf16.mxu0 0
    %3922 = vmatpush2.bf16.msra.mxu0 0
    %3923 = vmatprep.subr.bf16.mxu0 0
    %3924 = vmatpush2.bf16.msra.mxu0 0
    %3925 = vmatprep.subr.bf16.mxu0 0
    %3926 = vmatpush2.bf16.msra.mxu0 0
    %3927 = vmatprep.mubr.bf16.mxu0 0
    %3928 = vmatmul.mubr.bf16.gmra.mxu0 %v3893
    %v3929 = vpop.f32.mrf.mxu0
    %v3930 = vadd.f32 %v3878, %v3929
    %v3931 = vpop.f32.mrf.mxu0
    %v3932 = vpop.f32.mrf.mxu0
    %v3933 = vpop.f32.mrf.mxu0
    %3934 = vdwg.mxu0
    %v3935 = vmul.f32 %v3930, 0.5
    %v3936 = vmul.f32 %v3930, 0.044715
    %v3937 = vmul.f32 %v3936, %v3930
    %v3938 = vmul.f32 %v3937, %v3930
    %v3939 = vadd.f32 %v3930, %v3938
    %v3940 = vmul.f32 %v3939, 0.7978846
    %v3941 = vtanh.pop %v3940
    %v3942 = vadd.f32 %v3941, 1.0
    %v3943 = vmul.f32 %v3935, %v3942
    %s3944 = scalar_lea.vmem %s23, 64
    %v3945 = vld [vmem:[%s3944] sm:$0xf]
    %v3946 = vld [vmem:[%s3944 + $0x4] sm:$0xf]
    %v3947 = vld [vmem:[%s3944 + $0x8] sm:$0xf]
    %v3948 = vld [vmem:[%s3944 + $0xc] sm:$0xf]
    %v3949 = vld [vmem:[%s3944 + $0x10] sm:$0xf]
    %v3950 = vld [vmem:[%s3944 + $0x14] sm:$0xf]
    %v3951 = vld [vmem:[%s3944 + $0x18] sm:$0xf]
    %v3952 = vld [vmem:[%s3944 + $0x1c] sm:$0xf]
    %v3953 = vld [vmem:[%s3944 + $0x20] sm:$0xf]
    %v3954 = vld [vmem:[%s3944 + $0x24] sm:$0xf]
    %v3955 = vld [vmem:[%s3944 + $0x28] sm:$0xf]
    %v3956 = vld [vmem:[%s3944 + $0x2c] sm:$0xf]
    %v3957 = vld [vmem:[%s3944 + $0x30] sm:$0xf]
    %v3958 = vld [vmem:[%s3944 + $0x34] sm:$0xf]
    %v3959 = vld [vmem:[%s3944 + $0x38] sm:$0xf]
    %v3960 = vld [vmem:[%s3944 + $0x3c] sm:$0xf]
    %s3961 = scalar_lea.vmem %s24, 1
    %v3962 = vld [vmem:[%s3961] sm:$0x1]
    %v3963 = vpack.c.bf16 %v3943, %v3943
    %v3965 = vlaneseq
    %v3966 = vshrl.u32 %v3965, 7
    %v3967 = vsub.s32 0, %v3966
    %v3968 = vrot.slane %v3962, %v3967
    %v3986 = vunpack.c.l.b16 %v3945
    %v3987 = vunpack.c.l.b16 %v3946
    %v3988 = vunpack.c.l.b16 %v3947
    %v3989 = vunpack.c.l.b16 %v3948
    %v3990 = vunpack.c.l.b16 %v3949
    %v3991 = vunpack.c.l.b16 %v3950
    %v3992 = vunpack.c.l.b16 %v3951
    %v3993 = vunpack.c.l.b16 %v3952
    %v3994 = vunpack.c.l.b16 %v3953
    %v3995 = vunpack.c.l.b16 %v3954
    %v3996 = vunpack.c.l.b16 %v3955
    %v3997 = vunpack.c.l.b16 %v3956
    %v3998 = vunpack.c.l.b16 %v3957
    %v3999 = vunpack.c.l.b16 %v3958
    %v4000 = vunpack.c.l.b16 %v3959
    %v4001 = vunpack.c.l.b16 %v3960
    %v4002 = vpack.c.b16 %v3987, %v3986
    %v4003 = vpack.c.b16 %v3989, %v3988
    %v4004 = vpack.c.b16 %v3991, %v3990
    %v4005 = vpack.c.b16 %v3993, %v3992
    %v4006 = vpack.c.b16 %v3995, %v3994
    %v4007 = vpack.c.b16 %v3997, %v3996
    %v4008 = vpack.c.b16 %v3999, %v3998
    %v4009 = vpack.c.b16 %v4001, %v4000
    %4018 = vmatprep.subr.bf16.mxu0 0
    %4019 = vmatpush1.bf16.msra.mxu0 %v4009
    %4020 = vmatprep.subr.bf16.mxu0 0
    %4021 = vmatpush1.bf16.msra.mxu0 %v4008
    %4022 = vmatprep.subr.bf16.mxu0 0
    %4023 = vmatpush1.bf16.msra.mxu0 %v4007
    %4024 = vmatprep.subr.bf16.mxu0 0
    %4025 = vmatpush1.bf16.msra.mxu0 %v4006
    %4026 = vmatprep.subr.bf16.mxu0 0
    %4027 = vmatpush1.bf16.msra.mxu0 %v4005
    %4028 = vmatprep.subr.bf16.mxu0 0
    %4029 = vmatpush1.bf16.msra.mxu0 %v4004
    %4030 = vmatprep.subr.bf16.mxu0 0
    %4031 = vmatpush1.bf16.msra.mxu0 %v4003
    %4032 = vmatprep.subr.bf16.mxu0 0
    %4033 = vmatpush1.bf16.msra.mxu0 %v4002
    %4034 = vmatprep.subr.bf16.mxu0 0
    %4035 = vmatpush2.bf16.msra.mxu0 0
    %4036 = vmatprep.subr.bf16.mxu0 0
    %4037 = vmatpush2.bf16.msra.mxu0 0
    %4038 = vmatprep.subr.bf16.mxu0 0
    %4039 = vmatpush2.bf16.msra.mxu0 0
    %4040 = vmatprep.subr.bf16.mxu0 0
    %4041 = vmatpush2.bf16.msra.mxu0 0
    %4042 = vmatprep.subr.bf16.mxu0 0
    %4043 = vmatpush2.bf16.msra.mxu0 0
    %4044 = vmatprep.subr.bf16.mxu0 0
    %4045 = vmatpush2.bf16.msra.mxu0 0
    %4046 = vmatprep.subr.bf16.mxu0 0
    %4047 = vmatpush2.bf16.msra.mxu0 0
    %4048 = vmatprep.subr.bf16.mxu0 0
    %4049 = vmatpush2.bf16.msra.mxu0 0
    %4050 = vmatprep.mubr.bf16.mxu0 0
    %4051 = vmatmul.mubr.bf16.gmra.mxu0 %v3963
    %v4052 = vpop.f32.mrf.mxu0
    %v4053 = vadd.f32 %v3968, %v4052
    %v4054 = vpop.f32.mrf.mxu0
    %v4055 = vpop.f32.mrf.mxu0
    %v4056 = vpop.f32.mrf.mxu0
    %4057 = vdwg.mxu0
    %v4058 = vadd.f32 %v3834, %v4053
    %v4059 = vld [vmem:[%s25] sm:$0x1]
    %v4060 = vld [vmem:[%s26] sm:$0x1]
    %v4061 = vsel %vm1863, %v4058, 0.0
    %4062 = vadd.xlane.f32.xlu0 %v4061
    %v4063 = vpop.xlane.xlu0 %4062
    %v4064 = vmul.f32 %v4063, %v192
    %v4065 = vsub.f32 %v4058, %v4064
    %v4066 = vmul.f32 %v4065, %v4065
    %v4067 = vsel %vm1863, %v4066, 0.0
    %4068 = vadd.xlane.f32.xlu0 %v4067
    %v4069 = vpop.xlane.xlu0 %4068
    %v4070 = vmul.f32 %v4069, %v192
    %v4071 = vadd.f32 %v4070, 1e-06
    %v4072 = vrsqrt.pop %v4071
    %v4073 = vmul.f32 %v4065, %v4072
    %v4075 = vlaneseq
    %v4076 = vshrl.u32 %v4075, 7
    %v4077 = vsub.s32 0, %v4076
    %v4078 = vrot.slane %v4059, %v4077
    %v4080 = vmul.f32 %v4073, %v4078
    %v4082 = vlaneseq
    %v4083 = vshrl.u32 %v4082, 7
    %v4084 = vsub.s32 0, %v4083
    %v4085 = vrot.slane %v4060, %v4084
    %v4087 = vadd.f32 %v4080, %v4085
    %4088 = vst.msk [vmem:[#allocation2] sm:$0x3] %vm1863, %v4087
    // Predicated region
    $region110: #{timesformer_forward.1} parent=1 // pred_check
      _
    $region111: #{timesformer_forward.1} parent=1 // pred_check_branch
      %4090 = sbr.rel (0) target = $region113
    $region112: #{timesformer_forward.1} parent=1 // pred_region
      %s4092 = ssub.s32 32, 32
      %4093 = vsyncadd [#allocation3], %s4092
      %s4095 = sshll.u32 [#allocation2], 4
      %s4096 = int_to_ptr.vmem [resolvable:$true] %s4095
      %4098 = dma.vmem_to_hbm [thread:$0]  %s4096, 32, %s27, [#allocation3]
    $region113: #{timesformer_forward.1} parent=1 // pred_fallthru
      _
    // Predicated region
    $region114: #{timesformer_forward.1} parent=1 // pred_check
      _
    $region115: #{timesformer_forward.1} parent=1 // pred_check_branch
      %4100 = sbr.rel (0) target = $region117
    $region116: #{timesformer_forward.1} parent=1 // pred_region
      %4101 = dma.done [#allocation3], 32
    $region117: #{timesformer_forward.1} parent=1 // pred_fallthru
      _
    %4102 = vsyncpa [#allocation3], 1

</llo_original>
